<compile_context>
chip_gen: v7x
topology: tpu7x:2x2x1
jax: 0.10.0
libtpu: 0.0.40
codegen_flags: <defaults>
</compile_context>

<pallas_src>
import functools

import jax
import jax.numpy as jnp
import numpy as np
from jax.experimental import pallas as pl
from jax.experimental.pallas import tpu as pltpu

KSIZE = 3
BN_EPS = 1e-5
_INV_SQRT2 = 0.7071067811865476

# Inter-pass intermediate dtype.  bf16 halves the y HBM round-trip (~25% of
# total HBM bytes); set to jnp.float32 for bit-tight accuracy.
Y_DTYPE = jnp.bfloat16


def _dw_conv3x3_rows(get_row, emit_row, w, b, H, W, C):
    """Depthwise 3x3 SAME conv, row-sliding-window formulation.

    get_row(h)  -> (1, W, C) f32 input row (read/preprocessed lazily, once).
    emit_row(oh, acc) consumes the (1, W, C) f32 output row.
    w: (3, 3, C) f32, b: (1, C) f32.

    The Python loops are statically unrolled; only ~3 row triples plus a
    one-row accumulator are live at any point, so everything stays in vregs.
    """
    # Per-tap (1,1,C) weight slices and the bias row, hoisted out of the loop
    # (JAX does not CSE broadcasts).
    wt = [[w[dy:dy + 1, dx:dx + 1, :] for dx in range(KSIZE)]
          for dy in range(KSIZE)]
    bias_row = jnp.zeros((1, W, C), jnp.float32) + b.reshape(1, 1, C)
    zero_col = jnp.zeros((1, 1, C), jnp.float32)

    triples = {}  # h -> (in[w-1], in[w], in[w+1]) for row h (zero-padded at W borders)

    def triple(h):
        if h not in triples:
            r = get_row(h)                                              # (1, W, C)
            wm1 = jnp.concatenate([zero_col, r[:, :W - 1, :]], axis=1)  # in[h, w-1]
            wp1 = jnp.concatenate([r[:, 1:, :], zero_col], axis=1)      # in[h, w+1]
            triples[h] = (wm1, r, wp1)
        return triples[h]

    for oh in range(H):
        acc = bias_row
        for dy in range(KSIZE):
            ih = oh + dy - 1
            if ih < 0 or ih >= H:      # zero padding at the H borders
                continue
            t = triple(ih)
            for dx in range(KSIZE):
                acc = acc + t[dx] * wt[dy][dx]
        emit_row(oh, acc)
        triples.pop(oh - 1, None)      # keep the sliding window at <= 3 rows


def _lpi_pass1_kernel(x_ref, w1_ref, b1_ref, y_ref, stats_ref):
    """conv1(+bias) -> exact GELU, with fused per-tile BN statistics."""
    _, H, W, C = x_ref.shape
    w1 = w1_ref[...].astype(jnp.float32)     # (3, 3, C), loaded once
    b1 = b1_ref[...].astype(jnp.float32)     # (1, C)

    sums = [jnp.zeros((1, C), jnp.float32), jnp.zeros((1, C), jnp.float32)]

    def get_row(h):
        return x_ref[0, h:h + 1].astype(jnp.float32)          # (1, W, C)

    def emit_row(oh, acc):
        # Exact (erf) GELU, matching torch.nn.GELU() default.
        g = 0.5 * acc * (1.0 + jax.lax.erf(acc * _INV_SQRT2))
        y_ref[0, oh:oh + 1] = g.astype(y_ref.dtype)
        # Per-channel sum / sum-of-squares in f32 (before the bf16 cast).
        sums[0] = sums[0] + jnp.sum(g, axis=1)                 # (1, C)
        sums[1] = sums[1] + jnp.sum(g * g, axis=1)             # (1, C)

    _dw_conv3x3_rows(get_row, emit_row, w1, b1, H, W, C)

    stats_ref[0, 0:1, :] = sums[0]
    stats_ref[0, 1:2, :] = sums[1]


def _lpi_pass2_kernel(y_ref, stats_ref, gamma_ref, beta_ref, w2_ref, b2_ref,
                      o_ref, *, inv_n):
    """Fused BatchNorm (scale/shift folded from batch stats) -> conv2(+bias)."""
    _, H, W, C = y_ref.shape

    # BN scalar math fused in-kernel ((1,C)-sized; recomputed per grid step is
    # cheaper than separate tiny XLA ops between the two passes).
    s1 = stats_ref[0:1, :].astype(jnp.float32)          # sum(y)
    s2 = stats_ref[1:2, :].astype(jnp.float32)          # sum(y*y)
    mean = s1 * inv_n
    var = jnp.maximum(s2 * inv_n - mean * mean, 0.0)    # biased variance
    inv_std = jax.lax.rsqrt(var + BN_EPS)
    gamma = gamma_ref[...].astype(jnp.float32)          # (1, C)
    beta = beta_ref[...].astype(jnp.float32)            # (1, C)
    scale = (gamma * inv_std).reshape(1, 1, C)
    shift = (beta - mean * gamma * inv_std).reshape(1, 1, C)

    w2 = w2_ref[...].astype(jnp.float32)
    b2 = b2_ref[...].astype(jnp.float32)

    def get_row(h):
        # Folded BN affine applied per row on load (no whole-image temporary).
        return y_ref[0, h:h + 1].astype(jnp.float32) * scale + shift

    def emit_row(oh, acc):
        o_ref[0, oh:oh + 1] = acc.astype(o_ref.dtype)

    _dw_conv3x3_rows(get_row, emit_row, w2, b2, H, W, C)


def _vmem_limit_bytes(per_step_tile_bytes):
    """Double-buffered in/out tiles + weights + headroom.

    Capped at 56 MiB (safe on v7x's 64 MiB / TensorCore); raised toward
    ~100 MiB when the chip reports a larger VMEM (v5e / v6e: 128 MiB).
    """
    need = 3 * per_step_tile_bytes + (4 << 20)
    cap = 56 << 20
    try:
        phys = int(pltpu.get_tpu_info().vmem_capacity_bytes)
        cap = max(cap, min(int(phys * 0.8), 110 << 20))
    except Exception:
        pass
    return int(max(16 << 20, min(need, cap)))


@jax.jit
def lpi_forward(x, w1, b1, gamma, beta, w2, b2):
    """x: (B, H, W, C) float32. Weights w*: (3, 3, C); b*/gamma/beta: (1, C)."""
    B, H, W, C = x.shape

    x_bytes = H * W * C * x.dtype.itemsize
    y_bytes = H * W * C * jnp.dtype(Y_DTYPE).itemsize

    img_spec = pl.BlockSpec((1, H, W, C), lambda b: (b, 0, 0, 0))
    w_spec = pl.BlockSpec((KSIZE, KSIZE, C), lambda b: (0, 0, 0))
    vec_spec = pl.BlockSpec((1, C), lambda b: (0, 0))
    stats_out_spec = pl.BlockSpec((1, 2, C), lambda b: (b, 0, 0))

    cparams1 = pltpu.CompilerParams(
        dimension_semantics=("parallel",),    # independent per-image tiles
        vmem_limit_bytes=_vmem_limit_bytes(2 * (x_bytes + y_bytes)))
    cparams2 = pltpu.CompilerParams(
        dimension_semantics=("parallel",),
        vmem_limit_bytes=_vmem_limit_bytes(2 * (y_bytes + x_bytes)))

    # Pass 1: conv1 + GELU, with fused per-tile BN statistics.
    y, stats = pl.pallas_call(
        _lpi_pass1_kernel,
        out_shape=(jax.ShapeDtypeStruct((B, H, W, C), Y_DTYPE),
                   jax.ShapeDtypeStruct((B, 2, C), jnp.float32)),
        grid=(B,),
        in_specs=[img_spec, w_spec, vec_spec],
        out_specs=(img_spec, stats_out_spec),
        compiler_params=cparams1,
    )(x, w1, b1)

    # Only remaining inter-pass XLA op: reduce the per-tile stats over batch.
    stats_sum = jnp.sum(stats, axis=0)        # (2, C)

    # TODO(synk): BatchNorm2d running_mean/running_var buffer updates (a
    # training-time side effect) are not produced; the forward output does not
    # depend on them.

    # Pass 2: folded BN affine (computed in-kernel from stats) + conv2.
    out = pl.pallas_call(
        functools.partial(_lpi_pass2_kernel, inv_n=float(1.0 / (B * H * W))),
        out_shape=jax.ShapeDtypeStruct((B, H, W, C), x.dtype),
        grid=(B,),
        in_specs=[img_spec,
                  pl.BlockSpec((2, C), lambda b: (0, 0)),
                  vec_spec, vec_spec, w_spec, vec_spec],
        out_specs=img_spec,
        compiler_params=cparams2,
    )(y, stats_sum, gamma, beta, w2, b2)
    return out


def _reference(x, w1, b1, gamma, beta, w2, b2):
    """Pure-JAX reference mirroring the PyTorch module (NCHW internally)."""
    xn = jnp.transpose(x, (0, 3, 1, 2))  # NCHW

    def dw(inp, w, b):
        # (K,K,C) -> OIHW (C,1,K,K), groups = C
        w_oihw = jnp.transpose(w, (2, 0, 1))[:, None, :, :]
        y = jax.lax.conv_general_dilated(
            inp, w_oihw, window_strides=(1, 1), padding="SAME",
            feature_group_count=inp.shape[1],
            dimension_numbers=("NCHW", "OIHW", "NCHW"),
            precision=jax.lax.Precision.HIGHEST)
        return y + b[0][None, :, None, None]

    y = dw(xn, w1, b1)
    y = 0.5 * y * (1.0 + jax.lax.erf(y * _INV_SQRT2))
    mean = jnp.mean(y, axis=(0, 2, 3), keepdims=True)
    var = jnp.mean((y - mean) ** 2, axis=(0, 2, 3), keepdims=True)
    y = (y - mean) / jnp.sqrt(var + BN_EPS)
    y = y * gamma[0][None, :, None, None] + beta[0][None, :, None, None]
    y = dw(y, w2, b2)
    return jnp.transpose(y, (0, 2, 3, 1))


if __name__ == "__main__":
    # C = 128 so the NHWC layout is lane-dense (full 128-lane vregs, unmasked
    # stores); small, deterministic shapes.
    B, H, W, C = 2, 16, 16, 128
    key = jax.random.PRNGKey(0)
    kx, kw1, kb1, kw2, kb2 = jax.random.split(key, 5)

    x = jax.random.normal(kx, (B, H, W, C), dtype=jnp.float32)

    # Conv2d-style uniform init (bound = 1/sqrt(fan_in) = 1/3 for depthwise 3x3).
    bound = 1.0 / 3.0
    w1 = jax.random.uniform(kw1, (KSIZE, KSIZE, C), jnp.float32, -bound, bound)
    b1 = jax.random.uniform(kb1, (1, C), jnp.float32, -bound, bound)
    w2 = jax.random.uniform(kw2, (KSIZE, KSIZE, C), jnp.float32, -bound, bound)
    b2 = jax.random.uniform(kb2, (1, C), jnp.float32, -bound, bound)
    gamma = jnp.ones((1, C), jnp.float32)   # BatchNorm2d default weight
    beta = jnp.zeros((1, C), jnp.float32)   # BatchNorm2d default bias

    out = jax.block_until_ready(lpi_forward(x, w1, b1, gamma, beta, w2, b2))
    ref = jax.block_until_ready(_reference(x, w1, b1, gamma, beta, w2, b2))

    # Tolerance relaxed when the inter-pass intermediate is stored as bf16
    # (~0.4% relative rounding of y before BN/conv2); f32 keeps 2e-4.
    if jnp.dtype(Y_DTYPE) == jnp.dtype(jnp.float32):
        atol = rtol = 2e-4
    else:
        atol, rtol = 5e-2, 2e-2
    np.testing.assert_allclose(np.asarray(out), np.asarray(ref),
                               atol=atol, rtol=rtol)

    print("KERNEL_OK")
</pallas_src>

<mosaic_0001>
module attributes {stable_mosaic.version = 11 : i64} {
  func.func @_lpi_pass2_kernel(%arg0: i32, %arg1: memref<1x16x16x128xbf16, #tpu.memory_space<vmem>>, %arg2: memref<2x128xf32, #tpu.memory_space<vmem>>, %arg3: memref<1x128xf32, #tpu.memory_space<vmem>>, %arg4: memref<1x128xf32, #tpu.memory_space<vmem>>, %arg5: memref<3x3x128xf32, #tpu.memory_space<vmem>>, %arg6: memref<1x128xf32, #tpu.memory_space<vmem>>, %arg7: memref<1x16x16x128xf32, #tpu.memory_space<vmem>>) attributes {dimension_semantics = [#tpu.dimension_semantics<parallel>], iteration_bounds = array<i64: 2>, scalar_prefetch = 0 : i64, scratch_operands = 0 : i64, tpu.core_type = #tpu.core_type<tc>, window_params = [{transform_indices = @transform_0, window_bounds = array<i64: 1, 16, 16, 128>}, {pipeline_mode = #tpu.pipeline_mode<synchronous>, transform_indices = @transform_1, window_bounds = array<i64: 2, 128>}, {pipeline_mode = #tpu.pipeline_mode<synchronous>, transform_indices = @transform_2, window_bounds = array<i64: 1, 128>}, {pipeline_mode = #tpu.pipeline_mode<synchronous>, transform_indices = @transform_3, window_bounds = array<i64: 1, 128>}, {pipeline_mode = #tpu.pipeline_mode<synchronous>, transform_indices = @transform_4, window_bounds = array<i64: 3, 3, 128>}, {pipeline_mode = #tpu.pipeline_mode<synchronous>, transform_indices = @transform_5, window_bounds = array<i64: 1, 128>}, {transform_indices = @transform_6, window_bounds = array<i64: 1, 16, 16, 128>}]} {
    %c0 = arith.constant 0 : index
    %c0_0 = arith.constant 0 : index
    %0 = vector.load %arg2[%c0, %c0_0] : memref<2x128xf32, #tpu.memory_space<vmem>>, vector<1x128xf32>
    %c1 = arith.constant 1 : index
    %c0_1 = arith.constant 0 : index
    %1 = vector.load %arg2[%c1, %c0_1] : memref<2x128xf32, #tpu.memory_space<vmem>>, vector<1x128xf32>
    %cst = arith.constant 0.001953125 : f32
    %2 = vector.broadcast %cst : f32 to vector<1x128xf32>
    %3 = arith.mulf %0, %2 : vector<1x128xf32>
    %cst_2 = arith.constant 0.001953125 : f32
    %4 = vector.broadcast %cst_2 : f32 to vector<1x128xf32>
    %5 = arith.mulf %1, %4 : vector<1x128xf32>
    %6 = arith.mulf %3, %3 : vector<1x128xf32>
    %7 = arith.subf %5, %6 : vector<1x128xf32>
    %cst_3 = arith.constant 0.000000e+00 : f32
    %8 = vector.broadcast %cst_3 : f32 to vector<1x128xf32>
    %9 = arith.maximumf %7, %8 : vector<1x128xf32>
    %cst_4 = arith.constant 9.99999974E-6 : f32
    %10 = vector.broadcast %cst_4 : f32 to vector<1x128xf32>
    %11 = arith.addf %9, %10 : vector<1x128xf32>
    %12 = math.rsqrt %11 : vector<1x128xf32>
    %c0_5 = arith.constant 0 : index
    %c0_6 = arith.constant 0 : index
    %13 = vector.load %arg3[%c0_5, %c0_6] : memref<1x128xf32, #tpu.memory_space<vmem>>, vector<1x128xf32>
    %c0_7 = arith.constant 0 : index
    %c0_8 = arith.constant 0 : index
    %14 = vector.load %arg4[%c0_7, %c0_8] : memref<1x128xf32, #tpu.memory_space<vmem>>, vector<1x128xf32>
    %15 = arith.mulf %13, %12 : vector<1x128xf32>
    %16 = vector.shape_cast %15 : vector<1x128xf32> to vector<1x1x128xf32>
    %17 = arith.mulf %3, %13 : vector<1x128xf32>
    %18 = arith.mulf %17, %12 : vector<1x128xf32>
    %19 = arith.subf %14, %18 : vector<1x128xf32>
    %20 = vector.shape_cast %19 : vector<1x128xf32> to vector<1x1x128xf32>
    %c0_9 = arith.constant 0 : index
    %c0_10 = arith.constant 0 : index
    %c0_11 = arith.constant 0 : index
    %21 = vector.load %arg5[%c0_9, %c0_10, %c0_11] : memref<3x3x128xf32, #tpu.memory_space<vmem>>, vector<3x3x128xf32>
    %c0_12 = arith.constant 0 : index
    %c0_13 = arith.constant 0 : index
    %22 = vector.load %arg6[%c0_12, %c0_13] : memref<1x128xf32, #tpu.memory_space<vmem>>, vector<1x128xf32>
    %23 = vector.extract_strided_slice %21 {offsets = [0, 0, 0], sizes = [1, 1, 128], strides = [1, 1, 1]} : vector<3x3x128xf32> to vector<1x1x128xf32>
    %24 = vector.extract_strided_slice %21 {offsets = [0, 1, 0], sizes = [1, 1, 128], strides = [1, 1, 1]} : vector<3x3x128xf32> to vector<1x1x128xf32>
    %25 = vector.extract_strided_slice %21 {offsets = [0, 2, 0], sizes = [1, 1, 128], strides = [1, 1, 1]} : vector<3x3x128xf32> to vector<1x1x128xf32>
    %26 = vector.extract_strided_slice %21 {offsets = [1, 0, 0], sizes = [1, 1, 128], strides = [1, 1, 1]} : vector<3x3x128xf32> to vector<1x1x128xf32>
    %27 = vector.extract_strided_slice %21 {offsets = [1, 1, 0], sizes = [1, 1, 128], strides = [1, 1, 1]} : vector<3x3x128xf32> to vector<1x1x128xf32>
    %28 = vector.extract_strided_slice %21 {offsets = [1, 2, 0], sizes = [1, 1, 128], strides = [1, 1, 1]} : vector<3x3x128xf32> to vector<1x1x128xf32>
    %29 = vector.extract_strided_slice %21 {offsets = [2, 0, 0], sizes = [1, 1, 128], strides = [1, 1, 1]} : vector<3x3x128xf32> to vector<1x1x128xf32>
    %30 = vector.extract_strided_slice %21 {offsets = [2, 1, 0], sizes = [1, 1, 128], strides = [1, 1, 1]} : vector<3x3x128xf32> to vector<1x1x128xf32>
    %31 = vector.extract_strided_slice %21 {offsets = [2, 2, 0], sizes = [1, 1, 128], strides = [1, 1, 1]} : vector<3x3x128xf32> to vector<1x1x128xf32>
    %cst_14 = arith.constant 0.000000e+00 : f32
    %32 = vector.broadcast %cst_14 : f32 to vector<1x16x128xf32>
    %33 = vector.shape_cast %22 : vector<1x128xf32> to vector<1x1x128xf32>
    %34 = vector.broadcast %33 : vector<1x1x128xf32> to vector<1x16x128xf32>
    %35 = arith.addf %32, %34 : vector<1x16x128xf32>
    %cst_15 = arith.constant 0.000000e+00 : f32
    %36 = vector.broadcast %cst_15 : f32 to vector<1x1x128xf32>
    %c0_16 = arith.constant 0 : index
    %c0_17 = arith.constant 0 : index
    %c0_18 = arith.constant 0 : index
    %c0_19 = arith.constant 0 : index
    %37 = vector.load %arg1[%c0_16, %c0_17, %c0_18, %c0_19] : memref<1x16x16x128xbf16, #tpu.memory_space<vmem>>, vector<1x1x16x128xbf16>
    %38 = vector.shape_cast %37 : vector<1x1x16x128xbf16> to vector<1x16x128xbf16>
    %39 = arith.extf %38 : vector<1x16x128xbf16> to vector<1x16x128xf32>
    %40 = vector.broadcast %16 : vector<1x1x128xf32> to vector<1x16x128xf32>
    %41 = arith.mulf %39, %40 : vector<1x16x128xf32>
    %42 = vector.broadcast %20 : vector<1x1x128xf32> to vector<1x16x128xf32>
    %43 = arith.addf %41, %42 : vector<1x16x128xf32>
    %44 = vector.extract_strided_slice %43 {offsets = [0, 0, 0], sizes = [1, 15, 128], strides = [1, 1, 1]} : vector<1x16x128xf32> to vector<1x15x128xf32>
    %45 = tpu.concatenate %36, %44 in 1 : vector<1x1x128xf32>, vector<1x15x128xf32> -> vector<1x16x128xf32>
    %46 = vector.extract_strided_slice %43 {offsets = [0, 1, 0], sizes = [1, 15, 128], strides = [1, 1, 1]} : vector<1x16x128xf32> to vector<1x15x128xf32>
    %47 = tpu.concatenate %46, %36 in 1 : vector<1x15x128xf32>, vector<1x1x128xf32> -> vector<1x16x128xf32>
    %48 = vector.broadcast %26 : vector<1x1x128xf32> to vector<1x16x128xf32>
    %49 = arith.mulf %45, %48 : vector<1x16x128xf32>
    %50 = arith.addf %35, %49 : vector<1x16x128xf32>
    %51 = vector.broadcast %27 : vector<1x1x128xf32> to vector<1x16x128xf32>
    %52 = arith.mulf %43, %51 : vector<1x16x128xf32>
    %53 = arith.addf %50, %52 : vector<1x16x128xf32>
    %54 = vector.broadcast %28 : vector<1x1x128xf32> to vector<1x16x128xf32>
    %55 = arith.mulf %47, %54 : vector<1x16x128xf32>
    %56 = arith.addf %53, %55 : vector<1x16x128xf32>
    %c0_20 = arith.constant 0 : index
    %c1_21 = arith.constant 1 : index
    %c0_22 = arith.constant 0 : index
    %c0_23 = arith.constant 0 : index
    %57 = vector.load %arg1[%c0_20, %c1_21, %c0_22, %c0_23] : memref<1x16x16x128xbf16, #tpu.memory_space<vmem>>, vector<1x1x16x128xbf16>
    %58 = vector.shape_cast %57 : vector<1x1x16x128xbf16> to vector<1x16x128xbf16>
    %59 = arith.extf %58 : vector<1x16x128xbf16> to vector<1x16x128xf32>
    %60 = vector.broadcast %16 : vector<1x1x128xf32> to vector<1x16x128xf32>
    %61 = arith.mulf %59, %60 : vector<1x16x128xf32>
    %62 = vector.broadcast %20 : vector<1x1x128xf32> to vector<1x16x128xf32>
    %63 = arith.addf %61, %62 : vector<1x16x128xf32>
    %64 = vector.extract_strided_slice %63 {offsets = [0, 0, 0], sizes = [1, 15, 128], strides = [1, 1, 1]} : vector<1x16x128xf32> to vector<1x15x128xf32>
    %65 = tpu.concatenate %36, %64 in 1 : vector<1x1x128xf32>, vector<1x15x128xf32> -> vector<1x16x128xf32>
    %66 = vector.extract_strided_slice %63 {offsets = [0, 1, 0], sizes = [1, 15, 128], strides = [1, 1, 1]} : vector<1x16x128xf32> to vector<1x15x128xf32>
    %67 = tpu.concatenate %66, %36 in 1 : vector<1x15x128xf32>, vector<1x1x128xf32> -> vector<1x16x128xf32>
    %68 = vector.broadcast %29 : vector<1x1x128xf32> to vector<1x16x128xf32>
    %69 = arith.mulf %65, %68 : vector<1x16x128xf32>
    %70 = arith.addf %56, %69 : vector<1x16x128xf32>
    %71 = vector.broadcast %30 : vector<1x1x128xf32> to vector<1x16x128xf32>
    %72 = arith.mulf %63, %71 : vector<1x16x128xf32>
    %73 = arith.addf %70, %72 : vector<1x16x128xf32>
    %74 = vector.broadcast %31 : vector<1x1x128xf32> to vector<1x16x128xf32>
    %75 = arith.mulf %67, %74 : vector<1x16x128xf32>
    %76 = arith.addf %73, %75 : vector<1x16x128xf32>
    %c0_24 = arith.constant 0 : index
    %c0_25 = arith.constant 0 : index
    %c0_26 = arith.constant 0 : index
    %c0_27 = arith.constant 0 : index
    %77 = vector.load %arg7[%c0_24, %c0_25, %c0_26, %c0_27] : memref<1x16x16x128xf32, #tpu.memory_space<vmem>>, vector<1x1x16x128xf32>
    %78 = vector.shape_cast %77 : vector<1x1x16x128xf32> to vector<1x16x128xf32>
    %79 = vector.shape_cast %76 : vector<1x16x128xf32> to vector<1x1x16x128xf32>
    tpu.vector_store %arg7[%c0_24, %c0_25, %c0_26, %c0_27], %79 {strides = array<i32>} : memref<1x16x16x128xf32, #tpu.memory_space<vmem>>, vector<1x1x16x128xf32>,
    %80 = vector.broadcast %23 : vector<1x1x128xf32> to vector<1x16x128xf32>
    %81 = arith.mulf %45, %80 : vector<1x16x128xf32>
    %82 = arith.addf %35, %81 : vector<1x16x128xf32>
    %83 = vector.broadcast %24 : vector<1x1x128xf32> to vector<1x16x128xf32>
    %84 = arith.mulf %43, %83 : vector<1x16x128xf32>
    %85 = arith.addf %82, %84 : vector<1x16x128xf32>
    %86 = vector.broadcast %25 : vector<1x1x128xf32> to vector<1x16x128xf32>
    %87 = arith.mulf %47, %86 : vector<1x16x128xf32>
    %88 = arith.addf %85, %87 : vector<1x16x128xf32>
    %89 = vector.broadcast %26 : vector<1x1x128xf32> to vector<1x16x128xf32>
    %90 = arith.mulf %65, %89 : vector<1x16x128xf32>
    %91 = arith.addf %88, %90 : vector<1x16x128xf32>
    %92 = vector.broadcast %27 : vector<1x1x128xf32> to vector<1x16x128xf32>
    %93 = arith.mulf %63, %92 : vector<1x16x128xf32>
    %94 = arith.addf %91, %93 : vector<1x16x128xf32>
    %95 = vector.broadcast %28 : vector<1x1x128xf32> to vector<1x16x128xf32>
    %96 = arith.mulf %67, %95 : vector<1x16x128xf32>
    %97 = arith.addf %94, %96 : vector<1x16x128xf32>
    %c0_28 = arith.constant 0 : index
    %c2 = arith.constant 2 : index
    %c0_29 = arith.constant 0 : index
    %c0_30 = arith.constant 0 : index
    %98 = vector.load %arg1[%c0_28, %c2, %c0_29, %c0_30] : memref<1x16x16x128xbf16, #tpu.memory_space<vmem>>, vector<1x1x16x128xbf16>
    %99 = vector.shape_cast %98 : vector<1x1x16x128xbf16> to vector<1x16x128xbf16>
    %100 = arith.extf %99 : vector<1x16x128xbf16> to vector<1x16x128xf32>
    %101 = vector.broadcast %16 : vector<1x1x128xf32> to vector<1x16x128xf32>
    %102 = arith.mulf %100, %101 : vector<1x16x128xf32>
    %103 = vector.broadcast %20 : vector<1x1x128xf32> to vector<1x16x128xf32>
    %104 = arith.addf %102, %103 : vector<1x16x128xf32>
    %105 = vector.extract_strided_slice %104 {offsets = [0, 0, 0], sizes = [1, 15, 128], strides = [1, 1, 1]} : vector<1x16x128xf32> to vector<1x15x128xf32>
    %106 = tpu.concatenate %36, %105 in 1 : vector<1x1x128xf32>, vector<1x15x128xf32> -> vector<1x16x128xf32>
    %107 = vector.extract_strided_slice %104 {offsets = [0, 1, 0], sizes = [1, 15, 128], strides = [1, 1, 1]} : vector<1x16x128xf32> to vector<1x15x128xf32>
    %108 = tpu.concatenate %107, %36 in 1 : vector<1x15x128xf32>, vector<1x1x128xf32> -> vector<1x16x128xf32>
    %109 = vector.broadcast %29 : vector<1x1x128xf32> to vector<1x16x128xf32>
    %110 = arith.mulf %106, %109 : vector<1x16x128xf32>
    %111 = arith.addf %97, %110 : vector<1x16x128xf32>
    %112 = vector.broadcast %30 : vector<1x1x128xf32> to vector<1x16x128xf32>
    %113 = arith.mulf %104, %112 : vector<1x16x128xf32>
    %114 = arith.addf %111, %113 : vector<1x16x128xf32>
    %115 = vector.broadcast %31 : vector<1x1x128xf32> to vector<1x16x128xf32>
    %116 = arith.mulf %108, %115 : vector<1x16x128xf32>
    %117 = arith.addf %114, %116 : vector<1x16x128xf32>
    %c0_31 = arith.constant 0 : index
    %c1_32 = arith.constant 1 : index
    %c0_33 = arith.constant 0 : index
    %c0_34 = arith.constant 0 : index
    %118 = vector.load %arg7[%c0_31, %c1_32, %c0_33, %c0_34] : memref<1x16x16x128xf32, #tpu.memory_space<vmem>>, vector<1x1x16x128xf32>
    %119 = vector.shape_cast %118 : vector<1x1x16x128xf32> to vector<1x16x128xf32>
    %120 = vector.shape_cast %117 : vector<1x16x128xf32> to vector<1x1x16x128xf32>
    tpu.vector_store %arg7[%c0_31, %c1_32, %c0_33, %c0_34], %120 {strides = array<i32>} : memref<1x16x16x128xf32, #tpu.memory_space<vmem>>, vector<1x1x16x128xf32>,
    %121 = vector.broadcast %23 : vector<1x1x128xf32> to vector<1x16x128xf32>
    %122 = arith.mulf %65, %121 : vector<1x16x128xf32>
    %123 = arith.addf %35, %122 : vector<1x16x128xf32>
    %124 = vector.broadcast %24 : vector<1x1x128xf32> to vector<1x16x128xf32>
    %125 = arith.mulf %63, %124 : vector<1x16x128xf32>
    %126 = arith.addf %123, %125 : vector<1x16x128xf32>
    %127 = vector.broadcast %25 : vector<1x1x128xf32> to vector<1x16x128xf32>
    %128 = arith.mulf %67, %127 : vector<1x16x128xf32>
    %129 = arith.addf %126, %128 : vector<1x16x128xf32>
    %130 = vector.broadcast %26 : vector<1x1x128xf32> to vector<1x16x128xf32>
    %131 = arith.mulf %106, %130 : vector<1x16x128xf32>
    %132 = arith.addf %129, %131 : vector<1x16x128xf32>
    %133 = vector.broadcast %27 : vector<1x1x128xf32> to vector<1x16x128xf32>
    %134 = arith.mulf %104, %133 : vector<1x16x128xf32>
    %135 = arith.addf %132, %134 : vector<1x16x128xf32>
    %136 = vector.broadcast %28 : vector<1x1x128xf32> to vector<1x16x128xf32>
    %137 = arith.mulf %108, %136 : vector<1x16x128xf32>
    %138 = arith.addf %135, %137 : vector<1x16x128xf32>
    %c0_35 = arith.constant 0 : index
    %c3 = arith.constant 3 : index
    %c0_36 = arith.constant 0 : index
    %c0_37 = arith.constant 0 : index
    %139 = vector.load %arg1[%c0_35, %c3, %c0_36, %c0_37] : memref<1x16x16x128xbf16, #tpu.memory_space<vmem>>, vector<1x1x16x128xbf16>
    %140 = vector.shape_cast %139 : vector<1x1x16x128xbf16> to vector<1x16x128xbf16>
    %141 = arith.extf %140 : vector<1x16x128xbf16> to vector<1x16x128xf32>
    %142 = vector.broadcast %16 : vector<1x1x128xf32> to vector<1x16x128xf32>
    %143 = arith.mulf %141, %142 : vector<1x16x128xf32>
    %144 = vector.broadcast %20 : vector<1x1x128xf32> to vector<1x16x128xf32>
    %145 = arith.addf %143, %144 : vector<1x16x128xf32>
    %146 = vector.extract_strided_slice %145 {offsets = [0, 0, 0], sizes = [1, 15, 128], strides = [1, 1, 1]} : vector<1x16x128xf32> to vector<1x15x128xf32>
    %147 = tpu.concatenate %36, %146 in 1 : vector<1x1x128xf32>, vector<1x15x128xf32> -> vector<1x16x128xf32>
    %148 = vector.extract_strided_slice %145 {offsets = [0, 1, 0], sizes = [1, 15, 128], strides = [1, 1, 1]} : vector<1x16x128xf32> to vector<1x15x128xf32>
    %149 = tpu.concatenate %148, %36 in 1 : vector<1x15x128xf32>, vector<1x1x128xf32> -> vector<1x16x128xf32>
    %150 = vector.broadcast %29 : vector<1x1x128xf32> to vector<1x16x128xf32>
    %151 = arith.mulf %147, %150 : vector<1x16x128xf32>
    %152 = arith.addf %138, %151 : vector<1x16x128xf32>
    %153 = vector.broadcast %30 : vector<1x1x128xf32> to vector<1x16x128xf32>
    %154 = arith.mulf %145, %153 : vector<1x16x128xf32>
    %155 = arith.addf %152, %154 : vector<1x16x128xf32>
    %156 = vector.broadcast %31 : vector<1x1x128xf32> to vector<1x16x128xf32>
    %157 = arith.mulf %149, %156 : vector<1x16x128xf32>
    %158 = arith.addf %155, %157 : vector<1x16x128xf32>
    %c0_38 = arith.constant 0 : index
    %c2_39 = arith.constant 2 : index
    %c0_40 = arith.constant 0 : index
    %c0_41 = arith.constant 0 : index
    %159 = vector.load %arg7[%c0_38, %c2_39, %c0_40, %c0_41] : memref<1x16x16x128xf32, #tpu.memory_space<vmem>>, vector<1x1x16x128xf32>
    %160 = vector.shape_cast %159 : vector<1x1x16x128xf32> to vector<1x16x128xf32>
    %161 = vector.shape_cast %158 : vector<1x16x128xf32> to vector<1x1x16x128xf32>
    tpu.vector_store %arg7[%c0_38, %c2_39, %c0_40, %c0_41], %161 {strides = array<i32>} : memref<1x16x16x128xf32, #tpu.memory_space<vmem>>, vector<1x1x16x128xf32>,
    %162 = vector.broadcast %23 : vector<1x1x128xf32> to vector<1x16x128xf32>
    %163 = arith.mulf %106, %162 : vector<1x16x128xf32>
    %164 = arith.addf %35, %163 : vector<1x16x128xf32>
    %165 = vector.broadcast %24 : vector<1x1x128xf32> to vector<1x16x128xf32>
    %166 = arith.mulf %104, %165 : vector<1x16x128xf32>
    %167 = arith.addf %164, %166 : vector<1x16x128xf32>
    %168 = vector.broadcast %25 : vector<1x1x128xf32> to vector<1x16x128xf32>
    %169 = arith.mulf %108, %168 : vector<1x16x128xf32>
    %170 = arith.addf %167, %169 : vector<1x16x128xf32>
    %171 = vector.broadcast %26 : vector<1x1x128xf32> to vector<1x16x128xf32>
    %172 = arith.mulf %147, %171 : vector<1x16x128xf32>
    %173 = arith.addf %170, %172 : vector<1x16x128xf32>
    %174 = vector.broadcast %27 : vector<1x1x128xf32> to vector<1x16x128xf32>
    %175 = arith.mulf %145, %174 : vector<1x16x128xf32>
    %176 = arith.addf %173, %175 : vector<1x16x128xf32>
    %177 = vector.broadcast %28 : vector<1x1x128xf32> to vector<1x16x128xf32>
    %178 = arith.mulf %149, %177 : vector<1x16x128xf32>
    %179 = arith.addf %176, %178 : vector<1x16x128xf32>
    %c0_42 = arith.constant 0 : index
    %c4 = arith.constant 4 : index
    %c0_43 = arith.constant 0 : index
    %c0_44 = arith.constant 0 : index
    %180 = vector.load %arg1[%c0_42, %c4, %c0_43, %c0_44] : memref<1x16x16x128xbf16, #tpu.memory_space<vmem>>, vector<1x1x16x128xbf16>
    %181 = vector.shape_cast %180 : vector<1x1x16x128xbf16> to vector<1x16x128xbf16>
    %182 = arith.extf %181 : vector<1x16x128xbf16> to vector<1x16x128xf32>
    %183 = vector.broadcast %16 : vector<1x1x128xf32> to vector<1x16x128xf32>
    %184 = arith.mulf %182, %183 : vector<1x16x128xf32>
    %185 = vector.broadcast %20 : vector<1x1x128xf32> to vector<1x16x128xf32>
    %186 = arith.addf %184, %185 : vector<1x16x128xf32>
    %187 = vector.extract_strided_slice %186 {offsets = [0, 0, 0], sizes = [1, 15, 128], strides = [1, 1, 1]} : vector<1x16x128xf32> to vector<1x15x128xf32>
    %188 = tpu.concatenate %36, %187 in 1 : vector<1x1x128xf32>, vector<1x15x128xf32> -> vector<1x16x128xf32>
    %189 = vector.extract_strided_slice %186 {offsets = [0, 1, 0], sizes = [1, 15, 128], strides = [1, 1, 1]} : vector<1x16x128xf32> to vector<1x15x128xf32>
    %190 = tpu.concatenate %189, %36 in 1 : vector<1x15x128xf32>, vector<1x1x128xf32> -> vector<1x16x128xf32>
    %191 = vector.broadcast %29 : vector<1x1x128xf32> to vector<1x16x128xf32>
    %192 = arith.mulf %188, %191 : vector<1x16x128xf32>
    %193 = arith.addf %179, %192 : vector<1x16x128xf32>
    %194 = vector.broadcast %30 : vector<1x1x128xf32> to vector<1x16x128xf32>
    %195 = arith.mulf %186, %194 : vector<1x16x128xf32>
    %196 = arith.addf %193, %195 : vector<1x16x128xf32>
    %197 = vector.broadcast %31 : vector<1x1x128xf32> to vector<1x16x128xf32>
    %198 = arith.mulf %190, %197 : vector<1x16x128xf32>
    %199 = arith.addf %196, %198 : vector<1x16x128xf32>
    %c0_45 = arith.constant 0 : index
    %c3_46 = arith.constant 3 : index
    %c0_47 = arith.constant 0 : index
    %c0_48 = arith.constant 0 : index
    %200 = vector.load %arg7[%c0_45, %c3_46, %c0_47, %c0_48] : memref<1x16x16x128xf32, #tpu.memory_space<vmem>>, vector<1x1x16x128xf32>
    %201 = vector.shape_cast %200 : vector<1x1x16x128xf32> to vector<1x16x128xf32>
    %202 = vector.shape_cast %199 : vector<1x16x128xf32> to vector<1x1x16x128xf32>
    tpu.vector_store %arg7[%c0_45, %c3_46, %c0_47, %c0_48], %202 {strides = array<i32>} : memref<1x16x16x128xf32, #tpu.memory_space<vmem>>, vector<1x1x16x128xf32>,
    %203 = vector.broadcast %23 : vector<1x1x128xf32> to vector<1x16x128xf32>
    %204 = arith.mulf %147, %203 : vector<1x16x128xf32>
    %205 = arith.addf %35, %204 : vector<1x16x128xf32>
    %206 = vector.broadcast %24 : vector<1x1x128xf32> to vector<1x16x128xf32>
    %207 = arith.mulf %145, %206 : vector<1x16x128xf32>
    %208 = arith.addf %205, %207 : vector<1x16x128xf32>
    %209 = vector.broadcast %25 : vector<1x1x128xf32> to vector<1x16x128xf32>
    %210 = arith.mulf %149, %209 : vector<1x16x128xf32>
    %211 = arith.addf %208, %210 : vector<1x16x128xf32>
    %212 = vector.broadcast %26 : vector<1x1x128xf32> to vector<1x16x128xf32>
    %213 = arith.mulf %188, %212 : vector<1x16x128xf32>
    %214 = arith.addf %211, %213 : vector<1x16x128xf32>
    %215 = vector.broadcast %27 : vector<1x1x128xf32> to vector<1x16x128xf32>
    %216 = arith.mulf %186, %215 : vector<1x16x128xf32>
    %217 = arith.addf %214, %216 : vector<1x16x128xf32>
    %218 = vector.broadcast %28 : vector<1x1x128xf32> to vector<1x16x128xf32>
    %219 = arith.mulf %190, %218 : vector<1x16x128xf32>
    %220 = arith.addf %217, %219 : vector<1x16x128xf32>
    %c0_49 = arith.constant 0 : index
    %c5 = arith.constant 5 : index
    %c0_50 = arith.constant 0 : index
    %c0_51 = arith.constant 0 : index
    %221 = vector.load %arg1[%c0_49, %c5, %c0_50, %c0_51] : memref<1x16x16x128xbf16, #tpu.memory_space<vmem>>, vector<1x1x16x128xbf16>
    %222 = vector.shape_cast %221 : vector<1x1x16x128xbf16> to vector<1x16x128xbf16>
    %223 = arith.extf %222 : vector<1x16x128xbf16> to vector<1x16x128xf32>
    %224 = vector.broadcast %16 : vector<1x1x128xf32> to vector<1x16x128xf32>
    %225 = arith.mulf %223, %224 : vector<1x16x128xf32>
    %226 = vector.broadcast %20 : vector<1x1x128xf32> to vector<1x16x128xf32>
    %227 = arith.addf %225, %226 : vector<1x16x128xf32>
    %228 = vector.extract_strided_slice %227 {offsets = [0, 0, 0], sizes = [1, 15, 128], strides = [1, 1, 1]} : vector<1x16x128xf32> to vector<1x15x128xf32>
    %229 = tpu.concatenate %36, %228 in 1 : vector<1x1x128xf32>, vector<1x15x128xf32> -> vector<1x16x128xf32>
    %230 = vector.extract_strided_slice %227 {offsets = [0, 1, 0], sizes = [1, 15, 128], strides = [1, 1, 1]} : vector<1x16x128xf32> to vector<1x15x128xf32>
    %231 = tpu.concatenate %230, %36 in 1 : vector<1x15x128xf32>, vector<1x1x128xf32> -> vector<1x16x128xf32>
    %232 = vector.broadcast %29 : vector<1x1x128xf32> to vector<1x16x128xf32>
    %233 = arith.mulf %229, %232 : vector<1x16x128xf32>
    %234 = arith.addf %220, %233 : vector<1x16x128xf32>
    %235 = vector.broadcast %30 : vector<1x1x128xf32> to vector<1x16x128xf32>
    %236 = arith.mulf %227, %235 : vector<1x16x128xf32>
    %237 = arith.addf %234, %236 : vector<1x16x128xf32>
    %238 = vector.broadcast %31 : vector<1x1x128xf32> to vector<1x16x128xf32>
    %239 = arith.mulf %231, %238 : vector<1x16x128xf32>
    %240 = arith.addf %237, %239 : vector<1x16x128xf32>
    %c0_52 = arith.constant 0 : index
    %c4_53 = arith.constant 4 : index
    %c0_54 = arith.constant 0 : index
    %c0_55 = arith.constant 0 : index
    %241 = vector.load %arg7[%c0_52, %c4_53, %c0_54, %c0_55] : memref<1x16x16x128xf32, #tpu.memory_space<vmem>>, vector<1x1x16x128xf32>
    %242 = vector.shape_cast %241 : vector<1x1x16x128xf32> to vector<1x16x128xf32>
    %243 = vector.shape_cast %240 : vector<1x16x128xf32> to vector<1x1x16x128xf32>
    tpu.vector_store %arg7[%c0_52, %c4_53, %c0_54, %c0_55], %243 {strides = array<i32>} : memref<1x16x16x128xf32, #tpu.memory_space<vmem>>, vector<1x1x16x128xf32>,
    %244 = vector.broadcast %23 : vector<1x1x128xf32> to vector<1x16x128xf32>
    %245 = arith.mulf %188, %244 : vector<1x16x128xf32>
    %246 = arith.addf %35, %245 : vector<1x16x128xf32>
    %247 = vector.broadcast %24 : vector<1x1x128xf32> to vector<1x16x128xf32>
    %248 = arith.mulf %186, %247 : vector<1x16x128xf32>
    %249 = arith.addf %246, %248 : vector<1x16x128xf32>
    %250 = vector.broadcast %25 : vector<1x1x128xf32> to vector<1x16x128xf32>
    %251 = arith.mulf %190, %250 : vector<1x16x128xf32>
    %252 = arith.addf %249, %251 : vector<1x16x128xf32>
    %253 = vector.broadcast %26 : vector<1x1x128xf32> to vector<1x16x128xf32>
    %254 = arith.mulf %229, %253 : vector<1x16x128xf32>
    %255 = arith.addf %252, %254 : vector<1x16x128xf32>
    %256 = vector.broadcast %27 : vector<1x1x128xf32> to vector<1x16x128xf32>
    %257 = arith.mulf %227, %256 : vector<1x16x128xf32>
    %258 = arith.addf %255, %257 : vector<1x16x128xf32>
    %259 = vector.broadcast %28 : vector<1x1x128xf32> to vector<1x16x128xf32>
    %260 = arith.mulf %231, %259 : vector<1x16x128xf32>
    %261 = arith.addf %258, %260 : vector<1x16x128xf32>
    %c0_56 = arith.constant 0 : index
    %c6 = arith.constant 6 : index
    %c0_57 = arith.constant 0 : index
    %c0_58 = arith.constant 0 : index
    %262 = vector.load %arg1[%c0_56, %c6, %c0_57, %c0_58] : memref<1x16x16x128xbf16, #tpu.memory_space<vmem>>, vector<1x1x16x128xbf16>
    %263 = vector.shape_cast %262 : vector<1x1x16x128xbf16> to vector<1x16x128xbf16>
    %264 = arith.extf %263 : vector<1x16x128xbf16> to vector<1x16x128xf32>
    %265 = vector.broadcast %16 : vector<1x1x128xf32> to vector<1x16x128xf32>
    %266 = arith.mulf %264, %265 : vector<1x16x128xf32>
    %267 = vector.broadcast %20 : vector<1x1x128xf32> to vector<1x16x128xf32>
    %268 = arith.addf %266, %267 : vector<1x16x128xf32>
    %269 = vector.extract_strided_slice %268 {offsets = [0, 0, 0], sizes = [1, 15, 128], strides = [1, 1, 1]} : vector<1x16x128xf32> to vector<1x15x128xf32>
    %270 = tpu.concatenate %36, %269 in 1 : vector<1x1x128xf32>, vector<1x15x128xf32> -> vector<1x16x128xf32>
    %271 = vector.extract_strided_slice %268 {offsets = [0, 1, 0], sizes = [1, 15, 128], strides = [1, 1, 1]} : vector<1x16x128xf32> to vector<1x15x128xf32>
    %272 = tpu.concatenate %271, %36 in 1 : vector<1x15x128xf32>, vector<1x1x128xf32> -> vector<1x16x128xf32>
    %273 = vector.broadcast %29 : vector<1x1x128xf32> to vector<1x16x128xf32>
    %274 = arith.mulf %270, %273 : vector<1x16x128xf32>
    %275 = arith.addf %261, %274 : vector<1x16x128xf32>
    %276 = vector.broadcast %30 : vector<1x1x128xf32> to vector<1x16x128xf32>
    %277 = arith.mulf %268, %276 : vector<1x16x128xf32>
    %278 = arith.addf %275, %277 : vector<1x16x128xf32>
    %279 = vector.broadcast %31 : vector<1x1x128xf32> to vector<1x16x128xf32>
    %280 = arith.mulf %272, %279 : vector<1x16x128xf32>
    %281 = arith.addf %278, %280 : vector<1x16x128xf32>
    %c0_59 = arith.constant 0 : index
    %c5_60 = arith.constant 5 : index
    %c0_61 = arith.constant 0 : index
    %c0_62 = arith.constant 0 : index
    %282 = vector.load %arg7[%c0_59, %c5_60, %c0_61, %c0_62] : memref<1x16x16x128xf32, #tpu.memory_space<vmem>>, vector<1x1x16x128xf32>
    %283 = vector.shape_cast %282 : vector<1x1x16x128xf32> to vector<1x16x128xf32>
    %284 = vector.shape_cast %281 : vector<1x16x128xf32> to vector<1x1x16x128xf32>
    tpu.vector_store %arg7[%c0_59, %c5_60, %c0_61, %c0_62], %284 {strides = array<i32>} : memref<1x16x16x128xf32, #tpu.memory_space<vmem>>, vector<1x1x16x128xf32>,
    %285 = vector.broadcast %23 : vector<1x1x128xf32> to vector<1x16x128xf32>
    %286 = arith.mulf %229, %285 : vector<1x16x128xf32>
    %287 = arith.addf %35, %286 : vector<1x16x128xf32>
    %288 = vector.broadcast %24 : vector<1x1x128xf32> to vector<1x16x128xf32>
    %289 = arith.mulf %227, %288 : vector<1x16x128xf32>
    %290 = arith.addf %287, %289 : vector<1x16x128xf32>
    %291 = vector.broadcast %25 : vector<1x1x128xf32> to vector<1x16x128xf32>
    %292 = arith.mulf %231, %291 : vector<1x16x128xf32>
    %293 = arith.addf %290, %292 : vector<1x16x128xf32>
    %294 = vector.broadcast %26 : vector<1x1x128xf32> to vector<1x16x128xf32>
    %295 = arith.mulf %270, %294 : vector<1x16x128xf32>
    %296 = arith.addf %293, %295 : vector<1x16x128xf32>
    %297 = vector.broadcast %27 : vector<1x1x128xf32> to vector<1x16x128xf32>
    %298 = arith.mulf %268, %297 : vector<1x16x128xf32>
    %299 = arith.addf %296, %298 : vector<1x16x128xf32>
    %300 = vector.broadcast %28 : vector<1x1x128xf32> to vector<1x16x128xf32>
    %301 = arith.mulf %272, %300 : vector<1x16x128xf32>
    %302 = arith.addf %299, %301 : vector<1x16x128xf32>
    %c0_63 = arith.constant 0 : index
    %c7 = arith.constant 7 : index
    %c0_64 = arith.constant 0 : index
    %c0_65 = arith.constant 0 : index
    %303 = vector.load %arg1[%c0_63, %c7, %c0_64, %c0_65] : memref<1x16x16x128xbf16, #tpu.memory_space<vmem>>, vector<1x1x16x128xbf16>
    %304 = vector.shape_cast %303 : vector<1x1x16x128xbf16> to vector<1x16x128xbf16>
    %305 = arith.extf %304 : vector<1x16x128xbf16> to vector<1x16x128xf32>
    %306 = vector.broadcast %16 : vector<1x1x128xf32> to vector<1x16x128xf32>
    %307 = arith.mulf %305, %306 : vector<1x16x128xf32>
    %308 = vector.broadcast %20 : vector<1x1x128xf32> to vector<1x16x128xf32>
    %309 = arith.addf %307, %308 : vector<1x16x128xf32>
    %310 = vector.extract_strided_slice %309 {offsets = [0, 0, 0], sizes = [1, 15, 128], strides = [1, 1, 1]} : vector<1x16x128xf32> to vector<1x15x128xf32>
    %311 = tpu.concatenate %36, %310 in 1 : vector<1x1x128xf32>, vector<1x15x128xf32> -> vector<1x16x128xf32>
    %312 = vector.extract_strided_slice %309 {offsets = [0, 1, 0], sizes = [1, 15, 128], strides = [1, 1, 1]} : vector<1x16x128xf32> to vector<1x15x128xf32>
    %313 = tpu.concatenate %312, %36 in 1 : vector<1x15x128xf32>, vector<1x1x128xf32> -> vector<1x16x128xf32>
    %314 = vector.broadcast %29 : vector<1x1x128xf32> to vector<1x16x128xf32>
    %315 = arith.mulf %311, %314 : vector<1x16x128xf32>
    %316 = arith.addf %302, %315 : vector<1x16x128xf32>
    %317 = vector.broadcast %30 : vector<1x1x128xf32> to vector<1x16x128xf32>
    %318 = arith.mulf %309, %317 : vector<1x16x128xf32>
    %319 = arith.addf %316, %318 : vector<1x16x128xf32>
    %320 = vector.broadcast %31 : vector<1x1x128xf32> to vector<1x16x128xf32>
    %321 = arith.mulf %313, %320 : vector<1x16x128xf32>
    %322 = arith.addf %319, %321 : vector<1x16x128xf32>
    %c0_66 = arith.constant 0 : index
    %c6_67 = arith.constant 6 : index
    %c0_68 = arith.constant 0 : index
    %c0_69 = arith.constant 0 : index
    %323 = vector.load %arg7[%c0_66, %c6_67, %c0_68, %c0_69] : memref<1x16x16x128xf32, #tpu.memory_space<vmem>>, vector<1x1x16x128xf32>
    %324 = vector.shape_cast %323 : vector<1x1x16x128xf32> to vector<1x16x128xf32>
    %325 = vector.shape_cast %322 : vector<1x16x128xf32> to vector<1x1x16x128xf32>
    tpu.vector_store %arg7[%c0_66, %c6_67, %c0_68, %c0_69], %325 {strides = array<i32>} : memref<1x16x16x128xf32, #tpu.memory_space<vmem>>, vector<1x1x16x128xf32>,
    %326 = vector.broadcast %23 : vector<1x1x128xf32> to vector<1x16x128xf32>
    %327 = arith.mulf %270, %326 : vector<1x16x128xf32>
    %328 = arith.addf %35, %327 : vector<1x16x128xf32>
    %329 = vector.broadcast %24 : vector<1x1x128xf32> to vector<1x16x128xf32>
    %330 = arith.mulf %268, %329 : vector<1x16x128xf32>
    %331 = arith.addf %328, %330 : vector<1x16x128xf32>
    %332 = vector.broadcast %25 : vector<1x1x128xf32> to vector<1x16x128xf32>
    %333 = arith.mulf %272, %332 : vector<1x16x128xf32>
    %334 = arith.addf %331, %333 : vector<1x16x128xf32>
    %335 = vector.broadcast %26 : vector<1x1x128xf32> to vector<1x16x128xf32>
    %336 = arith.mulf %311, %335 : vector<1x16x128xf32>
    %337 = arith.addf %334, %336 : vector<1x16x128xf32>
    %338 = vector.broadcast %27 : vector<1x1x128xf32> to vector<1x16x128xf32>
    %339 = arith.mulf %309, %338 : vector<1x16x128xf32>
    %340 = arith.addf %337, %339 : vector<1x16x128xf32>
    %341 = vector.broadcast %28 : vector<1x1x128xf32> to vector<1x16x128xf32>
    %342 = arith.mulf %313, %341 : vector<1x16x128xf32>
    %343 = arith.addf %340, %342 : vector<1x16x128xf32>
    %c0_70 = arith.constant 0 : index
    %c8 = arith.constant 8 : index
    %c0_71 = arith.constant 0 : index
    %c0_72 = arith.constant 0 : index
    %344 = vector.load %arg1[%c0_70, %c8, %c0_71, %c0_72] : memref<1x16x16x128xbf16, #tpu.memory_space<vmem>>, vector<1x1x16x128xbf16>
    %345 = vector.shape_cast %344 : vector<1x1x16x128xbf16> to vector<1x16x128xbf16>
    %346 = arith.extf %345 : vector<1x16x128xbf16> to vector<1x16x128xf32>
    %347 = vector.broadcast %16 : vector<1x1x128xf32> to vector<1x16x128xf32>
    %348 = arith.mulf %346, %347 : vector<1x16x128xf32>
    %349 = vector.broadcast %20 : vector<1x1x128xf32> to vector<1x16x128xf32>
    %350 = arith.addf %348, %349 : vector<1x16x128xf32>
    %351 = vector.extract_strided_slice %350 {offsets = [0, 0, 0], sizes = [1, 15, 128], strides = [1, 1, 1]} : vector<1x16x128xf32> to vector<1x15x128xf32>
    %352 = tpu.concatenate %36, %351 in 1 : vector<1x1x128xf32>, vector<1x15x128xf32> -> vector<1x16x128xf32>
    %353 = vector.extract_strided_slice %350 {offsets = [0, 1, 0], sizes = [1, 15, 128], strides = [1, 1, 1]} : vector<1x16x128xf32> to vector<1x15x128xf32>
    %354 = tpu.concatenate %353, %36 in 1 : vector<1x15x128xf32>, vector<1x1x128xf32> -> vector<1x16x128xf32>
    %355 = vector.broadcast %29 : vector<1x1x128xf32> to vector<1x16x128xf32>
    %356 = arith.mulf %352, %355 : vector<1x16x128xf32>
    %357 = arith.addf %343, %356 : vector<1x16x128xf32>
    %358 = vector.broadcast %30 : vector<1x1x128xf32> to vector<1x16x128xf32>
    %359 = arith.mulf %350, %358 : vector<1x16x128xf32>
    %360 = arith.addf %357, %359 : vector<1x16x128xf32>
    %361 = vector.broadcast %31 : vector<1x1x128xf32> to vector<1x16x128xf32>
    %362 = arith.mulf %354, %361 : vector<1x16x128xf32>
    %363 = arith.addf %360, %362 : vector<1x16x128xf32>
    %c0_73 = arith.constant 0 : index
    %c7_74 = arith.constant 7 : index
    %c0_75 = arith.constant 0 : index
    %c0_76 = arith.constant 0 : index
    %364 = vector.load %arg7[%c0_73, %c7_74, %c0_75, %c0_76] : memref<1x16x16x128xf32, #tpu.memory_space<vmem>>, vector<1x1x16x128xf32>
    %365 = vector.shape_cast %364 : vector<1x1x16x128xf32> to vector<1x16x128xf32>
    %366 = vector.shape_cast %363 : vector<1x16x128xf32> to vector<1x1x16x128xf32>
    tpu.vector_store %arg7[%c0_73, %c7_74, %c0_75, %c0_76], %366 {strides = array<i32>} : memref<1x16x16x128xf32, #tpu.memory_space<vmem>>, vector<1x1x16x128xf32>,
    %367 = vector.broadcast %23 : vector<1x1x128xf32> to vector<1x16x128xf32>
    %368 = arith.mulf %311, %367 : vector<1x16x128xf32>
    %369 = arith.addf %35, %368 : vector<1x16x128xf32>
    %370 = vector.broadcast %24 : vector<1x1x128xf32> to vector<1x16x128xf32>
    %371 = arith.mulf %309, %370 : vector<1x16x128xf32>
    %372 = arith.addf %369, %371 : vector<1x16x128xf32>
    %373 = vector.broadcast %25 : vector<1x1x128xf32> to vector<1x16x128xf32>
    %374 = arith.mulf %313, %373 : vector<1x16x128xf32>
    %375 = arith.addf %372, %374 : vector<1x16x128xf32>
    %376 = vector.broadcast %26 : vector<1x1x128xf32> to vector<1x16x128xf32>
    %377 = arith.mulf %352, %376 : vector<1x16x128xf32>
    %378 = arith.addf %375, %377 : vector<1x16x128xf32>
    %379 = vector.broadcast %27 : vector<1x1x128xf32> to vector<1x16x128xf32>
    %380 = arith.mulf %350, %379 : vector<1x16x128xf32>
    %381 = arith.addf %378, %380 : vector<1x16x128xf32>
    %382 = vector.broadcast %28 : vector<1x1x128xf32> to vector<1x16x128xf32>
    %383 = arith.mulf %354, %382 : vector<1x16x128xf32>
    %384 = arith.addf %381, %383 : vector<1x16x128xf32>
    %c0_77 = arith.constant 0 : index
    %c9 = arith.constant 9 : index
    %c0_78 = arith.constant 0 : index
    %c0_79 = arith.constant 0 : index
    %385 = vector.load %arg1[%c0_77, %c9, %c0_78, %c0_79] : memref<1x16x16x128xbf16, #tpu.memory_space<vmem>>, vector<1x1x16x128xbf16>
    %386 = vector.shape_cast %385 : vector<1x1x16x128xbf16> to vector<1x16x128xbf16>
    %387 = arith.extf %386 : vector<1x16x128xbf16> to vector<1x16x128xf32>
    %388 = vector.broadcast %16 : vector<1x1x128xf32> to vector<1x16x128xf32>
    %389 = arith.mulf %387, %388 : vector<1x16x128xf32>
    %390 = vector.broadcast %20 : vector<1x1x128xf32> to vector<1x16x128xf32>
    %391 = arith.addf %389, %390 : vector<1x16x128xf32>
    %392 = vector.extract_strided_slice %391 {offsets = [0, 0, 0], sizes = [1, 15, 128], strides = [1, 1, 1]} : vector<1x16x128xf32> to vector<1x15x128xf32>
    %393 = tpu.concatenate %36, %392 in 1 : vector<1x1x128xf32>, vector<1x15x128xf32> -> vector<1x16x128xf32>
    %394 = vector.extract_strided_slice %391 {offsets = [0, 1, 0], sizes = [1, 15, 128], strides = [1, 1, 1]} : vector<1x16x128xf32> to vector<1x15x128xf32>
    %395 = tpu.concatenate %394, %36 in 1 : vector<1x15x128xf32>, vector<1x1x128xf32> -> vector<1x16x128xf32>
    %396 = vector.broadcast %29 : vector<1x1x128xf32> to vector<1x16x128xf32>
    %397 = arith.mulf %393, %396 : vector<1x16x128xf32>
    %398 = arith.addf %384, %397 : vector<1x16x128xf32>
    %399 = vector.broadcast %30 : vector<1x1x128xf32> to vector<1x16x128xf32>
    %400 = arith.mulf %391, %399 : vector<1x16x128xf32>
    %401 = arith.addf %398, %400 : vector<1x16x128xf32>
    %402 = vector.broadcast %31 : vector<1x1x128xf32> to vector<1x16x128xf32>
    %403 = arith.mulf %395, %402 : vector<1x16x128xf32>
    %404 = arith.addf %401, %403 : vector<1x16x128xf32>
    %c0_80 = arith.constant 0 : index
    %c8_81 = arith.constant 8 : index
    %c0_82 = arith.constant 0 : index
    %c0_83 = arith.constant 0 : index
    %405 = vector.load %arg7[%c0_80, %c8_81, %c0_82, %c0_83] : memref<1x16x16x128xf32, #tpu.memory_space<vmem>>, vector<1x1x16x128xf32>
    %406 = vector.shape_cast %405 : vector<1x1x16x128xf32> to vector<1x16x128xf32>
    %407 = vector.shape_cast %404 : vector<1x16x128xf32> to vector<1x1x16x128xf32>
    tpu.vector_store %arg7[%c0_80, %c8_81, %c0_82, %c0_83], %407 {strides = array<i32>} : memref<1x16x16x128xf32, #tpu.memory_space<vmem>>, vector<1x1x16x128xf32>,
    %408 = vector.broadcast %23 : vector<1x1x128xf32> to vector<1x16x128xf32>
    %409 = arith.mulf %352, %408 : vector<1x16x128xf32>
    %410 = arith.addf %35, %409 : vector<1x16x128xf32>
    %411 = vector.broadcast %24 : vector<1x1x128xf32> to vector<1x16x128xf32>
    %412 = arith.mulf %350, %411 : vector<1x16x128xf32>
    %413 = arith.addf %410, %412 : vector<1x16x128xf32>
    %414 = vector.broadcast %25 : vector<1x1x128xf32> to vector<1x16x128xf32>
    %415 = arith.mulf %354, %414 : vector<1x16x128xf32>
    %416 = arith.addf %413, %415 : vector<1x16x128xf32>
    %417 = vector.broadcast %26 : vector<1x1x128xf32> to vector<1x16x128xf32>
    %418 = arith.mulf %393, %417 : vector<1x16x128xf32>
    %419 = arith.addf %416, %418 : vector<1x16x128xf32>
    %420 = vector.broadcast %27 : vector<1x1x128xf32> to vector<1x16x128xf32>
    %421 = arith.mulf %391, %420 : vector<1x16x128xf32>
    %422 = arith.addf %419, %421 : vector<1x16x128xf32>
    %423 = vector.broadcast %28 : vector<1x1x128xf32> to vector<1x16x128xf32>
    %424 = arith.mulf %395, %423 : vector<1x16x128xf32>
    %425 = arith.addf %422, %424 : vector<1x16x128xf32>
    %c0_84 = arith.constant 0 : index
    %c10 = arith.constant 10 : index
    %c0_85 = arith.constant 0 : index
    %c0_86 = arith.constant 0 : index
    %426 = vector.load %arg1[%c0_84, %c10, %c0_85, %c0_86] : memref<1x16x16x128xbf16, #tpu.memory_space<vmem>>, vector<1x1x16x128xbf16>
    %427 = vector.shape_cast %426 : vector<1x1x16x128xbf16> to vector<1x16x128xbf16>
    %428 = arith.extf %427 : vector<1x16x128xbf16> to vector<1x16x128xf32>
    %429 = vector.broadcast %16 : vector<1x1x128xf32> to vector<1x16x128xf32>
    %430 = arith.mulf %428, %429 : vector<1x16x128xf32>
    %431 = vector.broadcast %20 : vector<1x1x128xf32> to vector<1x16x128xf32>
    %432 = arith.addf %430, %431 : vector<1x16x128xf32>
    %433 = vector.extract_strided_slice %432 {offsets = [0, 0, 0], sizes = [1, 15, 128], strides = [1, 1, 1]} : vector<1x16x128xf32> to vector<1x15x128xf32>
    %434 = tpu.concatenate %36, %433 in 1 : vector<1x1x128xf32>, vector<1x15x128xf32> -> vector<1x16x128xf32>
    %435 = vector.extract_strided_slice %432 {offsets = [0, 1, 0], sizes = [1, 15, 128], strides = [1, 1, 1]} : vector<1x16x128xf32> to vector<1x15x128xf32>
    %436 = tpu.concatenate %435, %36 in 1 : vector<1x15x128xf32>, vector<1x1x128xf32> -> vector<1x16x128xf32>
    %437 = vector.broadcast %29 : vector<1x1x128xf32> to vector<1x16x128xf32>
    %438 = arith.mulf %434, %437 : vector<1x16x128xf32>
    %439 = arith.addf %425, %438 : vector<1x16x128xf32>
    %440 = vector.broadcast %30 : vector<1x1x128xf32> to vector<1x16x128xf32>
    %441 = arith.mulf %432, %440 : vector<1x16x128xf32>
    %442 = arith.addf %439, %441 : vector<1x16x128xf32>
    %443 = vector.broadcast %31 : vector<1x1x128xf32> to vector<1x16x128xf32>
    %444 = arith.mulf %436, %443 : vector<1x16x128xf32>
    %445 = arith.addf %442, %444 : vector<1x16x128xf32>
    %c0_87 = arith.constant 0 : index
    %c9_88 = arith.constant 9 : index
    %c0_89 = arith.constant 0 : index
    %c0_90 = arith.constant 0 : index
    %446 = vector.load %arg7[%c0_87, %c9_88, %c0_89, %c0_90] : memref<1x16x16x128xf32, #tpu.memory_space<vmem>>, vector<1x1x16x128xf32>
    %447 = vector.shape_cast %446 : vector<1x1x16x128xf32> to vector<1x16x128xf32>
    %448 = vector.shape_cast %445 : vector<1x16x128xf32> to vector<1x1x16x128xf32>
    tpu.vector_store %arg7[%c0_87, %c9_88, %c0_89, %c0_90], %448 {strides = array<i32>} : memref<1x16x16x128xf32, #tpu.memory_space<vmem>>, vector<1x1x16x128xf32>,
    %449 = vector.broadcast %23 : vector<1x1x128xf32> to vector<1x16x128xf32>
    %450 = arith.mulf %393, %449 : vector<1x16x128xf32>
    %451 = arith.addf %35, %450 : vector<1x16x128xf32>
    %452 = vector.broadcast %24 : vector<1x1x128xf32> to vector<1x16x128xf32>
    %453 = arith.mulf %391, %452 : vector<1x16x128xf32>
    %454 = arith.addf %451, %453 : vector<1x16x128xf32>
    %455 = vector.broadcast %25 : vector<1x1x128xf32> to vector<1x16x128xf32>
    %456 = arith.mulf %395, %455 : vector<1x16x128xf32>
    %457 = arith.addf %454, %456 : vector<1x16x128xf32>
    %458 = vector.broadcast %26 : vector<1x1x128xf32> to vector<1x16x128xf32>
    %459 = arith.mulf %434, %458 : vector<1x16x128xf32>
    %460 = arith.addf %457, %459 : vector<1x16x128xf32>
    %461 = vector.broadcast %27 : vector<1x1x128xf32> to vector<1x16x128xf32>
    %462 = arith.mulf %432, %461 : vector<1x16x128xf32>
    %463 = arith.addf %460, %462 : vector<1x16x128xf32>
    %464 = vector.broadcast %28 : vector<1x1x128xf32> to vector<1x16x128xf32>
    %465 = arith.mulf %436, %464 : vector<1x16x128xf32>
    %466 = arith.addf %463, %465 : vector<1x16x128xf32>
    %c0_91 = arith.constant 0 : index
    %c11 = arith.constant 11 : index
    %c0_92 = arith.constant 0 : index
    %c0_93 = arith.constant 0 : index
    %467 = vector.load %arg1[%c0_91, %c11, %c0_92, %c0_93] : memref<1x16x16x128xbf16, #tpu.memory_space<vmem>>, vector<1x1x16x128xbf16>
    %468 = vector.shape_cast %467 : vector<1x1x16x128xbf16> to vector<1x16x128xbf16>
    %469 = arith.extf %468 : vector<1x16x128xbf16> to vector<1x16x128xf32>
    %470 = vector.broadcast %16 : vector<1x1x128xf32> to vector<1x16x128xf32>
    %471 = arith.mulf %469, %470 : vector<1x16x128xf32>
    %472 = vector.broadcast %20 : vector<1x1x128xf32> to vector<1x16x128xf32>
    %473 = arith.addf %471, %472 : vector<1x16x128xf32>
    %474 = vector.extract_strided_slice %473 {offsets = [0, 0, 0], sizes = [1, 15, 128], strides = [1, 1, 1]} : vector<1x16x128xf32> to vector<1x15x128xf32>
    %475 = tpu.concatenate %36, %474 in 1 : vector<1x1x128xf32>, vector<1x15x128xf32> -> vector<1x16x128xf32>
    %476 = vector.extract_strided_slice %473 {offsets = [0, 1, 0], sizes = [1, 15, 128], strides = [1, 1, 1]} : vector<1x16x128xf32> to vector<1x15x128xf32>
    %477 = tpu.concatenate %476, %36 in 1 : vector<1x15x128xf32>, vector<1x1x128xf32> -> vector<1x16x128xf32>
    %478 = vector.broadcast %29 : vector<1x1x128xf32> to vector<1x16x128xf32>
    %479 = arith.mulf %475, %478 : vector<1x16x128xf32>
    %480 = arith.addf %466, %479 : vector<1x16x128xf32>
    %481 = vector.broadcast %30 : vector<1x1x128xf32> to vector<1x16x128xf32>
    %482 = arith.mulf %473, %481 : vector<1x16x128xf32>
    %483 = arith.addf %480, %482 : vector<1x16x128xf32>
    %484 = vector.broadcast %31 : vector<1x1x128xf32> to vector<1x16x128xf32>
    %485 = arith.mulf %477, %484 : vector<1x16x128xf32>
    %486 = arith.addf %483, %485 : vector<1x16x128xf32>
    %c0_94 = arith.constant 0 : index
    %c10_95 = arith.constant 10 : index
    %c0_96 = arith.constant 0 : index
    %c0_97 = arith.constant 0 : index
    %487 = vector.load %arg7[%c0_94, %c10_95, %c0_96, %c0_97] : memref<1x16x16x128xf32, #tpu.memory_space<vmem>>, vector<1x1x16x128xf32>
    %488 = vector.shape_cast %487 : vector<1x1x16x128xf32> to vector<1x16x128xf32>
    %489 = vector.shape_cast %486 : vector<1x16x128xf32> to vector<1x1x16x128xf32>
    tpu.vector_store %arg7[%c0_94, %c10_95, %c0_96, %c0_97], %489 {strides = array<i32>} : memref<1x16x16x128xf32, #tpu.memory_space<vmem>>, vector<1x1x16x128xf32>,
    %490 = vector.broadcast %23 : vector<1x1x128xf32> to vector<1x16x128xf32>
    %491 = arith.mulf %434, %490 : vector<1x16x128xf32>
    %492 = arith.addf %35, %491 : vector<1x16x128xf32>
    %493 = vector.broadcast %24 : vector<1x1x128xf32> to vector<1x16x128xf32>
    %494 = arith.mulf %432, %493 : vector<1x16x128xf32>
    %495 = arith.addf %492, %494 : vector<1x16x128xf32>
    %496 = vector.broadcast %25 : vector<1x1x128xf32> to vector<1x16x128xf32>
    %497 = arith.mulf %436, %496 : vector<1x16x128xf32>
    %498 = arith.addf %495, %497 : vector<1x16x128xf32>
    %499 = vector.broadcast %26 : vector<1x1x128xf32> to vector<1x16x128xf32>
    %500 = arith.mulf %475, %499 : vector<1x16x128xf32>
    %501 = arith.addf %498, %500 : vector<1x16x128xf32>
    %502 = vector.broadcast %27 : vector<1x1x128xf32> to vector<1x16x128xf32>
    %503 = arith.mulf %473, %502 : vector<1x16x128xf32>
    %504 = arith.addf %501, %503 : vector<1x16x128xf32>
    %505 = vector.broadcast %28 : vector<1x1x128xf32> to vector<1x16x128xf32>
    %506 = arith.mulf %477, %505 : vector<1x16x128xf32>
    %507 = arith.addf %504, %506 : vector<1x16x128xf32>
    %c0_98 = arith.constant 0 : index
    %c12 = arith.constant 12 : index
    %c0_99 = arith.constant 0 : index
    %c0_100 = arith.constant 0 : index
    %508 = vector.load %arg1[%c0_98, %c12, %c0_99, %c0_100] : memref<1x16x16x128xbf16, #tpu.memory_space<vmem>>, vector<1x1x16x128xbf16>
    %509 = vector.shape_cast %508 : vector<1x1x16x128xbf16> to vector<1x16x128xbf16>
    %510 = arith.extf %509 : vector<1x16x128xbf16> to vector<1x16x128xf32>
    %511 = vector.broadcast %16 : vector<1x1x128xf32> to vector<1x16x128xf32>
    %512 = arith.mulf %510, %511 : vector<1x16x128xf32>
    %513 = vector.broadcast %20 : vector<1x1x128xf32> to vector<1x16x128xf32>
    %514 = arith.addf %512, %513 : vector<1x16x128xf32>
    %515 = vector.extract_strided_slice %514 {offsets = [0, 0, 0], sizes = [1, 15, 128], strides = [1, 1, 1]} : vector<1x16x128xf32> to vector<1x15x128xf32>
    %516 = tpu.concatenate %36, %515 in 1 : vector<1x1x128xf32>, vector<1x15x128xf32> -> vector<1x16x128xf32>
    %517 = vector.extract_strided_slice %514 {offsets = [0, 1, 0], sizes = [1, 15, 128], strides = [1, 1, 1]} : vector<1x16x128xf32> to vector<1x15x128xf32>
    %518 = tpu.concatenate %517, %36 in 1 : vector<1x15x128xf32>, vector<1x1x128xf32> -> vector<1x16x128xf32>
    %519 = vector.broadcast %29 : vector<1x1x128xf32> to vector<1x16x128xf32>
    %520 = arith.mulf %516, %519 : vector<1x16x128xf32>
    %521 = arith.addf %507, %520 : vector<1x16x128xf32>
    %522 = vector.broadcast %30 : vector<1x1x128xf32> to vector<1x16x128xf32>
    %523 = arith.mulf %514, %522 : vector<1x16x128xf32>
    %524 = arith.addf %521, %523 : vector<1x16x128xf32>
    %525 = vector.broadcast %31 : vector<1x1x128xf32> to vector<1x16x128xf32>
    %526 = arith.mulf %518, %525 : vector<1x16x128xf32>
    %527 = arith.addf %524, %526 : vector<1x16x128xf32>
    %c0_101 = arith.constant 0 : index
    %c11_102 = arith.constant 11 : index
    %c0_103 = arith.constant 0 : index
    %c0_104 = arith.constant 0 : index
    %528 = vector.load %arg7[%c0_101, %c11_102, %c0_103, %c0_104] : memref<1x16x16x128xf32, #tpu.memory_space<vmem>>, vector<1x1x16x128xf32>
    %529 = vector.shape_cast %528 : vector<1x1x16x128xf32> to vector<1x16x128xf32>
    %530 = vector.shape_cast %527 : vector<1x16x128xf32> to vector<1x1x16x128xf32>
    tpu.vector_store %arg7[%c0_101, %c11_102, %c0_103, %c0_104], %530 {strides = array<i32>} : memref<1x16x16x128xf32, #tpu.memory_space<vmem>>, vector<1x1x16x128xf32>,
    %531 = vector.broadcast %23 : vector<1x1x128xf32> to vector<1x16x128xf32>
    %532 = arith.mulf %475, %531 : vector<1x16x128xf32>
    %533 = arith.addf %35, %532 : vector<1x16x128xf32>
    %534 = vector.broadcast %24 : vector<1x1x128xf32> to vector<1x16x128xf32>
    %535 = arith.mulf %473, %534 : vector<1x16x128xf32>
    %536 = arith.addf %533, %535 : vector<1x16x128xf32>
    %537 = vector.broadcast %25 : vector<1x1x128xf32> to vector<1x16x128xf32>
    %538 = arith.mulf %477, %537 : vector<1x16x128xf32>
    %539 = arith.addf %536, %538 : vector<1x16x128xf32>
    %540 = vector.broadcast %26 : vector<1x1x128xf32> to vector<1x16x128xf32>
    %541 = arith.mulf %516, %540 : vector<1x16x128xf32>
    %542 = arith.addf %539, %541 : vector<1x16x128xf32>
    %543 = vector.broadcast %27 : vector<1x1x128xf32> to vector<1x16x128xf32>
    %544 = arith.mulf %514, %543 : vector<1x16x128xf32>
    %545 = arith.addf %542, %544 : vector<1x16x128xf32>
    %546 = vector.broadcast %28 : vector<1x1x128xf32> to vector<1x16x128xf32>
    %547 = arith.mulf %518, %546 : vector<1x16x128xf32>
    %548 = arith.addf %545, %547 : vector<1x16x128xf32>
    %c0_105 = arith.constant 0 : index
    %c13 = arith.constant 13 : index
    %c0_106 = arith.constant 0 : index
    %c0_107 = arith.constant 0 : index
    %549 = vector.load %arg1[%c0_105, %c13, %c0_106, %c0_107] : memref<1x16x16x128xbf16, #tpu.memory_space<vmem>>, vector<1x1x16x128xbf16>
    %550 = vector.shape_cast %549 : vector<1x1x16x128xbf16> to vector<1x16x128xbf16>
    %551 = arith.extf %550 : vector<1x16x128xbf16> to vector<1x16x128xf32>
    %552 = vector.broadcast %16 : vector<1x1x128xf32> to vector<1x16x128xf32>
    %553 = arith.mulf %551, %552 : vector<1x16x128xf32>
    %554 = vector.broadcast %20 : vector<1x1x128xf32> to vector<1x16x128xf32>
    %555 = arith.addf %553, %554 : vector<1x16x128xf32>
    %556 = vector.extract_strided_slice %555 {offsets = [0, 0, 0], sizes = [1, 15, 128], strides = [1, 1, 1]} : vector<1x16x128xf32> to vector<1x15x128xf32>
    %557 = tpu.concatenate %36, %556 in 1 : vector<1x1x128xf32>, vector<1x15x128xf32> -> vector<1x16x128xf32>
    %558 = vector.extract_strided_slice %555 {offsets = [0, 1, 0], sizes = [1, 15, 128], strides = [1, 1, 1]} : vector<1x16x128xf32> to vector<1x15x128xf32>
    %559 = tpu.concatenate %558, %36 in 1 : vector<1x15x128xf32>, vector<1x1x128xf32> -> vector<1x16x128xf32>
    %560 = vector.broadcast %29 : vector<1x1x128xf32> to vector<1x16x128xf32>
    %561 = arith.mulf %557, %560 : vector<1x16x128xf32>
    %562 = arith.addf %548, %561 : vector<1x16x128xf32>
    %563 = vector.broadcast %30 : vector<1x1x128xf32> to vector<1x16x128xf32>
    %564 = arith.mulf %555, %563 : vector<1x16x128xf32>
    %565 = arith.addf %562, %564 : vector<1x16x128xf32>
    %566 = vector.broadcast %31 : vector<1x1x128xf32> to vector<1x16x128xf32>
    %567 = arith.mulf %559, %566 : vector<1x16x128xf32>
    %568 = arith.addf %565, %567 : vector<1x16x128xf32>
    %c0_108 = arith.constant 0 : index
    %c12_109 = arith.constant 12 : index
    %c0_110 = arith.constant 0 : index
    %c0_111 = arith.constant 0 : index
    %569 = vector.load %arg7[%c0_108, %c12_109, %c0_110, %c0_111] : memref<1x16x16x128xf32, #tpu.memory_space<vmem>>, vector<1x1x16x128xf32>
    %570 = vector.shape_cast %569 : vector<1x1x16x128xf32> to vector<1x16x128xf32>
    %571 = vector.shape_cast %568 : vector<1x16x128xf32> to vector<1x1x16x128xf32>
    tpu.vector_store %arg7[%c0_108, %c12_109, %c0_110, %c0_111], %571 {strides = array<i32>} : memref<1x16x16x128xf32, #tpu.memory_space<vmem>>, vector<1x1x16x128xf32>,
    %572 = vector.broadcast %23 : vector<1x1x128xf32> to vector<1x16x128xf32>
    %573 = arith.mulf %516, %572 : vector<1x16x128xf32>
    %574 = arith.addf %35, %573 : vector<1x16x128xf32>
    %575 = vector.broadcast %24 : vector<1x1x128xf32> to vector<1x16x128xf32>
    %576 = arith.mulf %514, %575 : vector<1x16x128xf32>
    %577 = arith.addf %574, %576 : vector<1x16x128xf32>
    %578 = vector.broadcast %25 : vector<1x1x128xf32> to vector<1x16x128xf32>
    %579 = arith.mulf %518, %578 : vector<1x16x128xf32>
    %580 = arith.addf %577, %579 : vector<1x16x128xf32>
    %581 = vector.broadcast %26 : vector<1x1x128xf32> to vector<1x16x128xf32>
    %582 = arith.mulf %557, %581 : vector<1x16x128xf32>
    %583 = arith.addf %580, %582 : vector<1x16x128xf32>
    %584 = vector.broadcast %27 : vector<1x1x128xf32> to vector<1x16x128xf32>
    %585 = arith.mulf %555, %584 : vector<1x16x128xf32>
    %586 = arith.addf %583, %585 : vector<1x16x128xf32>
    %587 = vector.broadcast %28 : vector<1x1x128xf32> to vector<1x16x128xf32>
    %588 = arith.mulf %559, %587 : vector<1x16x128xf32>
    %589 = arith.addf %586, %588 : vector<1x16x128xf32>
    %c0_112 = arith.constant 0 : index
    %c14 = arith.constant 14 : index
    %c0_113 = arith.constant 0 : index
    %c0_114 = arith.constant 0 : index
    %590 = vector.load %arg1[%c0_112, %c14, %c0_113, %c0_114] : memref<1x16x16x128xbf16, #tpu.memory_space<vmem>>, vector<1x1x16x128xbf16>
    %591 = vector.shape_cast %590 : vector<1x1x16x128xbf16> to vector<1x16x128xbf16>
    %592 = arith.extf %591 : vector<1x16x128xbf16> to vector<1x16x128xf32>
    %593 = vector.broadcast %16 : vector<1x1x128xf32> to vector<1x16x128xf32>
    %594 = arith.mulf %592, %593 : vector<1x16x128xf32>
    %595 = vector.broadcast %20 : vector<1x1x128xf32> to vector<1x16x128xf32>
    %596 = arith.addf %594, %595 : vector<1x16x128xf32>
    %597 = vector.extract_strided_slice %596 {offsets = [0, 0, 0], sizes = [1, 15, 128], strides = [1, 1, 1]} : vector<1x16x128xf32> to vector<1x15x128xf32>
    %598 = tpu.concatenate %36, %597 in 1 : vector<1x1x128xf32>, vector<1x15x128xf32> -> vector<1x16x128xf32>
    %599 = vector.extract_strided_slice %596 {offsets = [0, 1, 0], sizes = [1, 15, 128], strides = [1, 1, 1]} : vector<1x16x128xf32> to vector<1x15x128xf32>
    %600 = tpu.concatenate %599, %36 in 1 : vector<1x15x128xf32>, vector<1x1x128xf32> -> vector<1x16x128xf32>
    %601 = vector.broadcast %29 : vector<1x1x128xf32> to vector<1x16x128xf32>
    %602 = arith.mulf %598, %601 : vector<1x16x128xf32>
    %603 = arith.addf %589, %602 : vector<1x16x128xf32>
    %604 = vector.broadcast %30 : vector<1x1x128xf32> to vector<1x16x128xf32>
    %605 = arith.mulf %596, %604 : vector<1x16x128xf32>
    %606 = arith.addf %603, %605 : vector<1x16x128xf32>
    %607 = vector.broadcast %31 : vector<1x1x128xf32> to vector<1x16x128xf32>
    %608 = arith.mulf %600, %607 : vector<1x16x128xf32>
    %609 = arith.addf %606, %608 : vector<1x16x128xf32>
    %c0_115 = arith.constant 0 : index
    %c13_116 = arith.constant 13 : index
    %c0_117 = arith.constant 0 : index
    %c0_118 = arith.constant 0 : index
    %610 = vector.load %arg7[%c0_115, %c13_116, %c0_117, %c0_118] : memref<1x16x16x128xf32, #tpu.memory_space<vmem>>, vector<1x1x16x128xf32>
    %611 = vector.shape_cast %610 : vector<1x1x16x128xf32> to vector<1x16x128xf32>
    %612 = vector.shape_cast %609 : vector<1x16x128xf32> to vector<1x1x16x128xf32>
    tpu.vector_store %arg7[%c0_115, %c13_116, %c0_117, %c0_118], %612 {strides = array<i32>} : memref<1x16x16x128xf32, #tpu.memory_space<vmem>>, vector<1x1x16x128xf32>,
    %613 = vector.broadcast %23 : vector<1x1x128xf32> to vector<1x16x128xf32>
    %614 = arith.mulf %557, %613 : vector<1x16x128xf32>
    %615 = arith.addf %35, %614 : vector<1x16x128xf32>
    %616 = vector.broadcast %24 : vector<1x1x128xf32> to vector<1x16x128xf32>
    %617 = arith.mulf %555, %616 : vector<1x16x128xf32>
    %618 = arith.addf %615, %617 : vector<1x16x128xf32>
    %619 = vector.broadcast %25 : vector<1x1x128xf32> to vector<1x16x128xf32>
    %620 = arith.mulf %559, %619 : vector<1x16x128xf32>
    %621 = arith.addf %618, %620 : vector<1x16x128xf32>
    %622 = vector.broadcast %26 : vector<1x1x128xf32> to vector<1x16x128xf32>
    %623 = arith.mulf %598, %622 : vector<1x16x128xf32>
    %624 = arith.addf %621, %623 : vector<1x16x128xf32>
    %625 = vector.broadcast %27 : vector<1x1x128xf32> to vector<1x16x128xf32>
    %626 = arith.mulf %596, %625 : vector<1x16x128xf32>
    %627 = arith.addf %624, %626 : vector<1x16x128xf32>
    %628 = vector.broadcast %28 : vector<1x1x128xf32> to vector<1x16x128xf32>
    %629 = arith.mulf %600, %628 : vector<1x16x128xf32>
    %630 = arith.addf %627, %629 : vector<1x16x128xf32>
    %c0_119 = arith.constant 0 : index
    %c15 = arith.constant 15 : index
    %c0_120 = arith.constant 0 : index
    %c0_121 = arith.constant 0 : index
    %631 = vector.load %arg1[%c0_119, %c15, %c0_120, %c0_121] : memref<1x16x16x128xbf16, #tpu.memory_space<vmem>>, vector<1x1x16x128xbf16>
    %632 = vector.shape_cast %631 : vector<1x1x16x128xbf16> to vector<1x16x128xbf16>
    %633 = arith.extf %632 : vector<1x16x128xbf16> to vector<1x16x128xf32>
    %634 = vector.broadcast %16 : vector<1x1x128xf32> to vector<1x16x128xf32>
    %635 = arith.mulf %633, %634 : vector<1x16x128xf32>
    %636 = vector.broadcast %20 : vector<1x1x128xf32> to vector<1x16x128xf32>
    %637 = arith.addf %635, %636 : vector<1x16x128xf32>
    %638 = vector.extract_strided_slice %637 {offsets = [0, 0, 0], sizes = [1, 15, 128], strides = [1, 1, 1]} : vector<1x16x128xf32> to vector<1x15x128xf32>
    %639 = tpu.concatenate %36, %638 in 1 : vector<1x1x128xf32>, vector<1x15x128xf32> -> vector<1x16x128xf32>
    %640 = vector.extract_strided_slice %637 {offsets = [0, 1, 0], sizes = [1, 15, 128], strides = [1, 1, 1]} : vector<1x16x128xf32> to vector<1x15x128xf32>
    %641 = tpu.concatenate %640, %36 in 1 : vector<1x15x128xf32>, vector<1x1x128xf32> -> vector<1x16x128xf32>
    %642 = vector.broadcast %29 : vector<1x1x128xf32> to vector<1x16x128xf32>
    %643 = arith.mulf %639, %642 : vector<1x16x128xf32>
    %644 = arith.addf %630, %643 : vector<1x16x128xf32>
    %645 = vector.broadcast %30 : vector<1x1x128xf32> to vector<1x16x128xf32>
    %646 = arith.mulf %637, %645 : vector<1x16x128xf32>
    %647 = arith.addf %644, %646 : vector<1x16x128xf32>
    %648 = vector.broadcast %31 : vector<1x1x128xf32> to vector<1x16x128xf32>
    %649 = arith.mulf %641, %648 : vector<1x16x128xf32>
    %650 = arith.addf %647, %649 : vector<1x16x128xf32>
    %c0_122 = arith.constant 0 : index
    %c14_123 = arith.constant 14 : index
    %c0_124 = arith.constant 0 : index
    %c0_125 = arith.constant 0 : index
    %651 = vector.load %arg7[%c0_122, %c14_123, %c0_124, %c0_125] : memref<1x16x16x128xf32, #tpu.memory_space<vmem>>, vector<1x1x16x128xf32>
    %652 = vector.shape_cast %651 : vector<1x1x16x128xf32> to vector<1x16x128xf32>
    %653 = vector.shape_cast %650 : vector<1x16x128xf32> to vector<1x1x16x128xf32>
    tpu.vector_store %arg7[%c0_122, %c14_123, %c0_124, %c0_125], %653 {strides = array<i32>} : memref<1x16x16x128xf32, #tpu.memory_space<vmem>>, vector<1x1x16x128xf32>,
    %654 = vector.broadcast %23 : vector<1x1x128xf32> to vector<1x16x128xf32>
    %655 = arith.mulf %598, %654 : vector<1x16x128xf32>
    %656 = arith.addf %35, %655 : vector<1x16x128xf32>
    %657 = vector.broadcast %24 : vector<1x1x128xf32> to vector<1x16x128xf32>
    %658 = arith.mulf %596, %657 : vector<1x16x128xf32>
    %659 = arith.addf %656, %658 : vector<1x16x128xf32>
    %660 = vector.broadcast %25 : vector<1x1x128xf32> to vector<1x16x128xf32>
    %661 = arith.mulf %600, %660 : vector<1x16x128xf32>
    %662 = arith.addf %659, %661 : vector<1x16x128xf32>
    %663 = vector.broadcast %26 : vector<1x1x128xf32> to vector<1x16x128xf32>
    %664 = arith.mulf %639, %663 : vector<1x16x128xf32>
    %665 = arith.addf %662, %664 : vector<1x16x128xf32>
    %666 = vector.broadcast %27 : vector<1x1x128xf32> to vector<1x16x128xf32>
    %667 = arith.mulf %637, %666 : vector<1x16x128xf32>
    %668 = arith.addf %665, %667 : vector<1x16x128xf32>
    %669 = vector.broadcast %28 : vector<1x1x128xf32> to vector<1x16x128xf32>
    %670 = arith.mulf %641, %669 : vector<1x16x128xf32>
    %671 = arith.addf %668, %670 : vector<1x16x128xf32>
    %c0_126 = arith.constant 0 : index
    %c15_127 = arith.constant 15 : index
    %c0_128 = arith.constant 0 : index
    %c0_129 = arith.constant 0 : index
    %672 = vector.load %arg7[%c0_126, %c15_127, %c0_128, %c0_129] : memref<1x16x16x128xf32, #tpu.memory_space<vmem>>, vector<1x1x16x128xf32>
    %673 = vector.shape_cast %672 : vector<1x1x16x128xf32> to vector<1x16x128xf32>
    %674 = vector.shape_cast %671 : vector<1x16x128xf32> to vector<1x1x16x128xf32>
    tpu.vector_store %arg7[%c0_126, %c15_127, %c0_128, %c0_129], %674 {strides = array<i32>} : memref<1x16x16x128xf32, #tpu.memory_space<vmem>>, vector<1x1x16x128xf32>,
    return
  }
  func.func @transform_0(%arg0: i32) -> (i32, i32, i32, i32) {
    %c0_i32 = arith.constant 0 : i32
    %c0_i32_0 = arith.constant 0 : i32
    %c0_i32_1 = arith.constant 0 : i32
    %c0_i32_2 = arith.constant 0 : i32
    return %arg0, %c0_i32, %c0_i32_0, %c0_i32_1 : i32, i32, i32, i32
  }
  func.func @transform_1(%arg0: i32) -> (i32, i32) {
    %c0_i32 = arith.constant 0 : i32
    %c0_i32_0 = arith.constant 0 : i32
    %c0_i32_1 = arith.constant 0 : i32
    return %c0_i32, %c0_i32_0 : i32, i32
  }
  func.func @transform_2(%arg0: i32) -> (i32, i32) {
    %c0_i32 = arith.constant 0 : i32
    %c0_i32_0 = arith.constant 0 : i32
    %c0_i32_1 = arith.constant 0 : i32
    return %c0_i32, %c0_i32_0 : i32, i32
  }
  func.func @transform_3(%arg0: i32) -> (i32, i32) {
    %c0_i32 = arith.constant 0 : i32
    %c0_i32_0 = arith.constant 0 : i32
    %c0_i32_1 = arith.constant 0 : i32
    return %c0_i32, %c0_i32_0 : i32, i32
  }
  func.func @transform_4(%arg0: i32) -> (i32, i32, i32) {
    %c0_i32 = arith.constant 0 : i32
    %c0_i32_0 = arith.constant 0 : i32
    %c0_i32_1 = arith.constant 0 : i32
    %c0_i32_2 = arith.constant 0 : i32
    return %c0_i32, %c0_i32_0, %c0_i32_1 : i32, i32, i32
  }
  func.func @transform_5(%arg0: i32) -> (i32, i32) {
    %c0_i32 = arith.constant 0 : i32
    %c0_i32_0 = arith.constant 0 : i32
    %c0_i32_1 = arith.constant 0 : i32
    return %c0_i32, %c0_i32_0 : i32, i32
  }
  func.func @transform_6(%arg0: i32) -> (i32, i32, i32, i32) {
    %c0_i32 = arith.constant 0 : i32
    %c0_i32_0 = arith.constant 0 : i32
    %c0_i32_1 = arith.constant 0 : i32
    %c0_i32_2 = arith.constant 0 : i32
    return %arg0, %c0_i32, %c0_i32_0, %c0_i32_1 : i32, i32, i32, i32
  }
}

module attributes {stable_mosaic.version = 11 : i64} {
  func.func @_lpi_pass1_kernel(%arg0: i32, %arg1: memref<1x16x16x128xf32, #tpu.memory_space<vmem>>, %arg2: memref<3x3x128xf32, #tpu.memory_space<vmem>>, %arg3: memref<1x128xf32, #tpu.memory_space<vmem>>, %arg4: memref<1x16x16x128xbf16, #tpu.memory_space<vmem>>, %arg5: memref<1x2x128xf32, #tpu.memory_space<vmem>>) attributes {dimension_semantics = [#tpu.dimension_semantics<parallel>], iteration_bounds = array<i64: 2>, scalar_prefetch = 0 : i64, scratch_operands = 0 : i64, tpu.core_type = #tpu.core_type<tc>, window_params = [{transform_indices = @transform_0, window_bounds = array<i64: 1, 16, 16, 128>}, {pipeline_mode = #tpu.pipeline_mode<synchronous>, transform_indices = @transform_1, window_bounds = array<i64: 3, 3, 128>}, {pipeline_mode = #tpu.pipeline_mode<synchronous>, transform_indices = @transform_2, window_bounds = array<i64: 1, 128>}, {transform_indices = @transform_3, window_bounds = array<i64: 1, 16, 16, 128>}, {transform_indices = @transform_4, window_bounds = array<i64: 1, 2, 128>}]} {
    %c0 = arith.constant 0 : index
    %c0_0 = arith.constant 0 : index
    %c0_1 = arith.constant 0 : index
    %0 = vector.load %arg2[%c0, %c0_0, %c0_1] : memref<3x3x128xf32, #tpu.memory_space<vmem>>, vector<3x3x128xf32>
    %c0_2 = arith.constant 0 : index
    %c0_3 = arith.constant 0 : index
    %1 = vector.load %arg3[%c0_2, %c0_3] : memref<1x128xf32, #tpu.memory_space<vmem>>, vector<1x128xf32>
    %cst = arith.constant 0.000000e+00 : f32
    %2 = vector.broadcast %cst : f32 to vector<1x128xf32>
    %cst_4 = arith.constant 0.000000e+00 : f32
    %3 = vector.broadcast %cst_4 : f32 to vector<1x128xf32>
    %4 = vector.extract_strided_slice %0 {offsets = [0, 0, 0], sizes = [1, 1, 128], strides = [1, 1, 1]} : vector<3x3x128xf32> to vector<1x1x128xf32>
    %5 = vector.extract_strided_slice %0 {offsets = [0, 1, 0], sizes = [1, 1, 128], strides = [1, 1, 1]} : vector<3x3x128xf32> to vector<1x1x128xf32>
    %6 = vector.extract_strided_slice %0 {offsets = [0, 2, 0], sizes = [1, 1, 128], strides = [1, 1, 1]} : vector<3x3x128xf32> to vector<1x1x128xf32>
    %7 = vector.extract_strided_slice %0 {offsets = [1, 0, 0], sizes = [1, 1, 128], strides = [1, 1, 1]} : vector<3x3x128xf32> to vector<1x1x128xf32>
    %8 = vector.extract_strided_slice %0 {offsets = [1, 1, 0], sizes = [1, 1, 128], strides = [1, 1, 1]} : vector<3x3x128xf32> to vector<1x1x128xf32>
    %9 = vector.extract_strided_slice %0 {offsets = [1, 2, 0], sizes = [1, 1, 128], strides = [1, 1, 1]} : vector<3x3x128xf32> to vector<1x1x128xf32>
    %10 = vector.extract_strided_slice %0 {offsets = [2, 0, 0], sizes = [1, 1, 128], strides = [1, 1, 1]} : vector<3x3x128xf32> to vector<1x1x128xf32>
    %11 = vector.extract_strided_slice %0 {offsets = [2, 1, 0], sizes = [1, 1, 128], strides = [1, 1, 1]} : vector<3x3x128xf32> to vector<1x1x128xf32>
    %12 = vector.extract_strided_slice %0 {offsets = [2, 2, 0], sizes = [1, 1, 128], strides = [1, 1, 1]} : vector<3x3x128xf32> to vector<1x1x128xf32>
    %cst_5 = arith.constant 0.000000e+00 : f32
    %13 = vector.broadcast %cst_5 : f32 to vector<1x16x128xf32>
    %14 = vector.shape_cast %1 : vector<1x128xf32> to vector<1x1x128xf32>
    %15 = vector.broadcast %14 : vector<1x1x128xf32> to vector<1x16x128xf32>
    %16 = arith.addf %13, %15 : vector<1x16x128xf32>
    %cst_6 = arith.constant 0.000000e+00 : f32
    %17 = vector.broadcast %cst_6 : f32 to vector<1x1x128xf32>
    %c0_7 = arith.constant 0 : index
    %c0_8 = arith.constant 0 : index
    %c0_9 = arith.constant 0 : index
    %c0_10 = arith.constant 0 : index
    %18 = vector.load %arg1[%c0_7, %c0_8, %c0_9, %c0_10] : memref<1x16x16x128xf32, #tpu.memory_space<vmem>>, vector<1x1x16x128xf32>
    %19 = vector.shape_cast %18 : vector<1x1x16x128xf32> to vector<1x16x128xf32>
    %20 = vector.extract_strided_slice %19 {offsets = [0, 0, 0], sizes = [1, 15, 128], strides = [1, 1, 1]} : vector<1x16x128xf32> to vector<1x15x128xf32>
    %21 = tpu.concatenate %17, %20 in 1 : vector<1x1x128xf32>, vector<1x15x128xf32> -> vector<1x16x128xf32>
    %22 = vector.extract_strided_slice %19 {offsets = [0, 1, 0], sizes = [1, 15, 128], strides = [1, 1, 1]} : vector<1x16x128xf32> to vector<1x15x128xf32>
    %23 = tpu.concatenate %22, %17 in 1 : vector<1x15x128xf32>, vector<1x1x128xf32> -> vector<1x16x128xf32>
    %24 = vector.broadcast %7 : vector<1x1x128xf32> to vector<1x16x128xf32>
    %25 = arith.mulf %21, %24 : vector<1x16x128xf32>
    %26 = arith.addf %16, %25 : vector<1x16x128xf32>
    %27 = vector.broadcast %8 : vector<1x1x128xf32> to vector<1x16x128xf32>
    %28 = arith.mulf %19, %27 : vector<1x16x128xf32>
    %29 = arith.addf %26, %28 : vector<1x16x128xf32>
    %30 = vector.broadcast %9 : vector<1x1x128xf32> to vector<1x16x128xf32>
    %31 = arith.mulf %23, %30 : vector<1x16x128xf32>
    %32 = arith.addf %29, %31 : vector<1x16x128xf32>
    %c0_11 = arith.constant 0 : index
    %c1 = arith.constant 1 : index
    %c0_12 = arith.constant 0 : index
    %c0_13 = arith.constant 0 : index
    %33 = vector.load %arg1[%c0_11, %c1, %c0_12, %c0_13] : memref<1x16x16x128xf32, #tpu.memory_space<vmem>>, vector<1x1x16x128xf32>
    %34 = vector.shape_cast %33 : vector<1x1x16x128xf32> to vector<1x16x128xf32>
    %35 = vector.extract_strided_slice %34 {offsets = [0, 0, 0], sizes = [1, 15, 128], strides = [1, 1, 1]} : vector<1x16x128xf32> to vector<1x15x128xf32>
    %36 = tpu.concatenate %17, %35 in 1 : vector<1x1x128xf32>, vector<1x15x128xf32> -> vector<1x16x128xf32>
    %37 = vector.extract_strided_slice %34 {offsets = [0, 1, 0], sizes = [1, 15, 128], strides = [1, 1, 1]} : vector<1x16x128xf32> to vector<1x15x128xf32>
    %38 = tpu.concatenate %37, %17 in 1 : vector<1x15x128xf32>, vector<1x1x128xf32> -> vector<1x16x128xf32>
    %39 = vector.broadcast %10 : vector<1x1x128xf32> to vector<1x16x128xf32>
    %40 = arith.mulf %36, %39 : vector<1x16x128xf32>
    %41 = arith.addf %32, %40 : vector<1x16x128xf32>
    %42 = vector.broadcast %11 : vector<1x1x128xf32> to vector<1x16x128xf32>
    %43 = arith.mulf %34, %42 : vector<1x16x128xf32>
    %44 = arith.addf %41, %43 : vector<1x16x128xf32>
    %45 = vector.broadcast %12 : vector<1x1x128xf32> to vector<1x16x128xf32>
    %46 = arith.mulf %38, %45 : vector<1x16x128xf32>
    %47 = arith.addf %44, %46 : vector<1x16x128xf32>
    %cst_14 = arith.constant 5.000000e-01 : f32
    %48 = vector.broadcast %cst_14 : f32 to vector<1x16x128xf32>
    %49 = arith.mulf %48, %47 : vector<1x16x128xf32>
    %cst_15 = arith.constant 0.707106769 : f32
    %50 = vector.broadcast %cst_15 : f32 to vector<1x16x128xf32>
    %51 = arith.mulf %47, %50 : vector<1x16x128xf32>
    %52 = math.erf %51 : vector<1x16x128xf32>
    %cst_16 = arith.constant 1.000000e+00 : f32
    %53 = vector.broadcast %cst_16 : f32 to vector<1x16x128xf32>
    %54 = arith.addf %53, %52 : vector<1x16x128xf32>
    %55 = arith.mulf %49, %54 : vector<1x16x128xf32>
    %56 = arith.truncf %55 : vector<1x16x128xf32> to vector<1x16x128xbf16>
    %c0_17 = arith.constant 0 : index
    %c0_18 = arith.constant 0 : index
    %c0_19 = arith.constant 0 : index
    %c0_20 = arith.constant 0 : index
    %57 = vector.load %arg4[%c0_17, %c0_18, %c0_19, %c0_20] : memref<1x16x16x128xbf16, #tpu.memory_space<vmem>>, vector<1x1x16x128xbf16>
    %58 = vector.shape_cast %57 : vector<1x1x16x128xbf16> to vector<1x16x128xbf16>
    %59 = vector.shape_cast %56 : vector<1x16x128xbf16> to vector<1x1x16x128xbf16>
    tpu.vector_store %arg4[%c0_17, %c0_18, %c0_19, %c0_20], %59 {strides = array<i32>} : memref<1x16x16x128xbf16, #tpu.memory_space<vmem>>, vector<1x1x16x128xbf16>,
    %cst_21 = arith.constant dense<0.000000e+00> : vector<1x128xf32>
    %60 = vector.multi_reduction <add>, %55, %cst_21 [1] : vector<1x16x128xf32> to vector<1x128xf32>
    %61 = arith.addf %2, %60 : vector<1x128xf32>
    %62 = arith.mulf %55, %55 : vector<1x16x128xf32>
    %cst_22 = arith.constant dense<0.000000e+00> : vector<1x128xf32>
    %63 = vector.multi_reduction <add>, %62, %cst_22 [1] : vector<1x16x128xf32> to vector<1x128xf32>
    %64 = arith.addf %3, %63 : vector<1x128xf32>
    %65 = vector.broadcast %4 : vector<1x1x128xf32> to vector<1x16x128xf32>
    %66 = arith.mulf %21, %65 : vector<1x16x128xf32>
    %67 = arith.addf %16, %66 : vector<1x16x128xf32>
    %68 = vector.broadcast %5 : vector<1x1x128xf32> to vector<1x16x128xf32>
    %69 = arith.mulf %19, %68 : vector<1x16x128xf32>
    %70 = arith.addf %67, %69 : vector<1x16x128xf32>
    %71 = vector.broadcast %6 : vector<1x1x128xf32> to vector<1x16x128xf32>
    %72 = arith.mulf %23, %71 : vector<1x16x128xf32>
    %73 = arith.addf %70, %72 : vector<1x16x128xf32>
    %74 = vector.broadcast %7 : vector<1x1x128xf32> to vector<1x16x128xf32>
    %75 = arith.mulf %36, %74 : vector<1x16x128xf32>
    %76 = arith.addf %73, %75 : vector<1x16x128xf32>
    %77 = vector.broadcast %8 : vector<1x1x128xf32> to vector<1x16x128xf32>
    %78 = arith.mulf %34, %77 : vector<1x16x128xf32>
    %79 = arith.addf %76, %78 : vector<1x16x128xf32>
    %80 = vector.broadcast %9 : vector<1x1x128xf32> to vector<1x16x128xf32>
    %81 = arith.mulf %38, %80 : vector<1x16x128xf32>
    %82 = arith.addf %79, %81 : vector<1x16x128xf32>
    %c0_23 = arith.constant 0 : index
    %c2 = arith.constant 2 : index
    %c0_24 = arith.constant 0 : index
    %c0_25 = arith.constant 0 : index
    %83 = vector.load %arg1[%c0_23, %c2, %c0_24, %c0_25] : memref<1x16x16x128xf32, #tpu.memory_space<vmem>>, vector<1x1x16x128xf32>
    %84 = vector.shape_cast %83 : vector<1x1x16x128xf32> to vector<1x16x128xf32>
    %85 = vector.extract_strided_slice %84 {offsets = [0, 0, 0], sizes = [1, 15, 128], strides = [1, 1, 1]} : vector<1x16x128xf32> to vector<1x15x128xf32>
    %86 = tpu.concatenate %17, %85 in 1 : vector<1x1x128xf32>, vector<1x15x128xf32> -> vector<1x16x128xf32>
    %87 = vector.extract_strided_slice %84 {offsets = [0, 1, 0], sizes = [1, 15, 128], strides = [1, 1, 1]} : vector<1x16x128xf32> to vector<1x15x128xf32>
    %88 = tpu.concatenate %87, %17 in 1 : vector<1x15x128xf32>, vector<1x1x128xf32> -> vector<1x16x128xf32>
    %89 = vector.broadcast %10 : vector<1x1x128xf32> to vector<1x16x128xf32>
    %90 = arith.mulf %86, %89 : vector<1x16x128xf32>
    %91 = arith.addf %82, %90 : vector<1x16x128xf32>
    %92 = vector.broadcast %11 : vector<1x1x128xf32> to vector<1x16x128xf32>
    %93 = arith.mulf %84, %92 : vector<1x16x128xf32>
    %94 = arith.addf %91, %93 : vector<1x16x128xf32>
    %95 = vector.broadcast %12 : vector<1x1x128xf32> to vector<1x16x128xf32>
    %96 = arith.mulf %88, %95 : vector<1x16x128xf32>
    %97 = arith.addf %94, %96 : vector<1x16x128xf32>
    %cst_26 = arith.constant 5.000000e-01 : f32
    %98 = vector.broadcast %cst_26 : f32 to vector<1x16x128xf32>
    %99 = arith.mulf %98, %97 : vector<1x16x128xf32>
    %cst_27 = arith.constant 0.707106769 : f32
    %100 = vector.broadcast %cst_27 : f32 to vector<1x16x128xf32>
    %101 = arith.mulf %97, %100 : vector<1x16x128xf32>
    %102 = math.erf %101 : vector<1x16x128xf32>
    %cst_28 = arith.constant 1.000000e+00 : f32
    %103 = vector.broadcast %cst_28 : f32 to vector<1x16x128xf32>
    %104 = arith.addf %103, %102 : vector<1x16x128xf32>
    %105 = arith.mulf %99, %104 : vector<1x16x128xf32>
    %106 = arith.truncf %105 : vector<1x16x128xf32> to vector<1x16x128xbf16>
    %c0_29 = arith.constant 0 : index
    %c1_30 = arith.constant 1 : index
    %c0_31 = arith.constant 0 : index
    %c0_32 = arith.constant 0 : index
    %107 = vector.load %arg4[%c0_29, %c1_30, %c0_31, %c0_32] : memref<1x16x16x128xbf16, #tpu.memory_space<vmem>>, vector<1x1x16x128xbf16>
    %108 = vector.shape_cast %107 : vector<1x1x16x128xbf16> to vector<1x16x128xbf16>
    %109 = vector.shape_cast %106 : vector<1x16x128xbf16> to vector<1x1x16x128xbf16>
    tpu.vector_store %arg4[%c0_29, %c1_30, %c0_31, %c0_32], %109 {strides = array<i32>} : memref<1x16x16x128xbf16, #tpu.memory_space<vmem>>, vector<1x1x16x128xbf16>,
    %cst_33 = arith.constant dense<0.000000e+00> : vector<1x128xf32>
    %110 = vector.multi_reduction <add>, %105, %cst_33 [1] : vector<1x16x128xf32> to vector<1x128xf32>
    %111 = arith.addf %61, %110 : vector<1x128xf32>
    %112 = arith.mulf %105, %105 : vector<1x16x128xf32>
    %cst_34 = arith.constant dense<0.000000e+00> : vector<1x128xf32>
    %113 = vector.multi_reduction <add>, %112, %cst_34 [1] : vector<1x16x128xf32> to vector<1x128xf32>
    %114 = arith.addf %64, %113 : vector<1x128xf32>
    %115 = vector.broadcast %4 : vector<1x1x128xf32> to vector<1x16x128xf32>
    %116 = arith.mulf %36, %115 : vector<1x16x128xf32>
    %117 = arith.addf %16, %116 : vector<1x16x128xf32>
    %118 = vector.broadcast %5 : vector<1x1x128xf32> to vector<1x16x128xf32>
    %119 = arith.mulf %34, %118 : vector<1x16x128xf32>
    %120 = arith.addf %117, %119 : vector<1x16x128xf32>
    %121 = vector.broadcast %6 : vector<1x1x128xf32> to vector<1x16x128xf32>
    %122 = arith.mulf %38, %121 : vector<1x16x128xf32>
    %123 = arith.addf %120, %122 : vector<1x16x128xf32>
    %124 = vector.broadcast %7 : vector<1x1x128xf32> to vector<1x16x128xf32>
    %125 = arith.mulf %86, %124 : vector<1x16x128xf32>
    %126 = arith.addf %123, %125 : vector<1x16x128xf32>
    %127 = vector.broadcast %8 : vector<1x1x128xf32> to vector<1x16x128xf32>
    %128 = arith.mulf %84, %127 : vector<1x16x128xf32>
    %129 = arith.addf %126, %128 : vector<1x16x128xf32>
    %130 = vector.broadcast %9 : vector<1x1x128xf32> to vector<1x16x128xf32>
    %131 = arith.mulf %88, %130 : vector<1x16x128xf32>
    %132 = arith.addf %129, %131 : vector<1x16x128xf32>
    %c0_35 = arith.constant 0 : index
    %c3 = arith.constant 3 : index
    %c0_36 = arith.constant 0 : index
    %c0_37 = arith.constant 0 : index
    %133 = vector.load %arg1[%c0_35, %c3, %c0_36, %c0_37] : memref<1x16x16x128xf32, #tpu.memory_space<vmem>>, vector<1x1x16x128xf32>
    %134 = vector.shape_cast %133 : vector<1x1x16x128xf32> to vector<1x16x128xf32>
    %135 = vector.extract_strided_slice %134 {offsets = [0, 0, 0], sizes = [1, 15, 128], strides = [1, 1, 1]} : vector<1x16x128xf32> to vector<1x15x128xf32>
    %136 = tpu.concatenate %17, %135 in 1 : vector<1x1x128xf32>, vector<1x15x128xf32> -> vector<1x16x128xf32>
    %137 = vector.extract_strided_slice %134 {offsets = [0, 1, 0], sizes = [1, 15, 128], strides = [1, 1, 1]} : vector<1x16x128xf32> to vector<1x15x128xf32>
    %138 = tpu.concatenate %137, %17 in 1 : vector<1x15x128xf32>, vector<1x1x128xf32> -> vector<1x16x128xf32>
    %139 = vector.broadcast %10 : vector<1x1x128xf32> to vector<1x16x128xf32>
    %140 = arith.mulf %136, %139 : vector<1x16x128xf32>
    %141 = arith.addf %132, %140 : vector<1x16x128xf32>
    %142 = vector.broadcast %11 : vector<1x1x128xf32> to vector<1x16x128xf32>
    %143 = arith.mulf %134, %142 : vector<1x16x128xf32>
    %144 = arith.addf %141, %143 : vector<1x16x128xf32>
    %145 = vector.broadcast %12 : vector<1x1x128xf32> to vector<1x16x128xf32>
    %146 = arith.mulf %138, %145 : vector<1x16x128xf32>
    %147 = arith.addf %144, %146 : vector<1x16x128xf32>
    %cst_38 = arith.constant 5.000000e-01 : f32
    %148 = vector.broadcast %cst_38 : f32 to vector<1x16x128xf32>
    %149 = arith.mulf %148, %147 : vector<1x16x128xf32>
    %cst_39 = arith.constant 0.707106769 : f32
    %150 = vector.broadcast %cst_39 : f32 to vector<1x16x128xf32>
    %151 = arith.mulf %147, %150 : vector<1x16x128xf32>
    %152 = math.erf %151 : vector<1x16x128xf32>
    %cst_40 = arith.constant 1.000000e+00 : f32
    %153 = vector.broadcast %cst_40 : f32 to vector<1x16x128xf32>
    %154 = arith.addf %153, %152 : vector<1x16x128xf32>
    %155 = arith.mulf %149, %154 : vector<1x16x128xf32>
    %156 = arith.truncf %155 : vector<1x16x128xf32> to vector<1x16x128xbf16>
    %c0_41 = arith.constant 0 : index
    %c2_42 = arith.constant 2 : index
    %c0_43 = arith.constant 0 : index
    %c0_44 = arith.constant 0 : index
    %157 = vector.load %arg4[%c0_41, %c2_42, %c0_43, %c0_44] : memref<1x16x16x128xbf16, #tpu.memory_space<vmem>>, vector<1x1x16x128xbf16>
    %158 = vector.shape_cast %157 : vector<1x1x16x128xbf16> to vector<1x16x128xbf16>
    %159 = vector.shape_cast %156 : vector<1x16x128xbf16> to vector<1x1x16x128xbf16>
    tpu.vector_store %arg4[%c0_41, %c2_42, %c0_43, %c0_44], %159 {strides = array<i32>} : memref<1x16x16x128xbf16, #tpu.memory_space<vmem>>, vector<1x1x16x128xbf16>,
    %cst_45 = arith.constant dense<0.000000e+00> : vector<1x128xf32>
    %160 = vector.multi_reduction <add>, %155, %cst_45 [1] : vector<1x16x128xf32> to vector<1x128xf32>
    %161 = arith.addf %111, %160 : vector<1x128xf32>
    %162 = arith.mulf %155, %155 : vector<1x16x128xf32>
    %cst_46 = arith.constant dense<0.000000e+00> : vector<1x128xf32>
    %163 = vector.multi_reduction <add>, %162, %cst_46 [1] : vector<1x16x128xf32> to vector<1x128xf32>
    %164 = arith.addf %114, %163 : vector<1x128xf32>
    %165 = vector.broadcast %4 : vector<1x1x128xf32> to vector<1x16x128xf32>
    %166 = arith.mulf %86, %165 : vector<1x16x128xf32>
    %167 = arith.addf %16, %166 : vector<1x16x128xf32>
    %168 = vector.broadcast %5 : vector<1x1x128xf32> to vector<1x16x128xf32>
    %169 = arith.mulf %84, %168 : vector<1x16x128xf32>
    %170 = arith.addf %167, %169 : vector<1x16x128xf32>
    %171 = vector.broadcast %6 : vector<1x1x128xf32> to vector<1x16x128xf32>
    %172 = arith.mulf %88, %171 : vector<1x16x128xf32>
    %173 = arith.addf %170, %172 : vector<1x16x128xf32>
    %174 = vector.broadcast %7 : vector<1x1x128xf32> to vector<1x16x128xf32>
    %175 = arith.mulf %136, %174 : vector<1x16x128xf32>
    %176 = arith.addf %173, %175 : vector<1x16x128xf32>
    %177 = vector.broadcast %8 : vector<1x1x128xf32> to vector<1x16x128xf32>
    %178 = arith.mulf %134, %177 : vector<1x16x128xf32>
    %179 = arith.addf %176, %178 : vector<1x16x128xf32>
    %180 = vector.broadcast %9 : vector<1x1x128xf32> to vector<1x16x128xf32>
    %181 = arith.mulf %138, %180 : vector<1x16x128xf32>
    %182 = arith.addf %179, %181 : vector<1x16x128xf32>
    %c0_47 = arith.constant 0 : index
    %c4 = arith.constant 4 : index
    %c0_48 = arith.constant 0 : index
    %c0_49 = arith.constant 0 : index
    %183 = vector.load %arg1[%c0_47, %c4, %c0_48, %c0_49] : memref<1x16x16x128xf32, #tpu.memory_space<vmem>>, vector<1x1x16x128xf32>
    %184 = vector.shape_cast %183 : vector<1x1x16x128xf32> to vector<1x16x128xf32>
    %185 = vector.extract_strided_slice %184 {offsets = [0, 0, 0], sizes = [1, 15, 128], strides = [1, 1, 1]} : vector<1x16x128xf32> to vector<1x15x128xf32>
    %186 = tpu.concatenate %17, %185 in 1 : vector<1x1x128xf32>, vector<1x15x128xf32> -> vector<1x16x128xf32>
    %187 = vector.extract_strided_slice %184 {offsets = [0, 1, 0], sizes = [1, 15, 128], strides = [1, 1, 1]} : vector<1x16x128xf32> to vector<1x15x128xf32>
    %188 = tpu.concatenate %187, %17 in 1 : vector<1x15x128xf32>, vector<1x1x128xf32> -> vector<1x16x128xf32>
    %189 = vector.broadcast %10 : vector<1x1x128xf32> to vector<1x16x128xf32>
    %190 = arith.mulf %186, %189 : vector<1x16x128xf32>
    %191 = arith.addf %182, %190 : vector<1x16x128xf32>
    %192 = vector.broadcast %11 : vector<1x1x128xf32> to vector<1x16x128xf32>
    %193 = arith.mulf %184, %192 : vector<1x16x128xf32>
    %194 = arith.addf %191, %193 : vector<1x16x128xf32>
    %195 = vector.broadcast %12 : vector<1x1x128xf32> to vector<1x16x128xf32>
    %196 = arith.mulf %188, %195 : vector<1x16x128xf32>
    %197 = arith.addf %194, %196 : vector<1x16x128xf32>
    %cst_50 = arith.constant 5.000000e-01 : f32
    %198 = vector.broadcast %cst_50 : f32 to vector<1x16x128xf32>
    %199 = arith.mulf %198, %197 : vector<1x16x128xf32>
    %cst_51 = arith.constant 0.707106769 : f32
    %200 = vector.broadcast %cst_51 : f32 to vector<1x16x128xf32>
    %201 = arith.mulf %197, %200 : vector<1x16x128xf32>
    %202 = math.erf %201 : vector<1x16x128xf32>
    %cst_52 = arith.constant 1.000000e+00 : f32
    %203 = vector.broadcast %cst_52 : f32 to vector<1x16x128xf32>
    %204 = arith.addf %203, %202 : vector<1x16x128xf32>
    %205 = arith.mulf %199, %204 : vector<1x16x128xf32>
    %206 = arith.truncf %205 : vector<1x16x128xf32> to vector<1x16x128xbf16>
    %c0_53 = arith.constant 0 : index
    %c3_54 = arith.constant 3 : index
    %c0_55 = arith.constant 0 : index
    %c0_56 = arith.constant 0 : index
    %207 = vector.load %arg4[%c0_53, %c3_54, %c0_55, %c0_56] : memref<1x16x16x128xbf16, #tpu.memory_space<vmem>>, vector<1x1x16x128xbf16>
    %208 = vector.shape_cast %207 : vector<1x1x16x128xbf16> to vector<1x16x128xbf16>
    %209 = vector.shape_cast %206 : vector<1x16x128xbf16> to vector<1x1x16x128xbf16>
    tpu.vector_store %arg4[%c0_53, %c3_54, %c0_55, %c0_56], %209 {strides = array<i32>} : memref<1x16x16x128xbf16, #tpu.memory_space<vmem>>, vector<1x1x16x128xbf16>,
    %cst_57 = arith.constant dense<0.000000e+00> : vector<1x128xf32>
    %210 = vector.multi_reduction <add>, %205, %cst_57 [1] : vector<1x16x128xf32> to vector<1x128xf32>
    %211 = arith.addf %161, %210 : vector<1x128xf32>
    %212 = arith.mulf %205, %205 : vector<1x16x128xf32>
    %cst_58 = arith.constant dense<0.000000e+00> : vector<1x128xf32>
    %213 = vector.multi_reduction <add>, %212, %cst_58 [1] : vector<1x16x128xf32> to vector<1x128xf32>
    %214 = arith.addf %164, %213 : vector<1x128xf32>
    %215 = vector.broadcast %4 : vector<1x1x128xf32> to vector<1x16x128xf32>
    %216 = arith.mulf %136, %215 : vector<1x16x128xf32>
    %217 = arith.addf %16, %216 : vector<1x16x128xf32>
    %218 = vector.broadcast %5 : vector<1x1x128xf32> to vector<1x16x128xf32>
    %219 = arith.mulf %134, %218 : vector<1x16x128xf32>
    %220 = arith.addf %217, %219 : vector<1x16x128xf32>
    %221 = vector.broadcast %6 : vector<1x1x128xf32> to vector<1x16x128xf32>
    %222 = arith.mulf %138, %221 : vector<1x16x128xf32>
    %223 = arith.addf %220, %222 : vector<1x16x128xf32>
    %224 = vector.broadcast %7 : vector<1x1x128xf32> to vector<1x16x128xf32>
    %225 = arith.mulf %186, %224 : vector<1x16x128xf32>
    %226 = arith.addf %223, %225 : vector<1x16x128xf32>
    %227 = vector.broadcast %8 : vector<1x1x128xf32> to vector<1x16x128xf32>
    %228 = arith.mulf %184, %227 : vector<1x16x128xf32>
    %229 = arith.addf %226, %228 : vector<1x16x128xf32>
    %230 = vector.broadcast %9 : vector<1x1x128xf32> to vector<1x16x128xf32>
    %231 = arith.mulf %188, %230 : vector<1x16x128xf32>
    %232 = arith.addf %229, %231 : vector<1x16x128xf32>
    %c0_59 = arith.constant 0 : index
    %c5 = arith.constant 5 : index
    %c0_60 = arith.constant 0 : index
    %c0_61 = arith.constant 0 : index
    %233 = vector.load %arg1[%c0_59, %c5, %c0_60, %c0_61] : memref<1x16x16x128xf32, #tpu.memory_space<vmem>>, vector<1x1x16x128xf32>
    %234 = vector.shape_cast %233 : vector<1x1x16x128xf32> to vector<1x16x128xf32>
    %235 = vector.extract_strided_slice %234 {offsets = [0, 0, 0], sizes = [1, 15, 128], strides = [1, 1, 1]} : vector<1x16x128xf32> to vector<1x15x128xf32>
    %236 = tpu.concatenate %17, %235 in 1 : vector<1x1x128xf32>, vector<1x15x128xf32> -> vector<1x16x128xf32>
    %237 = vector.extract_strided_slice %234 {offsets = [0, 1, 0], sizes = [1, 15, 128], strides = [1, 1, 1]} : vector<1x16x128xf32> to vector<1x15x128xf32>
    %238 = tpu.concatenate %237, %17 in 1 : vector<1x15x128xf32>, vector<1x1x128xf32> -> vector<1x16x128xf32>
    %239 = vector.broadcast %10 : vector<1x1x128xf32> to vector<1x16x128xf32>
    %240 = arith.mulf %236, %239 : vector<1x16x128xf32>
    %241 = arith.addf %232, %240 : vector<1x16x128xf32>
    %242 = vector.broadcast %11 : vector<1x1x128xf32> to vector<1x16x128xf32>
    %243 = arith.mulf %234, %242 : vector<1x16x128xf32>
    %244 = arith.addf %241, %243 : vector<1x16x128xf32>
    %245 = vector.broadcast %12 : vector<1x1x128xf32> to vector<1x16x128xf32>
    %246 = arith.mulf %238, %245 : vector<1x16x128xf32>
    %247 = arith.addf %244, %246 : vector<1x16x128xf32>
    %cst_62 = arith.constant 5.000000e-01 : f32
    %248 = vector.broadcast %cst_62 : f32 to vector<1x16x128xf32>
    %249 = arith.mulf %248, %247 : vector<1x16x128xf32>
    %cst_63 = arith.constant 0.707106769 : f32
    %250 = vector.broadcast %cst_63 : f32 to vector<1x16x128xf32>
    %251 = arith.mulf %247, %250 : vector<1x16x128xf32>
    %252 = math.erf %251 : vector<1x16x128xf32>
    %cst_64 = arith.constant 1.000000e+00 : f32
    %253 = vector.broadcast %cst_64 : f32 to vector<1x16x128xf32>
    %254 = arith.addf %253, %252 : vector<1x16x128xf32>
    %255 = arith.mulf %249, %254 : vector<1x16x128xf32>
    %256 = arith.truncf %255 : vector<1x16x128xf32> to vector<1x16x128xbf16>
    %c0_65 = arith.constant 0 : index
    %c4_66 = arith.constant 4 : index
    %c0_67 = arith.constant 0 : index
    %c0_68 = arith.constant 0 : index
    %257 = vector.load %arg4[%c0_65, %c4_66, %c0_67, %c0_68] : memref<1x16x16x128xbf16, #tpu.memory_space<vmem>>, vector<1x1x16x128xbf16>
    %258 = vector.shape_cast %257 : vector<1x1x16x128xbf16> to vector<1x16x128xbf16>
    %259 = vector.shape_cast %256 : vector<1x16x128xbf16> to vector<1x1x16x128xbf16>
    tpu.vector_store %arg4[%c0_65, %c4_66, %c0_67, %c0_68], %259 {strides = array<i32>} : memref<1x16x16x128xbf16, #tpu.memory_space<vmem>>, vector<1x1x16x128xbf16>,
    %cst_69 = arith.constant dense<0.000000e+00> : vector<1x128xf32>
    %260 = vector.multi_reduction <add>, %255, %cst_69 [1] : vector<1x16x128xf32> to vector<1x128xf32>
    %261 = arith.addf %211, %260 : vector<1x128xf32>
    %262 = arith.mulf %255, %255 : vector<1x16x128xf32>
    %cst_70 = arith.constant dense<0.000000e+00> : vector<1x128xf32>
    %263 = vector.multi_reduction <add>, %262, %cst_70 [1] : vector<1x16x128xf32> to vector<1x128xf32>
    %264 = arith.addf %214, %263 : vector<1x128xf32>
    %265 = vector.broadcast %4 : vector<1x1x128xf32> to vector<1x16x128xf32>
    %266 = arith.mulf %186, %265 : vector<1x16x128xf32>
    %267 = arith.addf %16, %266 : vector<1x16x128xf32>
    %268 = vector.broadcast %5 : vector<1x1x128xf32> to vector<1x16x128xf32>
    %269 = arith.mulf %184, %268 : vector<1x16x128xf32>
    %270 = arith.addf %267, %269 : vector<1x16x128xf32>
    %271 = vector.broadcast %6 : vector<1x1x128xf32> to vector<1x16x128xf32>
    %272 = arith.mulf %188, %271 : vector<1x16x128xf32>
    %273 = arith.addf %270, %272 : vector<1x16x128xf32>
    %274 = vector.broadcast %7 : vector<1x1x128xf32> to vector<1x16x128xf32>
    %275 = arith.mulf %236, %274 : vector<1x16x128xf32>
    %276 = arith.addf %273, %275 : vector<1x16x128xf32>
    %277 = vector.broadcast %8 : vector<1x1x128xf32> to vector<1x16x128xf32>
    %278 = arith.mulf %234, %277 : vector<1x16x128xf32>
    %279 = arith.addf %276, %278 : vector<1x16x128xf32>
    %280 = vector.broadcast %9 : vector<1x1x128xf32> to vector<1x16x128xf32>
    %281 = arith.mulf %238, %280 : vector<1x16x128xf32>
    %282 = arith.addf %279, %281 : vector<1x16x128xf32>
    %c0_71 = arith.constant 0 : index
    %c6 = arith.constant 6 : index
    %c0_72 = arith.constant 0 : index
    %c0_73 = arith.constant 0 : index
    %283 = vector.load %arg1[%c0_71, %c6, %c0_72, %c0_73] : memref<1x16x16x128xf32, #tpu.memory_space<vmem>>, vector<1x1x16x128xf32>
    %284 = vector.shape_cast %283 : vector<1x1x16x128xf32> to vector<1x16x128xf32>
    %285 = vector.extract_strided_slice %284 {offsets = [0, 0, 0], sizes = [1, 15, 128], strides = [1, 1, 1]} : vector<1x16x128xf32> to vector<1x15x128xf32>
    %286 = tpu.concatenate %17, %285 in 1 : vector<1x1x128xf32>, vector<1x15x128xf32> -> vector<1x16x128xf32>
    %287 = vector.extract_strided_slice %284 {offsets = [0, 1, 0], sizes = [1, 15, 128], strides = [1, 1, 1]} : vector<1x16x128xf32> to vector<1x15x128xf32>
    %288 = tpu.concatenate %287, %17 in 1 : vector<1x15x128xf32>, vector<1x1x128xf32> -> vector<1x16x128xf32>
    %289 = vector.broadcast %10 : vector<1x1x128xf32> to vector<1x16x128xf32>
    %290 = arith.mulf %286, %289 : vector<1x16x128xf32>
    %291 = arith.addf %282, %290 : vector<1x16x128xf32>
    %292 = vector.broadcast %11 : vector<1x1x128xf32> to vector<1x16x128xf32>
    %293 = arith.mulf %284, %292 : vector<1x16x128xf32>
    %294 = arith.addf %291, %293 : vector<1x16x128xf32>
    %295 = vector.broadcast %12 : vector<1x1x128xf32> to vector<1x16x128xf32>
    %296 = arith.mulf %288, %295 : vector<1x16x128xf32>
    %297 = arith.addf %294, %296 : vector<1x16x128xf32>
    %cst_74 = arith.constant 5.000000e-01 : f32
    %298 = vector.broadcast %cst_74 : f32 to vector<1x16x128xf32>
    %299 = arith.mulf %298, %297 : vector<1x16x128xf32>
    %cst_75 = arith.constant 0.707106769 : f32
    %300 = vector.broadcast %cst_75 : f32 to vector<1x16x128xf32>
    %301 = arith.mulf %297, %300 : vector<1x16x128xf32>
    %302 = math.erf %301 : vector<1x16x128xf32>
    %cst_76 = arith.constant 1.000000e+00 : f32
    %303 = vector.broadcast %cst_76 : f32 to vector<1x16x128xf32>
    %304 = arith.addf %303, %302 : vector<1x16x128xf32>
    %305 = arith.mulf %299, %304 : vector<1x16x128xf32>
    %306 = arith.truncf %305 : vector<1x16x128xf32> to vector<1x16x128xbf16>
    %c0_77 = arith.constant 0 : index
    %c5_78 = arith.constant 5 : index
    %c0_79 = arith.constant 0 : index
    %c0_80 = arith.constant 0 : index
    %307 = vector.load %arg4[%c0_77, %c5_78, %c0_79, %c0_80] : memref<1x16x16x128xbf16, #tpu.memory_space<vmem>>, vector<1x1x16x128xbf16>
    %308 = vector.shape_cast %307 : vector<1x1x16x128xbf16> to vector<1x16x128xbf16>
    %309 = vector.shape_cast %306 : vector<1x16x128xbf16> to vector<1x1x16x128xbf16>
    tpu.vector_store %arg4[%c0_77, %c5_78, %c0_79, %c0_80], %309 {strides = array<i32>} : memref<1x16x16x128xbf16, #tpu.memory_space<vmem>>, vector<1x1x16x128xbf16>,
    %cst_81 = arith.constant dense<0.000000e+00> : vector<1x128xf32>
    %310 = vector.multi_reduction <add>, %305, %cst_81 [1] : vector<1x16x128xf32> to vector<1x128xf32>
    %311 = arith.addf %261, %310 : vector<1x128xf32>
    %312 = arith.mulf %305, %305 : vector<1x16x128xf32>
    %cst_82 = arith.constant dense<0.000000e+00> : vector<1x128xf32>
    %313 = vector.multi_reduction <add>, %312, %cst_82 [1] : vector<1x16x128xf32> to vector<1x128xf32>
    %314 = arith.addf %264, %313 : vector<1x128xf32>
    %315 = vector.broadcast %4 : vector<1x1x128xf32> to vector<1x16x128xf32>
    %316 = arith.mulf %236, %315 : vector<1x16x128xf32>
    %317 = arith.addf %16, %316 : vector<1x16x128xf32>
    %318 = vector.broadcast %5 : vector<1x1x128xf32> to vector<1x16x128xf32>
    %319 = arith.mulf %234, %318 : vector<1x16x128xf32>
    %320 = arith.addf %317, %319 : vector<1x16x128xf32>
    %321 = vector.broadcast %6 : vector<1x1x128xf32> to vector<1x16x128xf32>
    %322 = arith.mulf %238, %321 : vector<1x16x128xf32>
    %323 = arith.addf %320, %322 : vector<1x16x128xf32>
    %324 = vector.broadcast %7 : vector<1x1x128xf32> to vector<1x16x128xf32>
    %325 = arith.mulf %286, %324 : vector<1x16x128xf32>
    %326 = arith.addf %323, %325 : vector<1x16x128xf32>
    %327 = vector.broadcast %8 : vector<1x1x128xf32> to vector<1x16x128xf32>
    %328 = arith.mulf %284, %327 : vector<1x16x128xf32>
    %329 = arith.addf %326, %328 : vector<1x16x128xf32>
    %330 = vector.broadcast %9 : vector<1x1x128xf32> to vector<1x16x128xf32>
    %331 = arith.mulf %288, %330 : vector<1x16x128xf32>
    %332 = arith.addf %329, %331 : vector<1x16x128xf32>
    %c0_83 = arith.constant 0 : index
    %c7 = arith.constant 7 : index
    %c0_84 = arith.constant 0 : index
    %c0_85 = arith.constant 0 : index
    %333 = vector.load %arg1[%c0_83, %c7, %c0_84, %c0_85] : memref<1x16x16x128xf32, #tpu.memory_space<vmem>>, vector<1x1x16x128xf32>
    %334 = vector.shape_cast %333 : vector<1x1x16x128xf32> to vector<1x16x128xf32>
    %335 = vector.extract_strided_slice %334 {offsets = [0, 0, 0], sizes = [1, 15, 128], strides = [1, 1, 1]} : vector<1x16x128xf32> to vector<1x15x128xf32>
    %336 = tpu.concatenate %17, %335 in 1 : vector<1x1x128xf32>, vector<1x15x128xf32> -> vector<1x16x128xf32>
    %337 = vector.extract_strided_slice %334 {offsets = [0, 1, 0], sizes = [1, 15, 128], strides = [1, 1, 1]} : vector<1x16x128xf32> to vector<1x15x128xf32>
    %338 = tpu.concatenate %337, %17 in 1 : vector<1x15x128xf32>, vector<1x1x128xf32> -> vector<1x16x128xf32>
    %339 = vector.broadcast %10 : vector<1x1x128xf32> to vector<1x16x128xf32>
    %340 = arith.mulf %336, %339 : vector<1x16x128xf32>
    %341 = arith.addf %332, %340 : vector<1x16x128xf32>
    %342 = vector.broadcast %11 : vector<1x1x128xf32> to vector<1x16x128xf32>
    %343 = arith.mulf %334, %342 : vector<1x16x128xf32>
    %344 = arith.addf %341, %343 : vector<1x16x128xf32>
    %345 = vector.broadcast %12 : vector<1x1x128xf32> to vector<1x16x128xf32>
    %346 = arith.mulf %338, %345 : vector<1x16x128xf32>
    %347 = arith.addf %344, %346 : vector<1x16x128xf32>
    %cst_86 = arith.constant 5.000000e-01 : f32
    %348 = vector.broadcast %cst_86 : f32 to vector<1x16x128xf32>
    %349 = arith.mulf %348, %347 : vector<1x16x128xf32>
    %cst_87 = arith.constant 0.707106769 : f32
    %350 = vector.broadcast %cst_87 : f32 to vector<1x16x128xf32>
    %351 = arith.mulf %347, %350 : vector<1x16x128xf32>
    %352 = math.erf %351 : vector<1x16x128xf32>
    %cst_88 = arith.constant 1.000000e+00 : f32
    %353 = vector.broadcast %cst_88 : f32 to vector<1x16x128xf32>
    %354 = arith.addf %353, %352 : vector<1x16x128xf32>
    %355 = arith.mulf %349, %354 : vector<1x16x128xf32>
    %356 = arith.truncf %355 : vector<1x16x128xf32> to vector<1x16x128xbf16>
    %c0_89 = arith.constant 0 : index
    %c6_90 = arith.constant 6 : index
    %c0_91 = arith.constant 0 : index
    %c0_92 = arith.constant 0 : index
    %357 = vector.load %arg4[%c0_89, %c6_90, %c0_91, %c0_92] : memref<1x16x16x128xbf16, #tpu.memory_space<vmem>>, vector<1x1x16x128xbf16>
    %358 = vector.shape_cast %357 : vector<1x1x16x128xbf16> to vector<1x16x128xbf16>
    %359 = vector.shape_cast %356 : vector<1x16x128xbf16> to vector<1x1x16x128xbf16>
    tpu.vector_store %arg4[%c0_89, %c6_90, %c0_91, %c0_92], %359 {strides = array<i32>} : memref<1x16x16x128xbf16, #tpu.memory_space<vmem>>, vector<1x1x16x128xbf16>,
    %cst_93 = arith.constant dense<0.000000e+00> : vector<1x128xf32>
    %360 = vector.multi_reduction <add>, %355, %cst_93 [1] : vector<1x16x128xf32> to vector<1x128xf32>
    %361 = arith.addf %311, %360 : vector<1x128xf32>
    %362 = arith.mulf %355, %355 : vector<1x16x128xf32>
    %cst_94 = arith.constant dense<0.000000e+00> : vector<1x128xf32>
    %363 = vector.multi_reduction <add>, %362, %cst_94 [1] : vector<1x16x128xf32> to vector<1x128xf32>
    %364 = arith.addf %314, %363 : vector<1x128xf32>
    %365 = vector.broadcast %4 : vector<1x1x128xf32> to vector<1x16x128xf32>
    %366 = arith.mulf %286, %365 : vector<1x16x128xf32>
    %367 = arith.addf %16, %366 : vector<1x16x128xf32>
    %368 = vector.broadcast %5 : vector<1x1x128xf32> to vector<1x16x128xf32>
    %369 = arith.mulf %284, %368 : vector<1x16x128xf32>
    %370 = arith.addf %367, %369 : vector<1x16x128xf32>
    %371 = vector.broadcast %6 : vector<1x1x128xf32> to vector<1x16x128xf32>
    %372 = arith.mulf %288, %371 : vector<1x16x128xf32>
    %373 = arith.addf %370, %372 : vector<1x16x128xf32>
    %374 = vector.broadcast %7 : vector<1x1x128xf32> to vector<1x16x128xf32>
    %375 = arith.mulf %336, %374 : vector<1x16x128xf32>
    %376 = arith.addf %373, %375 : vector<1x16x128xf32>
    %377 = vector.broadcast %8 : vector<1x1x128xf32> to vector<1x16x128xf32>
    %378 = arith.mulf %334, %377 : vector<1x16x128xf32>
    %379 = arith.addf %376, %378 : vector<1x16x128xf32>
    %380 = vector.broadcast %9 : vector<1x1x128xf32> to vector<1x16x128xf32>
    %381 = arith.mulf %338, %380 : vector<1x16x128xf32>
    %382 = arith.addf %379, %381 : vector<1x16x128xf32>
    %c0_95 = arith.constant 0 : index
    %c8 = arith.constant 8 : index
    %c0_96 = arith.constant 0 : index
    %c0_97 = arith.constant 0 : index
    %383 = vector.load %arg1[%c0_95, %c8, %c0_96, %c0_97] : memref<1x16x16x128xf32, #tpu.memory_space<vmem>>, vector<1x1x16x128xf32>
    %384 = vector.shape_cast %383 : vector<1x1x16x128xf32> to vector<1x16x128xf32>
    %385 = vector.extract_strided_slice %384 {offsets = [0, 0, 0], sizes = [1, 15, 128], strides = [1, 1, 1]} : vector<1x16x128xf32> to vector<1x15x128xf32>
    %386 = tpu.concatenate %17, %385 in 1 : vector<1x1x128xf32>, vector<1x15x128xf32> -> vector<1x16x128xf32>
    %387 = vector.extract_strided_slice %384 {offsets = [0, 1, 0], sizes = [1, 15, 128], strides = [1, 1, 1]} : vector<1x16x128xf32> to vector<1x15x128xf32>
    %388 = tpu.concatenate %387, %17 in 1 : vector<1x15x128xf32>, vector<1x1x128xf32> -> vector<1x16x128xf32>
    %389 = vector.broadcast %10 : vector<1x1x128xf32> to vector<1x16x128xf32>
    %390 = arith.mulf %386, %389 : vector<1x16x128xf32>
    %391 = arith.addf %382, %390 : vector<1x16x128xf32>
    %392 = vector.broadcast %11 : vector<1x1x128xf32> to vector<1x16x128xf32>
    %393 = arith.mulf %384, %392 : vector<1x16x128xf32>
    %394 = arith.addf %391, %393 : vector<1x16x128xf32>
    %395 = vector.broadcast %12 : vector<1x1x128xf32> to vector<1x16x128xf32>
    %396 = arith.mulf %388, %395 : vector<1x16x128xf32>
    %397 = arith.addf %394, %396 : vector<1x16x128xf32>
    %cst_98 = arith.constant 5.000000e-01 : f32
    %398 = vector.broadcast %cst_98 : f32 to vector<1x16x128xf32>
    %399 = arith.mulf %398, %397 : vector<1x16x128xf32>
    %cst_99 = arith.constant 0.707106769 : f32
    %400 = vector.broadcast %cst_99 : f32 to vector<1x16x128xf32>
    %401 = arith.mulf %397, %400 : vector<1x16x128xf32>
    %402 = math.erf %401 : vector<1x16x128xf32>
    %cst_100 = arith.constant 1.000000e+00 : f32
    %403 = vector.broadcast %cst_100 : f32 to vector<1x16x128xf32>
    %404 = arith.addf %403, %402 : vector<1x16x128xf32>
    %405 = arith.mulf %399, %404 : vector<1x16x128xf32>
    %406 = arith.truncf %405 : vector<1x16x128xf32> to vector<1x16x128xbf16>
    %c0_101 = arith.constant 0 : index
    %c7_102 = arith.constant 7 : index
    %c0_103 = arith.constant 0 : index
    %c0_104 = arith.constant 0 : index
    %407 = vector.load %arg4[%c0_101, %c7_102, %c0_103, %c0_104] : memref<1x16x16x128xbf16, #tpu.memory_space<vmem>>, vector<1x1x16x128xbf16>
    %408 = vector.shape_cast %407 : vector<1x1x16x128xbf16> to vector<1x16x128xbf16>
    %409 = vector.shape_cast %406 : vector<1x16x128xbf16> to vector<1x1x16x128xbf16>
    tpu.vector_store %arg4[%c0_101, %c7_102, %c0_103, %c0_104], %409 {strides = array<i32>} : memref<1x16x16x128xbf16, #tpu.memory_space<vmem>>, vector<1x1x16x128xbf16>,
    %cst_105 = arith.constant dense<0.000000e+00> : vector<1x128xf32>
    %410 = vector.multi_reduction <add>, %405, %cst_105 [1] : vector<1x16x128xf32> to vector<1x128xf32>
    %411 = arith.addf %361, %410 : vector<1x128xf32>
    %412 = arith.mulf %405, %405 : vector<1x16x128xf32>
    %cst_106 = arith.constant dense<0.000000e+00> : vector<1x128xf32>
    %413 = vector.multi_reduction <add>, %412, %cst_106 [1] : vector<1x16x128xf32> to vector<1x128xf32>
    %414 = arith.addf %364, %413 : vector<1x128xf32>
    %415 = vector.broadcast %4 : vector<1x1x128xf32> to vector<1x16x128xf32>
    %416 = arith.mulf %336, %415 : vector<1x16x128xf32>
    %417 = arith.addf %16, %416 : vector<1x16x128xf32>
    %418 = vector.broadcast %5 : vector<1x1x128xf32> to vector<1x16x128xf32>
    %419 = arith.mulf %334, %418 : vector<1x16x128xf32>
    %420 = arith.addf %417, %419 : vector<1x16x128xf32>
    %421 = vector.broadcast %6 : vector<1x1x128xf32> to vector<1x16x128xf32>
    %422 = arith.mulf %338, %421 : vector<1x16x128xf32>
    %423 = arith.addf %420, %422 : vector<1x16x128xf32>
    %424 = vector.broadcast %7 : vector<1x1x128xf32> to vector<1x16x128xf32>
    %425 = arith.mulf %386, %424 : vector<1x16x128xf32>
    %426 = arith.addf %423, %425 : vector<1x16x128xf32>
    %427 = vector.broadcast %8 : vector<1x1x128xf32> to vector<1x16x128xf32>
    %428 = arith.mulf %384, %427 : vector<1x16x128xf32>
    %429 = arith.addf %426, %428 : vector<1x16x128xf32>
    %430 = vector.broadcast %9 : vector<1x1x128xf32> to vector<1x16x128xf32>
    %431 = arith.mulf %388, %430 : vector<1x16x128xf32>
    %432 = arith.addf %429, %431 : vector<1x16x128xf32>
    %c0_107 = arith.constant 0 : index
    %c9 = arith.constant 9 : index
    %c0_108 = arith.constant 0 : index
    %c0_109 = arith.constant 0 : index
    %433 = vector.load %arg1[%c0_107, %c9, %c0_108, %c0_109] : memref<1x16x16x128xf32, #tpu.memory_space<vmem>>, vector<1x1x16x128xf32>
    %434 = vector.shape_cast %433 : vector<1x1x16x128xf32> to vector<1x16x128xf32>
    %435 = vector.extract_strided_slice %434 {offsets = [0, 0, 0], sizes = [1, 15, 128], strides = [1, 1, 1]} : vector<1x16x128xf32> to vector<1x15x128xf32>
    %436 = tpu.concatenate %17, %435 in 1 : vector<1x1x128xf32>, vector<1x15x128xf32> -> vector<1x16x128xf32>
    %437 = vector.extract_strided_slice %434 {offsets = [0, 1, 0], sizes = [1, 15, 128], strides = [1, 1, 1]} : vector<1x16x128xf32> to vector<1x15x128xf32>
    %438 = tpu.concatenate %437, %17 in 1 : vector<1x15x128xf32>, vector<1x1x128xf32> -> vector<1x16x128xf32>
    %439 = vector.broadcast %10 : vector<1x1x128xf32> to vector<1x16x128xf32>
    %440 = arith.mulf %436, %439 : vector<1x16x128xf32>
    %441 = arith.addf %432, %440 : vector<1x16x128xf32>
    %442 = vector.broadcast %11 : vector<1x1x128xf32> to vector<1x16x128xf32>
    %443 = arith.mulf %434, %442 : vector<1x16x128xf32>
    %444 = arith.addf %441, %443 : vector<1x16x128xf32>
    %445 = vector.broadcast %12 : vector<1x1x128xf32> to vector<1x16x128xf32>
    %446 = arith.mulf %438, %445 : vector<1x16x128xf32>
    %447 = arith.addf %444, %446 : vector<1x16x128xf32>
    %cst_110 = arith.constant 5.000000e-01 : f32
    %448 = vector.broadcast %cst_110 : f32 to vector<1x16x128xf32>
    %449 = arith.mulf %448, %447 : vector<1x16x128xf32>
    %cst_111 = arith.constant 0.707106769 : f32
    %450 = vector.broadcast %cst_111 : f32 to vector<1x16x128xf32>
    %451 = arith.mulf %447, %450 : vector<1x16x128xf32>
    %452 = math.erf %451 : vector<1x16x128xf32>
    %cst_112 = arith.constant 1.000000e+00 : f32
    %453 = vector.broadcast %cst_112 : f32 to vector<1x16x128xf32>
    %454 = arith.addf %453, %452 : vector<1x16x128xf32>
    %455 = arith.mulf %449, %454 : vector<1x16x128xf32>
    %456 = arith.truncf %455 : vector<1x16x128xf32> to vector<1x16x128xbf16>
    %c0_113 = arith.constant 0 : index
    %c8_114 = arith.constant 8 : index
    %c0_115 = arith.constant 0 : index
    %c0_116 = arith.constant 0 : index
    %457 = vector.load %arg4[%c0_113, %c8_114, %c0_115, %c0_116] : memref<1x16x16x128xbf16, #tpu.memory_space<vmem>>, vector<1x1x16x128xbf16>
    %458 = vector.shape_cast %457 : vector<1x1x16x128xbf16> to vector<1x16x128xbf16>
    %459 = vector.shape_cast %456 : vector<1x16x128xbf16> to vector<1x1x16x128xbf16>
    tpu.vector_store %arg4[%c0_113, %c8_114, %c0_115, %c0_116], %459 {strides = array<i32>} : memref<1x16x16x128xbf16, #tpu.memory_space<vmem>>, vector<1x1x16x128xbf16>,
    %cst_117 = arith.constant dense<0.000000e+00> : vector<1x128xf32>
    %460 = vector.multi_reduction <add>, %455, %cst_117 [1] : vector<1x16x128xf32> to vector<1x128xf32>
    %461 = arith.addf %411, %460 : vector<1x128xf32>
    %462 = arith.mulf %455, %455 : vector<1x16x128xf32>
    %cst_118 = arith.constant dense<0.000000e+00> : vector<1x128xf32>
    %463 = vector.multi_reduction <add>, %462, %cst_118 [1] : vector<1x16x128xf32> to vector<1x128xf32>
    %464 = arith.addf %414, %463 : vector<1x128xf32>
    %465 = vector.broadcast %4 : vector<1x1x128xf32> to vector<1x16x128xf32>
    %466 = arith.mulf %386, %465 : vector<1x16x128xf32>
    %467 = arith.addf %16, %466 : vector<1x16x128xf32>
    %468 = vector.broadcast %5 : vector<1x1x128xf32> to vector<1x16x128xf32>
    %469 = arith.mulf %384, %468 : vector<1x16x128xf32>
    %470 = arith.addf %467, %469 : vector<1x16x128xf32>
    %471 = vector.broadcast %6 : vector<1x1x128xf32> to vector<1x16x128xf32>
    %472 = arith.mulf %388, %471 : vector<1x16x128xf32>
    %473 = arith.addf %470, %472 : vector<1x16x128xf32>
    %474 = vector.broadcast %7 : vector<1x1x128xf32> to vector<1x16x128xf32>
    %475 = arith.mulf %436, %474 : vector<1x16x128xf32>
    %476 = arith.addf %473, %475 : vector<1x16x128xf32>
    %477 = vector.broadcast %8 : vector<1x1x128xf32> to vector<1x16x128xf32>
    %478 = arith.mulf %434, %477 : vector<1x16x128xf32>
    %479 = arith.addf %476, %478 : vector<1x16x128xf32>
    %480 = vector.broadcast %9 : vector<1x1x128xf32> to vector<1x16x128xf32>
    %481 = arith.mulf %438, %480 : vector<1x16x128xf32>
    %482 = arith.addf %479, %481 : vector<1x16x128xf32>
    %c0_119 = arith.constant 0 : index
    %c10 = arith.constant 10 : index
    %c0_120 = arith.constant 0 : index
    %c0_121 = arith.constant 0 : index
    %483 = vector.load %arg1[%c0_119, %c10, %c0_120, %c0_121] : memref<1x16x16x128xf32, #tpu.memory_space<vmem>>, vector<1x1x16x128xf32>
    %484 = vector.shape_cast %483 : vector<1x1x16x128xf32> to vector<1x16x128xf32>
    %485 = vector.extract_strided_slice %484 {offsets = [0, 0, 0], sizes = [1, 15, 128], strides = [1, 1, 1]} : vector<1x16x128xf32> to vector<1x15x128xf32>
    %486 = tpu.concatenate %17, %485 in 1 : vector<1x1x128xf32>, vector<1x15x128xf32> -> vector<1x16x128xf32>
    %487 = vector.extract_strided_slice %484 {offsets = [0, 1, 0], sizes = [1, 15, 128], strides = [1, 1, 1]} : vector<1x16x128xf32> to vector<1x15x128xf32>
    %488 = tpu.concatenate %487, %17 in 1 : vector<1x15x128xf32>, vector<1x1x128xf32> -> vector<1x16x128xf32>
    %489 = vector.broadcast %10 : vector<1x1x128xf32> to vector<1x16x128xf32>
    %490 = arith.mulf %486, %489 : vector<1x16x128xf32>
    %491 = arith.addf %482, %490 : vector<1x16x128xf32>
    %492 = vector.broadcast %11 : vector<1x1x128xf32> to vector<1x16x128xf32>
    %493 = arith.mulf %484, %492 : vector<1x16x128xf32>
    %494 = arith.addf %491, %493 : vector<1x16x128xf32>
    %495 = vector.broadcast %12 : vector<1x1x128xf32> to vector<1x16x128xf32>
    %496 = arith.mulf %488, %495 : vector<1x16x128xf32>
    %497 = arith.addf %494, %496 : vector<1x16x128xf32>
    %cst_122 = arith.constant 5.000000e-01 : f32
    %498 = vector.broadcast %cst_122 : f32 to vector<1x16x128xf32>
    %499 = arith.mulf %498, %497 : vector<1x16x128xf32>
    %cst_123 = arith.constant 0.707106769 : f32
    %500 = vector.broadcast %cst_123 : f32 to vector<1x16x128xf32>
    %501 = arith.mulf %497, %500 : vector<1x16x128xf32>
    %502 = math.erf %501 : vector<1x16x128xf32>
    %cst_124 = arith.constant 1.000000e+00 : f32
    %503 = vector.broadcast %cst_124 : f32 to vector<1x16x128xf32>
    %504 = arith.addf %503, %502 : vector<1x16x128xf32>
    %505 = arith.mulf %499, %504 : vector<1x16x128xf32>
    %506 = arith.truncf %505 : vector<1x16x128xf32> to vector<1x16x128xbf16>
    %c0_125 = arith.constant 0 : index
    %c9_126 = arith.constant 9 : index
    %c0_127 = arith.constant 0 : index
    %c0_128 = arith.constant 0 : index
    %507 = vector.load %arg4[%c0_125, %c9_126, %c0_127, %c0_128] : memref<1x16x16x128xbf16, #tpu.memory_space<vmem>>, vector<1x1x16x128xbf16>
    %508 = vector.shape_cast %507 : vector<1x1x16x128xbf16> to vector<1x16x128xbf16>
    %509 = vector.shape_cast %506 : vector<1x16x128xbf16> to vector<1x1x16x128xbf16>
    tpu.vector_store %arg4[%c0_125, %c9_126, %c0_127, %c0_128], %509 {strides = array<i32>} : memref<1x16x16x128xbf16, #tpu.memory_space<vmem>>, vector<1x1x16x128xbf16>,
    %cst_129 = arith.constant dense<0.000000e+00> : vector<1x128xf32>
    %510 = vector.multi_reduction <add>, %505, %cst_129 [1] : vector<1x16x128xf32> to vector<1x128xf32>
    %511 = arith.addf %461, %510 : vector<1x128xf32>
    %512 = arith.mulf %505, %505 : vector<1x16x128xf32>
    %cst_130 = arith.constant dense<0.000000e+00> : vector<1x128xf32>
    %513 = vector.multi_reduction <add>, %512, %cst_130 [1] : vector<1x16x128xf32> to vector<1x128xf32>
    %514 = arith.addf %464, %513 : vector<1x128xf32>
    %515 = vector.broadcast %4 : vector<1x1x128xf32> to vector<1x16x128xf32>
    %516 = arith.mulf %436, %515 : vector<1x16x128xf32>
    %517 = arith.addf %16, %516 : vector<1x16x128xf32>
    %518 = vector.broadcast %5 : vector<1x1x128xf32> to vector<1x16x128xf32>
    %519 = arith.mulf %434, %518 : vector<1x16x128xf32>
    %520 = arith.addf %517, %519 : vector<1x16x128xf32>
    %521 = vector.broadcast %6 : vector<1x1x128xf32> to vector<1x16x128xf32>
    %522 = arith.mulf %438, %521 : vector<1x16x128xf32>
    %523 = arith.addf %520, %522 : vector<1x16x128xf32>
    %524 = vector.broadcast %7 : vector<1x1x128xf32> to vector<1x16x128xf32>
    %525 = arith.mulf %486, %524 : vector<1x16x128xf32>
    %526 = arith.addf %523, %525 : vector<1x16x128xf32>
    %527 = vector.broadcast %8 : vector<1x1x128xf32> to vector<1x16x128xf32>
    %528 = arith.mulf %484, %527 : vector<1x16x128xf32>
    %529 = arith.addf %526, %528 : vector<1x16x128xf32>
    %530 = vector.broadcast %9 : vector<1x1x128xf32> to vector<1x16x128xf32>
    %531 = arith.mulf %488, %530 : vector<1x16x128xf32>
    %532 = arith.addf %529, %531 : vector<1x16x128xf32>
    %c0_131 = arith.constant 0 : index
    %c11 = arith.constant 11 : index
    %c0_132 = arith.constant 0 : index
    %c0_133 = arith.constant 0 : index
    %533 = vector.load %arg1[%c0_131, %c11, %c0_132, %c0_133] : memref<1x16x16x128xf32, #tpu.memory_space<vmem>>, vector<1x1x16x128xf32>
    %534 = vector.shape_cast %533 : vector<1x1x16x128xf32> to vector<1x16x128xf32>
    %535 = vector.extract_strided_slice %534 {offsets = [0, 0, 0], sizes = [1, 15, 128], strides = [1, 1, 1]} : vector<1x16x128xf32> to vector<1x15x128xf32>
    %536 = tpu.concatenate %17, %535 in 1 : vector<1x1x128xf32>, vector<1x15x128xf32> -> vector<1x16x128xf32>
    %537 = vector.extract_strided_slice %534 {offsets = [0, 1, 0], sizes = [1, 15, 128], strides = [1, 1, 1]} : vector<1x16x128xf32> to vector<1x15x128xf32>
    %538 = tpu.concatenate %537, %17 in 1 : vector<1x15x128xf32>, vector<1x1x128xf32> -> vector<1x16x128xf32>
    %539 = vector.broadcast %10 : vector<1x1x128xf32> to vector<1x16x128xf32>
    %540 = arith.mulf %536, %539 : vector<1x16x128xf32>
    %541 = arith.addf %532, %540 : vector<1x16x128xf32>
    %542 = vector.broadcast %11 : vector<1x1x128xf32> to vector<1x16x128xf32>
    %543 = arith.mulf %534, %542 : vector<1x16x128xf32>
    %544 = arith.addf %541, %543 : vector<1x16x128xf32>
    %545 = vector.broadcast %12 : vector<1x1x128xf32> to vector<1x16x128xf32>
    %546 = arith.mulf %538, %545 : vector<1x16x128xf32>
    %547 = arith.addf %544, %546 : vector<1x16x128xf32>
    %cst_134 = arith.constant 5.000000e-01 : f32
    %548 = vector.broadcast %cst_134 : f32 to vector<1x16x128xf32>
    %549 = arith.mulf %548, %547 : vector<1x16x128xf32>
    %cst_135 = arith.constant 0.707106769 : f32
    %550 = vector.broadcast %cst_135 : f32 to vector<1x16x128xf32>
    %551 = arith.mulf %547, %550 : vector<1x16x128xf32>
    %552 = math.erf %551 : vector<1x16x128xf32>
    %cst_136 = arith.constant 1.000000e+00 : f32
    %553 = vector.broadcast %cst_136 : f32 to vector<1x16x128xf32>
    %554 = arith.addf %553, %552 : vector<1x16x128xf32>
    %555 = arith.mulf %549, %554 : vector<1x16x128xf32>
    %556 = arith.truncf %555 : vector<1x16x128xf32> to vector<1x16x128xbf16>
    %c0_137 = arith.constant 0 : index
    %c10_138 = arith.constant 10 : index
    %c0_139 = arith.constant 0 : index
    %c0_140 = arith.constant 0 : index
    %557 = vector.load %arg4[%c0_137, %c10_138, %c0_139, %c0_140] : memref<1x16x16x128xbf16, #tpu.memory_space<vmem>>, vector<1x1x16x128xbf16>
    %558 = vector.shape_cast %557 : vector<1x1x16x128xbf16> to vector<1x16x128xbf16>
    %559 = vector.shape_cast %556 : vector<1x16x128xbf16> to vector<1x1x16x128xbf16>
    tpu.vector_store %arg4[%c0_137, %c10_138, %c0_139, %c0_140], %559 {strides = array<i32>} : memref<1x16x16x128xbf16, #tpu.memory_space<vmem>>, vector<1x1x16x128xbf16>,
    %cst_141 = arith.constant dense<0.000000e+00> : vector<1x128xf32>
    %560 = vector.multi_reduction <add>, %555, %cst_141 [1] : vector<1x16x128xf32> to vector<1x128xf32>
    %561 = arith.addf %511, %560 : vector<1x128xf32>
    %562 = arith.mulf %555, %555 : vector<1x16x128xf32>
    %cst_142 = arith.constant dense<0.000000e+00> : vector<1x128xf32>
    %563 = vector.multi_reduction <add>, %562, %cst_142 [1] : vector<1x16x128xf32> to vector<1x128xf32>
    %564 = arith.addf %514, %563 : vector<1x128xf32>
    %565 = vector.broadcast %4 : vector<1x1x128xf32> to vector<1x16x128xf32>
    %566 = arith.mulf %486, %565 : vector<1x16x128xf32>
    %567 = arith.addf %16, %566 : vector<1x16x128xf32>
    %568 = vector.broadcast %5 : vector<1x1x128xf32> to vector<1x16x128xf32>
    %569 = arith.mulf %484, %568 : vector<1x16x128xf32>
    %570 = arith.addf %567, %569 : vector<1x16x128xf32>
    %571 = vector.broadcast %6 : vector<1x1x128xf32> to vector<1x16x128xf32>
    %572 = arith.mulf %488, %571 : vector<1x16x128xf32>
    %573 = arith.addf %570, %572 : vector<1x16x128xf32>
    %574 = vector.broadcast %7 : vector<1x1x128xf32> to vector<1x16x128xf32>
    %575 = arith.mulf %536, %574 : vector<1x16x128xf32>
    %576 = arith.addf %573, %575 : vector<1x16x128xf32>
    %577 = vector.broadcast %8 : vector<1x1x128xf32> to vector<1x16x128xf32>
    %578 = arith.mulf %534, %577 : vector<1x16x128xf32>
    %579 = arith.addf %576, %578 : vector<1x16x128xf32>
    %580 = vector.broadcast %9 : vector<1x1x128xf32> to vector<1x16x128xf32>
    %581 = arith.mulf %538, %580 : vector<1x16x128xf32>
    %582 = arith.addf %579, %581 : vector<1x16x128xf32>
    %c0_143 = arith.constant 0 : index
    %c12 = arith.constant 12 : index
    %c0_144 = arith.constant 0 : index
    %c0_145 = arith.constant 0 : index
    %583 = vector.load %arg1[%c0_143, %c12, %c0_144, %c0_145] : memref<1x16x16x128xf32, #tpu.memory_space<vmem>>, vector<1x1x16x128xf32>
    %584 = vector.shape_cast %583 : vector<1x1x16x128xf32> to vector<1x16x128xf32>
    %585 = vector.extract_strided_slice %584 {offsets = [0, 0, 0], sizes = [1, 15, 128], strides = [1, 1, 1]} : vector<1x16x128xf32> to vector<1x15x128xf32>
    %586 = tpu.concatenate %17, %585 in 1 : vector<1x1x128xf32>, vector<1x15x128xf32> -> vector<1x16x128xf32>
    %587 = vector.extract_strided_slice %584 {offsets = [0, 1, 0], sizes = [1, 15, 128], strides = [1, 1, 1]} : vector<1x16x128xf32> to vector<1x15x128xf32>
    %588 = tpu.concatenate %587, %17 in 1 : vector<1x15x128xf32>, vector<1x1x128xf32> -> vector<1x16x128xf32>
    %589 = vector.broadcast %10 : vector<1x1x128xf32> to vector<1x16x128xf32>
    %590 = arith.mulf %586, %589 : vector<1x16x128xf32>
    %591 = arith.addf %582, %590 : vector<1x16x128xf32>
    %592 = vector.broadcast %11 : vector<1x1x128xf32> to vector<1x16x128xf32>
    %593 = arith.mulf %584, %592 : vector<1x16x128xf32>
    %594 = arith.addf %591, %593 : vector<1x16x128xf32>
    %595 = vector.broadcast %12 : vector<1x1x128xf32> to vector<1x16x128xf32>
    %596 = arith.mulf %588, %595 : vector<1x16x128xf32>
    %597 = arith.addf %594, %596 : vector<1x16x128xf32>
    %cst_146 = arith.constant 5.000000e-01 : f32
    %598 = vector.broadcast %cst_146 : f32 to vector<1x16x128xf32>
    %599 = arith.mulf %598, %597 : vector<1x16x128xf32>
    %cst_147 = arith.constant 0.707106769 : f32
    %600 = vector.broadcast %cst_147 : f32 to vector<1x16x128xf32>
    %601 = arith.mulf %597, %600 : vector<1x16x128xf32>
    %602 = math.erf %601 : vector<1x16x128xf32>
    %cst_148 = arith.constant 1.000000e+00 : f32
    %603 = vector.broadcast %cst_148 : f32 to vector<1x16x128xf32>
    %604 = arith.addf %603, %602 : vector<1x16x128xf32>
    %605 = arith.mulf %599, %604 : vector<1x16x128xf32>
    %606 = arith.truncf %605 : vector<1x16x128xf32> to vector<1x16x128xbf16>
    %c0_149 = arith.constant 0 : index
    %c11_150 = arith.constant 11 : index
    %c0_151 = arith.constant 0 : index
    %c0_152 = arith.constant 0 : index
    %607 = vector.load %arg4[%c0_149, %c11_150, %c0_151, %c0_152] : memref<1x16x16x128xbf16, #tpu.memory_space<vmem>>, vector<1x1x16x128xbf16>
    %608 = vector.shape_cast %607 : vector<1x1x16x128xbf16> to vector<1x16x128xbf16>
    %609 = vector.shape_cast %606 : vector<1x16x128xbf16> to vector<1x1x16x128xbf16>
    tpu.vector_store %arg4[%c0_149, %c11_150, %c0_151, %c0_152], %609 {strides = array<i32>} : memref<1x16x16x128xbf16, #tpu.memory_space<vmem>>, vector<1x1x16x128xbf16>,
    %cst_153 = arith.constant dense<0.000000e+00> : vector<1x128xf32>
    %610 = vector.multi_reduction <add>, %605, %cst_153 [1] : vector<1x16x128xf32> to vector<1x128xf32>
    %611 = arith.addf %561, %610 : vector<1x128xf32>
    %612 = arith.mulf %605, %605 : vector<1x16x128xf32>
    %cst_154 = arith.constant dense<0.000000e+00> : vector<1x128xf32>
    %613 = vector.multi_reduction <add>, %612, %cst_154 [1] : vector<1x16x128xf32> to vector<1x128xf32>
    %614 = arith.addf %564, %613 : vector<1x128xf32>
    %615 = vector.broadcast %4 : vector<1x1x128xf32> to vector<1x16x128xf32>
    %616 = arith.mulf %536, %615 : vector<1x16x128xf32>
    %617 = arith.addf %16, %616 : vector<1x16x128xf32>
    %618 = vector.broadcast %5 : vector<1x1x128xf32> to vector<1x16x128xf32>
    %619 = arith.mulf %534, %618 : vector<1x16x128xf32>
    %620 = arith.addf %617, %619 : vector<1x16x128xf32>
    %621 = vector.broadcast %6 : vector<1x1x128xf32> to vector<1x16x128xf32>
    %622 = arith.mulf %538, %621 : vector<1x16x128xf32>
    %623 = arith.addf %620, %622 : vector<1x16x128xf32>
    %624 = vector.broadcast %7 : vector<1x1x128xf32> to vector<1x16x128xf32>
    %625 = arith.mulf %586, %624 : vector<1x16x128xf32>
    %626 = arith.addf %623, %625 : vector<1x16x128xf32>
    %627 = vector.broadcast %8 : vector<1x1x128xf32> to vector<1x16x128xf32>
    %628 = arith.mulf %584, %627 : vector<1x16x128xf32>
    %629 = arith.addf %626, %628 : vector<1x16x128xf32>
    %630 = vector.broadcast %9 : vector<1x1x128xf32> to vector<1x16x128xf32>
    %631 = arith.mulf %588, %630 : vector<1x16x128xf32>
    %632 = arith.addf %629, %631 : vector<1x16x128xf32>
    %c0_155 = arith.constant 0 : index
    %c13 = arith.constant 13 : index
    %c0_156 = arith.constant 0 : index
    %c0_157 = arith.constant 0 : index
    %633 = vector.load %arg1[%c0_155, %c13, %c0_156, %c0_157] : memref<1x16x16x128xf32, #tpu.memory_space<vmem>>, vector<1x1x16x128xf32>
    %634 = vector.shape_cast %633 : vector<1x1x16x128xf32> to vector<1x16x128xf32>
    %635 = vector.extract_strided_slice %634 {offsets = [0, 0, 0], sizes = [1, 15, 128], strides = [1, 1, 1]} : vector<1x16x128xf32> to vector<1x15x128xf32>
    %636 = tpu.concatenate %17, %635 in 1 : vector<1x1x128xf32>, vector<1x15x128xf32> -> vector<1x16x128xf32>
    %637 = vector.extract_strided_slice %634 {offsets = [0, 1, 0], sizes = [1, 15, 128], strides = [1, 1, 1]} : vector<1x16x128xf32> to vector<1x15x128xf32>
    %638 = tpu.concatenate %637, %17 in 1 : vector<1x15x128xf32>, vector<1x1x128xf32> -> vector<1x16x128xf32>
    %639 = vector.broadcast %10 : vector<1x1x128xf32> to vector<1x16x128xf32>
    %640 = arith.mulf %636, %639 : vector<1x16x128xf32>
    %641 = arith.addf %632, %640 : vector<1x16x128xf32>
    %642 = vector.broadcast %11 : vector<1x1x128xf32> to vector<1x16x128xf32>
    %643 = arith.mulf %634, %642 : vector<1x16x128xf32>
    %644 = arith.addf %641, %643 : vector<1x16x128xf32>
    %645 = vector.broadcast %12 : vector<1x1x128xf32> to vector<1x16x128xf32>
    %646 = arith.mulf %638, %645 : vector<1x16x128xf32>
    %647 = arith.addf %644, %646 : vector<1x16x128xf32>
    %cst_158 = arith.constant 5.000000e-01 : f32
    %648 = vector.broadcast %cst_158 : f32 to vector<1x16x128xf32>
    %649 = arith.mulf %648, %647 : vector<1x16x128xf32>
    %cst_159 = arith.constant 0.707106769 : f32
    %650 = vector.broadcast %cst_159 : f32 to vector<1x16x128xf32>
    %651 = arith.mulf %647, %650 : vector<1x16x128xf32>
    %652 = math.erf %651 : vector<1x16x128xf32>
    %cst_160 = arith.constant 1.000000e+00 : f32
    %653 = vector.broadcast %cst_160 : f32 to vector<1x16x128xf32>
    %654 = arith.addf %653, %652 : vector<1x16x128xf32>
    %655 = arith.mulf %649, %654 : vector<1x16x128xf32>
    %656 = arith.truncf %655 : vector<1x16x128xf32> to vector<1x16x128xbf16>
    %c0_161 = arith.constant 0 : index
    %c12_162 = arith.constant 12 : index
    %c0_163 = arith.constant 0 : index
    %c0_164 = arith.constant 0 : index
    %657 = vector.load %arg4[%c0_161, %c12_162, %c0_163, %c0_164] : memref<1x16x16x128xbf16, #tpu.memory_space<vmem>>, vector<1x1x16x128xbf16>
    %658 = vector.shape_cast %657 : vector<1x1x16x128xbf16> to vector<1x16x128xbf16>
    %659 = vector.shape_cast %656 : vector<1x16x128xbf16> to vector<1x1x16x128xbf16>
    tpu.vector_store %arg4[%c0_161, %c12_162, %c0_163, %c0_164], %659 {strides = array<i32>} : memref<1x16x16x128xbf16, #tpu.memory_space<vmem>>, vector<1x1x16x128xbf16>,
    %cst_165 = arith.constant dense<0.000000e+00> : vector<1x128xf32>
    %660 = vector.multi_reduction <add>, %655, %cst_165 [1] : vector<1x16x128xf32> to vector<1x128xf32>
    %661 = arith.addf %611, %660 : vector<1x128xf32>
    %662 = arith.mulf %655, %655 : vector<1x16x128xf32>
    %cst_166 = arith.constant dense<0.000000e+00> : vector<1x128xf32>
    %663 = vector.multi_reduction <add>, %662, %cst_166 [1] : vector<1x16x128xf32> to vector<1x128xf32>
    %664 = arith.addf %614, %663 : vector<1x128xf32>
    %665 = vector.broadcast %4 : vector<1x1x128xf32> to vector<1x16x128xf32>
    %666 = arith.mulf %586, %665 : vector<1x16x128xf32>
    %667 = arith.addf %16, %666 : vector<1x16x128xf32>
    %668 = vector.broadcast %5 : vector<1x1x128xf32> to vector<1x16x128xf32>
    %669 = arith.mulf %584, %668 : vector<1x16x128xf32>
    %670 = arith.addf %667, %669 : vector<1x16x128xf32>
    %671 = vector.broadcast %6 : vector<1x1x128xf32> to vector<1x16x128xf32>
    %672 = arith.mulf %588, %671 : vector<1x16x128xf32>
    %673 = arith.addf %670, %672 : vector<1x16x128xf32>
    %674 = vector.broadcast %7 : vector<1x1x128xf32> to vector<1x16x128xf32>
    %675 = arith.mulf %636, %674 : vector<1x16x128xf32>
    %676 = arith.addf %673, %675 : vector<1x16x128xf32>
    %677 = vector.broadcast %8 : vector<1x1x128xf32> to vector<1x16x128xf32>
    %678 = arith.mulf %634, %677 : vector<1x16x128xf32>
    %679 = arith.addf %676, %678 : vector<1x16x128xf32>
    %680 = vector.broadcast %9 : vector<1x1x128xf32> to vector<1x16x128xf32>
    %681 = arith.mulf %638, %680 : vector<1x16x128xf32>
    %682 = arith.addf %679, %681 : vector<1x16x128xf32>
    %c0_167 = arith.constant 0 : index
    %c14 = arith.constant 14 : index
    %c0_168 = arith.constant 0 : index
    %c0_169 = arith.constant 0 : index
    %683 = vector.load %arg1[%c0_167, %c14, %c0_168, %c0_169] : memref<1x16x16x128xf32, #tpu.memory_space<vmem>>, vector<1x1x16x128xf32>
    %684 = vector.shape_cast %683 : vector<1x1x16x128xf32> to vector<1x16x128xf32>
    %685 = vector.extract_strided_slice %684 {offsets = [0, 0, 0], sizes = [1, 15, 128], strides = [1, 1, 1]} : vector<1x16x128xf32> to vector<1x15x128xf32>
    %686 = tpu.concatenate %17, %685 in 1 : vector<1x1x128xf32>, vector<1x15x128xf32> -> vector<1x16x128xf32>
    %687 = vector.extract_strided_slice %684 {offsets = [0, 1, 0], sizes = [1, 15, 128], strides = [1, 1, 1]} : vector<1x16x128xf32> to vector<1x15x128xf32>
    %688 = tpu.concatenate %687, %17 in 1 : vector<1x15x128xf32>, vector<1x1x128xf32> -> vector<1x16x128xf32>
    %689 = vector.broadcast %10 : vector<1x1x128xf32> to vector<1x16x128xf32>
    %690 = arith.mulf %686, %689 : vector<1x16x128xf32>
    %691 = arith.addf %682, %690 : vector<1x16x128xf32>
    %692 = vector.broadcast %11 : vector<1x1x128xf32> to vector<1x16x128xf32>
    %693 = arith.mulf %684, %692 : vector<1x16x128xf32>
    %694 = arith.addf %691, %693 : vector<1x16x128xf32>
    %695 = vector.broadcast %12 : vector<1x1x128xf32> to vector<1x16x128xf32>
    %696 = arith.mulf %688, %695 : vector<1x16x128xf32>
    %697 = arith.addf %694, %696 : vector<1x16x128xf32>
    %cst_170 = arith.constant 5.000000e-01 : f32
    %698 = vector.broadcast %cst_170 : f32 to vector<1x16x128xf32>
    %699 = arith.mulf %698, %697 : vector<1x16x128xf32>
    %cst_171 = arith.constant 0.707106769 : f32
    %700 = vector.broadcast %cst_171 : f32 to vector<1x16x128xf32>
    %701 = arith.mulf %697, %700 : vector<1x16x128xf32>
    %702 = math.erf %701 : vector<1x16x128xf32>
    %cst_172 = arith.constant 1.000000e+00 : f32
    %703 = vector.broadcast %cst_172 : f32 to vector<1x16x128xf32>
    %704 = arith.addf %703, %702 : vector<1x16x128xf32>
    %705 = arith.mulf %699, %704 : vector<1x16x128xf32>
    %706 = arith.truncf %705 : vector<1x16x128xf32> to vector<1x16x128xbf16>
    %c0_173 = arith.constant 0 : index
    %c13_174 = arith.constant 13 : index
    %c0_175 = arith.constant 0 : index
    %c0_176 = arith.constant 0 : index
    %707 = vector.load %arg4[%c0_173, %c13_174, %c0_175, %c0_176] : memref<1x16x16x128xbf16, #tpu.memory_space<vmem>>, vector<1x1x16x128xbf16>
    %708 = vector.shape_cast %707 : vector<1x1x16x128xbf16> to vector<1x16x128xbf16>
    %709 = vector.shape_cast %706 : vector<1x16x128xbf16> to vector<1x1x16x128xbf16>
    tpu.vector_store %arg4[%c0_173, %c13_174, %c0_175, %c0_176], %709 {strides = array<i32>} : memref<1x16x16x128xbf16, #tpu.memory_space<vmem>>, vector<1x1x16x128xbf16>,
    %cst_177 = arith.constant dense<0.000000e+00> : vector<1x128xf32>
    %710 = vector.multi_reduction <add>, %705, %cst_177 [1] : vector<1x16x128xf32> to vector<1x128xf32>
    %711 = arith.addf %661, %710 : vector<1x128xf32>
    %712 = arith.mulf %705, %705 : vector<1x16x128xf32>
    %cst_178 = arith.constant dense<0.000000e+00> : vector<1x128xf32>
    %713 = vector.multi_reduction <add>, %712, %cst_178 [1] : vector<1x16x128xf32> to vector<1x128xf32>
    %714 = arith.addf %664, %713 : vector<1x128xf32>
    %715 = vector.broadcast %4 : vector<1x1x128xf32> to vector<1x16x128xf32>
    %716 = arith.mulf %636, %715 : vector<1x16x128xf32>
    %717 = arith.addf %16, %716 : vector<1x16x128xf32>
    %718 = vector.broadcast %5 : vector<1x1x128xf32> to vector<1x16x128xf32>
    %719 = arith.mulf %634, %718 : vector<1x16x128xf32>
    %720 = arith.addf %717, %719 : vector<1x16x128xf32>
    %721 = vector.broadcast %6 : vector<1x1x128xf32> to vector<1x16x128xf32>
    %722 = arith.mulf %638, %721 : vector<1x16x128xf32>
    %723 = arith.addf %720, %722 : vector<1x16x128xf32>
    %724 = vector.broadcast %7 : vector<1x1x128xf32> to vector<1x16x128xf32>
    %725 = arith.mulf %686, %724 : vector<1x16x128xf32>
    %726 = arith.addf %723, %725 : vector<1x16x128xf32>
    %727 = vector.broadcast %8 : vector<1x1x128xf32> to vector<1x16x128xf32>
    %728 = arith.mulf %684, %727 : vector<1x16x128xf32>
    %729 = arith.addf %726, %728 : vector<1x16x128xf32>
    %730 = vector.broadcast %9 : vector<1x1x128xf32> to vector<1x16x128xf32>
    %731 = arith.mulf %688, %730 : vector<1x16x128xf32>
    %732 = arith.addf %729, %731 : vector<1x16x128xf32>
    %c0_179 = arith.constant 0 : index
    %c15 = arith.constant 15 : index
    %c0_180 = arith.constant 0 : index
    %c0_181 = arith.constant 0 : index
    %733 = vector.load %arg1[%c0_179, %c15, %c0_180, %c0_181] : memref<1x16x16x128xf32, #tpu.memory_space<vmem>>, vector<1x1x16x128xf32>
    %734 = vector.shape_cast %733 : vector<1x1x16x128xf32> to vector<1x16x128xf32>
    %735 = vector.extract_strided_slice %734 {offsets = [0, 0, 0], sizes = [1, 15, 128], strides = [1, 1, 1]} : vector<1x16x128xf32> to vector<1x15x128xf32>
    %736 = tpu.concatenate %17, %735 in 1 : vector<1x1x128xf32>, vector<1x15x128xf32> -> vector<1x16x128xf32>
    %737 = vector.extract_strided_slice %734 {offsets = [0, 1, 0], sizes = [1, 15, 128], strides = [1, 1, 1]} : vector<1x16x128xf32> to vector<1x15x128xf32>
    %738 = tpu.concatenate %737, %17 in 1 : vector<1x15x128xf32>, vector<1x1x128xf32> -> vector<1x16x128xf32>
    %739 = vector.broadcast %10 : vector<1x1x128xf32> to vector<1x16x128xf32>
    %740 = arith.mulf %736, %739 : vector<1x16x128xf32>
    %741 = arith.addf %732, %740 : vector<1x16x128xf32>
    %742 = vector.broadcast %11 : vector<1x1x128xf32> to vector<1x16x128xf32>
    %743 = arith.mulf %734, %742 : vector<1x16x128xf32>
    %744 = arith.addf %741, %743 : vector<1x16x128xf32>
    %745 = vector.broadcast %12 : vector<1x1x128xf32> to vector<1x16x128xf32>
    %746 = arith.mulf %738, %745 : vector<1x16x128xf32>
    %747 = arith.addf %744, %746 : vector<1x16x128xf32>
    %cst_182 = arith.constant 5.000000e-01 : f32
    %748 = vector.broadcast %cst_182 : f32 to vector<1x16x128xf32>
    %749 = arith.mulf %748, %747 : vector<1x16x128xf32>
    %cst_183 = arith.constant 0.707106769 : f32
    %750 = vector.broadcast %cst_183 : f32 to vector<1x16x128xf32>
    %751 = arith.mulf %747, %750 : vector<1x16x128xf32>
    %752 = math.erf %751 : vector<1x16x128xf32>
    %cst_184 = arith.constant 1.000000e+00 : f32
    %753 = vector.broadcast %cst_184 : f32 to vector<1x16x128xf32>
    %754 = arith.addf %753, %752 : vector<1x16x128xf32>
    %755 = arith.mulf %749, %754 : vector<1x16x128xf32>
    %756 = arith.truncf %755 : vector<1x16x128xf32> to vector<1x16x128xbf16>
    %c0_185 = arith.constant 0 : index
    %c14_186 = arith.constant 14 : index
    %c0_187 = arith.constant 0 : index
    %c0_188 = arith.constant 0 : index
    %757 = vector.load %arg4[%c0_185, %c14_186, %c0_187, %c0_188] : memref<1x16x16x128xbf16, #tpu.memory_space<vmem>>, vector<1x1x16x128xbf16>
    %758 = vector.shape_cast %757 : vector<1x1x16x128xbf16> to vector<1x16x128xbf16>
    %759 = vector.shape_cast %756 : vector<1x16x128xbf16> to vector<1x1x16x128xbf16>
    tpu.vector_store %arg4[%c0_185, %c14_186, %c0_187, %c0_188], %759 {strides = array<i32>} : memref<1x16x16x128xbf16, #tpu.memory_space<vmem>>, vector<1x1x16x128xbf16>,
    %cst_189 = arith.constant dense<0.000000e+00> : vector<1x128xf32>
    %760 = vector.multi_reduction <add>, %755, %cst_189 [1] : vector<1x16x128xf32> to vector<1x128xf32>
    %761 = arith.addf %711, %760 : vector<1x128xf32>
    %762 = arith.mulf %755, %755 : vector<1x16x128xf32>
    %cst_190 = arith.constant dense<0.000000e+00> : vector<1x128xf32>
    %763 = vector.multi_reduction <add>, %762, %cst_190 [1] : vector<1x16x128xf32> to vector<1x128xf32>
    %764 = arith.addf %714, %763 : vector<1x128xf32>
    %765 = vector.broadcast %4 : vector<1x1x128xf32> to vector<1x16x128xf32>
    %766 = arith.mulf %686, %765 : vector<1x16x128xf32>
    %767 = arith.addf %16, %766 : vector<1x16x128xf32>
    %768 = vector.broadcast %5 : vector<1x1x128xf32> to vector<1x16x128xf32>
    %769 = arith.mulf %684, %768 : vector<1x16x128xf32>
    %770 = arith.addf %767, %769 : vector<1x16x128xf32>
    %771 = vector.broadcast %6 : vector<1x1x128xf32> to vector<1x16x128xf32>
    %772 = arith.mulf %688, %771 : vector<1x16x128xf32>
    %773 = arith.addf %770, %772 : vector<1x16x128xf32>
    %774 = vector.broadcast %7 : vector<1x1x128xf32> to vector<1x16x128xf32>
    %775 = arith.mulf %736, %774 : vector<1x16x128xf32>
    %776 = arith.addf %773, %775 : vector<1x16x128xf32>
    %777 = vector.broadcast %8 : vector<1x1x128xf32> to vector<1x16x128xf32>
    %778 = arith.mulf %734, %777 : vector<1x16x128xf32>
    %779 = arith.addf %776, %778 : vector<1x16x128xf32>
    %780 = vector.broadcast %9 : vector<1x1x128xf32> to vector<1x16x128xf32>
    %781 = arith.mulf %738, %780 : vector<1x16x128xf32>
    %782 = arith.addf %779, %781 : vector<1x16x128xf32>
    %cst_191 = arith.constant 5.000000e-01 : f32
    %783 = vector.broadcast %cst_191 : f32 to vector<1x16x128xf32>
    %784 = arith.mulf %783, %782 : vector<1x16x128xf32>
    %cst_192 = arith.constant 0.707106769 : f32
    %785 = vector.broadcast %cst_192 : f32 to vector<1x16x128xf32>
    %786 = arith.mulf %782, %785 : vector<1x16x128xf32>
    %787 = math.erf %786 : vector<1x16x128xf32>
    %cst_193 = arith.constant 1.000000e+00 : f32
    %788 = vector.broadcast %cst_193 : f32 to vector<1x16x128xf32>
    %789 = arith.addf %788, %787 : vector<1x16x128xf32>
    %790 = arith.mulf %784, %789 : vector<1x16x128xf32>
    %791 = arith.truncf %790 : vector<1x16x128xf32> to vector<1x16x128xbf16>
    %c0_194 = arith.constant 0 : index
    %c15_195 = arith.constant 15 : index
    %c0_196 = arith.constant 0 : index
    %c0_197 = arith.constant 0 : index
    %792 = vector.load %arg4[%c0_194, %c15_195, %c0_196, %c0_197] : memref<1x16x16x128xbf16, #tpu.memory_space<vmem>>, vector<1x1x16x128xbf16>
    %793 = vector.shape_cast %792 : vector<1x1x16x128xbf16> to vector<1x16x128xbf16>
    %794 = vector.shape_cast %791 : vector<1x16x128xbf16> to vector<1x1x16x128xbf16>
    tpu.vector_store %arg4[%c0_194, %c15_195, %c0_196, %c0_197], %794 {strides = array<i32>} : memref<1x16x16x128xbf16, #tpu.memory_space<vmem>>, vector<1x1x16x128xbf16>,
    %cst_198 = arith.constant dense<0.000000e+00> : vector<1x128xf32>
    %795 = vector.multi_reduction <add>, %790, %cst_198 [1] : vector<1x16x128xf32> to vector<1x128xf32>
    %796 = arith.addf %761, %795 : vector<1x128xf32>
    %797 = arith.mulf %790, %790 : vector<1x16x128xf32>
    %cst_199 = arith.constant dense<0.000000e+00> : vector<1x128xf32>
    %798 = vector.multi_reduction <add>, %797, %cst_199 [1] : vector<1x16x128xf32> to vector<1x128xf32>
    %799 = arith.addf %764, %798 : vector<1x128xf32>
    %c0_200 = arith.constant 0 : index
    %c0_201 = arith.constant 0 : index
    %c0_202 = arith.constant 0 : index
    %800 = vector.load %arg5[%c0_200, %c0_201, %c0_202] : memref<1x2x128xf32, #tpu.memory_space<vmem>>, vector<1x1x128xf32>
    %801 = vector.shape_cast %800 : vector<1x1x128xf32> to vector<1x128xf32>
    %802 = vector.shape_cast %796 : vector<1x128xf32> to vector<1x1x128xf32>
    tpu.vector_store %arg5[%c0_200, %c0_201, %c0_202], %802 {strides = array<i32>} : memref<1x2x128xf32, #tpu.memory_space<vmem>>, vector<1x1x128xf32>,
    %c0_203 = arith.constant 0 : index
    %c1_204 = arith.constant 1 : index
    %c0_205 = arith.constant 0 : index
    %803 = vector.load %arg5[%c0_203, %c1_204, %c0_205] : memref<1x2x128xf32, #tpu.memory_space<vmem>>, vector<1x1x128xf32>
    %804 = vector.shape_cast %803 : vector<1x1x128xf32> to vector<1x128xf32>
    %805 = vector.shape_cast %799 : vector<1x128xf32> to vector<1x1x128xf32>
    tpu.vector_store %arg5[%c0_203, %c1_204, %c0_205], %805 {strides = array<i32>} : memref<1x2x128xf32, #tpu.memory_space<vmem>>, vector<1x1x128xf32>,
    return
  }
  func.func @transform_0(%arg0: i32) -> (i32, i32, i32, i32) {
    %c0_i32 = arith.constant 0 : i32
    %c0_i32_0 = arith.constant 0 : i32
    %c0_i32_1 = arith.constant 0 : i32
    %c0_i32_2 = arith.constant 0 : i32
    return %arg0, %c0_i32, %c0_i32_0, %c0_i32_1 : i32, i32, i32, i32
  }
  func.func @transform_1(%arg0: i32) -> (i32, i32, i32) {
    %c0_i32 = arith.constant 0 : i32
    %c0_i32_0 = arith.constant 0 : i32
    %c0_i32_1 = arith.constant 0 : i32
    %c0_i32_2 = arith.constant 0 : i32
    return %c0_i32, %c0_i32_0, %c0_i32_1 : i32, i32, i32
  }
  func.func @transform_2(%arg0: i32) -> (i32, i32) {
    %c0_i32 = arith.constant 0 : i32
    %c0_i32_0 = arith.constant 0 : i32
    %c0_i32_1 = arith.constant 0 : i32
    return %c0_i32, %c0_i32_0 : i32, i32
  }
  func.func @transform_3(%arg0: i32) -> (i32, i32, i32, i32) {
    %c0_i32 = arith.constant 0 : i32
    %c0_i32_0 = arith.constant 0 : i32
    %c0_i32_1 = arith.constant 0 : i32
    %c0_i32_2 = arith.constant 0 : i32
    return %arg0, %c0_i32, %c0_i32_0, %c0_i32_1 : i32, i32, i32, i32
  }
  func.func @transform_4(%arg0: i32) -> (i32, i32, i32) {
    %c0_i32 = arith.constant 0 : i32
    %c0_i32_0 = arith.constant 0 : i32
    %c0_i32_1 = arith.constant 0 : i32
    return %arg0, %c0_i32, %c0_i32_0 : i32, i32, i32
  }
}

</mosaic_0001>

<llo_original>
// kernel: lpi_forward.3
$region0: #{lpi_forward.3}
  #allocation0 [shape = 'u32[]', space=smem, size = 0x4, offset = 0x4, fixed_abs, tag = 'smem constant byte address 0x4 - core index']
  #allocation1 [shape = 'u32[144,128]{1,0:T(1,128)}', space=vmem, size = 0x12000, scoped, tag = 'internal scratch']
  %s0 = inlined_call_operand.vmem [shape: bf16[2,16,16,128], index: 0, kind: input, shape index: {}]
  %s1 = inlined_call_operand.vmem [shape: f32[2,128], index: 1, kind: input, shape index: {}]
  %s2 = inlined_call_operand.vmem [shape: f32[1,128], index: 2, kind: input, shape index: {}]
  %s3 = inlined_call_operand.vmem [shape: f32[1,128], index: 3, kind: input, shape index: {}]
  %s4 = inlined_call_operand.vmem [shape: f32[3,3,128], index: 4, kind: input, shape index: {}]
  %s5 = inlined_call_operand.vmem [shape: f32[1,128], index: 5, kind: input, shape index: {}]
  %s6 = inlined_call_operand.hbm [shape: f32[2,16,16,128], index: 6, kind: output, shape index: {}]
  %s7 = sld [smem:[#allocation0]]
  $region57: #{lpi_forward.3} parent=0
    _
  %s9 = ssub.s32 1, %s7
  %s10 = scalar_select 0, %s9, %s7
  $region1: #{lpi_forward.3} parent=0
    #allocation2 [shape = 'u8[262144]{0}', space=vmem, size = 0x40000, scoped, tag = 'output window, operand 0']
    #allocation3 [shape = 's32[2]{0}', space=sflag, size = 0x8, scoped, tag = 'scoped memory for lpi_forward.3']
    %11 = vsyncpa [#allocation3], 0
    %s12 = scalar_lea.sflag [#allocation3], 1
    %13 = vsyncpa %s12, 0
    loop: start=0, step=1, limit=4
    $region2: #{lpi_forward.3} parent=1 // loop_pre_header
      _
    $region3: #{lpi_forward.3} parent=1 // loop_header
      %s15 = sphi 0, %s19
      %p16 = scmp.ge.s32.totalorder %s15, 4
      %s25 = sphi 0, %s27
      %s28 = sphi 0, %s25
      %s29 = sphi 0, %s28
      %s45 = sphi 0, %s29
      %s49 = sphi 0, %s49
      %s51 = sphi 0, %s49
      %s52 = sphi 0, %s51
      %s66 = sphi 0, %s52
      %s70 = sphi 0, %s70
      %s72 = sphi 0, %s70
      %s73 = sphi 0, %s72
      %s87 = sphi 0, %s73
      %s91 = sphi 0, %s91
      %s93 = sphi 0, %s91
      %s94 = sphi 0, %s93
      %s108 = sphi 0, %s94
      %s112 = sphi 0, %s112
      %s114 = sphi 0, %s112
      %s115 = sphi 0, %s114
      %s129 = sphi 0, %s115
      %s133 = sphi 0, %s133
      %s135 = sphi 0, %s133
      %s136 = sphi 0, %s135
      %s150 = sphi 0, %s136
      %s156 = sphi 0, %s158
      %s159 = sphi 0, %s156
      %s160 = sphi 0, %s159
      %s176 = sphi 0, %s160
    $region4: #{lpi_forward.3} parent=1 // loop_header_branch
      %18 = sbr.rel (%p16) target = $region8
    $region5: #{lpi_forward.3} parent=1 // loop_body
      %s20 = ssub.s32 %s15, 1
      %s21 = ssub.s32 %s15, 2
      %s22 = sadd.s32 %s15, 1
      %s23 = ssub.s32 %s15, %s22
      %p24 = scmp.eq.s32.totalorder %s23, 0
      %s26 = sadd.s32 %s25, 1
      %s27 = scalar_select %p24, %s25, %s26
      %p30 = pneg %p24
      %p31 = scmp.eq.s32.totalorder %s15, 1
      %p32 = por %p30, %p31
      %p33 = scmp.ne.s32.totalorder %s25, %s28
      %p34 = scmp.eq.s32.totalorder %s15, 0
      %p35 = por %p33, %p34
      %p36 = scmp.ne.s32.totalorder %s25, %s28
      %p37 = scmp.eq.s32.totalorder %s20, 1
      %p38 = por %p36, %p37
      %p39 = scmp.ne.s32.totalorder %s28, %s29
      %p40 = scmp.eq.s32.totalorder %s20, 0
      %p41 = por %p39, %p40
      %p42 = scmp.ne.s32.totalorder %s28, %s29
      %p43 = scmp.eq.s32.totalorder %s21, 1
      %p44 = por %p42, %p43
      %p46 = scmp.ne.s32.totalorder %s29, %s45
      %p47 = scmp.eq.s32.totalorder %s21, 0
      %p48 = por %p46, %p47
      %s50 = sadd.s32 %s49, 1
      %p53 = scmp.eq.s32.totalorder %s15, 1
      %p54 = scmp.ne.s32.totalorder %s49, %s51
      %p55 = scmp.eq.s32.totalorder %s15, 0
      %p56 = por %p54, %p55
      %p57 = scmp.ne.s32.totalorder %s49, %s51
      %p58 = scmp.eq.s32.totalorder %s20, 1
      %p59 = por %p57, %p58
      %p60 = scmp.ne.s32.totalorder %s51, %s52
      %p61 = scmp.eq.s32.totalorder %s20, 0
      %p62 = por %p60, %p61
      %p63 = scmp.ne.s32.totalorder %s51, %s52
      %p64 = scmp.eq.s32.totalorder %s21, 1
      %p65 = por %p63, %p64
      %p67 = scmp.ne.s32.totalorder %s52, %s66
      %p68 = scmp.eq.s32.totalorder %s21, 0
      %p69 = por %p67, %p68
      %s71 = sadd.s32 %s70, 1
      %p74 = scmp.eq.s32.totalorder %s15, 1
      %p75 = scmp.ne.s32.totalorder %s70, %s72
      %p76 = scmp.eq.s32.totalorder %s15, 0
      %p77 = por %p75, %p76
      %p78 = scmp.ne.s32.totalorder %s70, %s72
      %p79 = scmp.eq.s32.totalorder %s20, 1
      %p80 = por %p78, %p79
      %p81 = scmp.ne.s32.totalorder %s72, %s73
      %p82 = scmp.eq.s32.totalorder %s20, 0
      %p83 = por %p81, %p82
      %p84 = scmp.ne.s32.totalorder %s72, %s73
      %p85 = scmp.eq.s32.totalorder %s21, 1
      %p86 = por %p84, %p85
      %p88 = scmp.ne.s32.totalorder %s73, %s87
      %p89 = scmp.eq.s32.totalorder %s21, 0
      %p90 = por %p88, %p89
      %s92 = sadd.s32 %s91, 1
      %p95 = scmp.eq.s32.totalorder %s15, 1
      %p96 = scmp.ne.s32.totalorder %s91, %s93
      %p97 = scmp.eq.s32.totalorder %s15, 0
      %p98 = por %p96, %p97
      %p99 = scmp.ne.s32.totalorder %s91, %s93
      %p100 = scmp.eq.s32.totalorder %s20, 1
      %p101 = por %p99, %p100
      %p102 = scmp.ne.s32.totalorder %s93, %s94
      %p103 = scmp.eq.s32.totalorder %s20, 0
      %p104 = por %p102, %p103
      %p105 = scmp.ne.s32.totalorder %s93, %s94
      %p106 = scmp.eq.s32.totalorder %s21, 1
      %p107 = por %p105, %p106
      %p109 = scmp.ne.s32.totalorder %s94, %s108
      %p110 = scmp.eq.s32.totalorder %s21, 0
      %p111 = por %p109, %p110
      %s113 = sadd.s32 %s112, 1
      %p116 = scmp.eq.s32.totalorder %s15, 1
      %p117 = scmp.ne.s32.totalorder %s112, %s114
      %p118 = scmp.eq.s32.totalorder %s15, 0
      %p119 = por %p117, %p118
      %p120 = scmp.ne.s32.totalorder %s112, %s114
      %p121 = scmp.eq.s32.totalorder %s20, 1
      %p122 = por %p120, %p121
      %p123 = scmp.ne.s32.totalorder %s114, %s115
      %p124 = scmp.eq.s32.totalorder %s20, 0
      %p125 = por %p123, %p124
      %p126 = scmp.ne.s32.totalorder %s114, %s115
      %p127 = scmp.eq.s32.totalorder %s21, 1
      %p128 = por %p126, %p127
      %p130 = scmp.ne.s32.totalorder %s115, %s129
      %p131 = scmp.eq.s32.totalorder %s21, 0
      %p132 = por %p130, %p131
      %s134 = sadd.s32 %s133, 1
      %p137 = scmp.eq.s32.totalorder %s15, 1
      %p138 = scmp.ne.s32.totalorder %s133, %s135
      %p139 = scmp.eq.s32.totalorder %s15, 0
      %p140 = por %p138, %p139
      %p141 = scmp.ne.s32.totalorder %s133, %s135
      %p142 = scmp.eq.s32.totalorder %s20, 1
      %p143 = por %p141, %p142
      %p144 = scmp.ne.s32.totalorder %s135, %s136
      %p145 = scmp.eq.s32.totalorder %s20, 0
      %p146 = por %p144, %p145
      %p147 = scmp.ne.s32.totalorder %s135, %s136
      %p148 = scmp.eq.s32.totalorder %s21, 1
      %p149 = por %p147, %p148
      %p151 = scmp.ne.s32.totalorder %s136, %s150
      %p152 = scmp.eq.s32.totalorder %s21, 0
      %p153 = por %p151, %p152
      %s154 = ssub.s32 %s15, %s22
      %p155 = scmp.eq.s32.totalorder %s154, 0
      %s157 = sadd.s32 %s156, 1
      %s158 = scalar_select %p155, %s156, %s157
      %p161 = pneg %p155
      %p162 = scmp.eq.s32.totalorder %s15, 1
      %p163 = por %p161, %p162
      %p164 = scmp.ne.s32.totalorder %s156, %s159
      %p165 = scmp.eq.s32.totalorder %s15, 0
      %p166 = por %p164, %p165
      %p167 = scmp.ne.s32.totalorder %s156, %s159
      %p168 = scmp.eq.s32.totalorder %s20, 1
      %p169 = por %p167, %p168
      %p170 = scmp.ne.s32.totalorder %s159, %s160
      %p171 = scmp.eq.s32.totalorder %s20, 0
      %p172 = por %p170, %p171
      %p173 = scmp.ne.s32.totalorder %s159, %s160
      %p174 = scmp.eq.s32.totalorder %s21, 1
      %p175 = por %p173, %p174
      %p177 = scmp.ne.s32.totalorder %s160, %s176
      %p178 = scmp.eq.s32.totalorder %s21, 0
      %p179 = por %p177, %p178
      %p180 = scmp.le.s32.totalorder 1, %s15
      %p181 = scmp.lt.s32.totalorder %s15, 3
      %p182 = pnand %p180, %p181
      %p183 = pneg %p182
      // Predicated region
      $region9: #{lpi_forward.3} parent=5 // pred_check
        _
      $region10: #{lpi_forward.3} parent=5 // pred_check_branch
        %185 = sbr.rel (%p182) target = $region12
      $region11: #{lpi_forward.3} parent=5 // pred_region
        %s186 = ssub.s32 %s15, 1
        // Predicated region
        $region13: #{lpi_forward.3} parent=11 // pred_check
          %p187 = pneg %p62
        $region14: #{lpi_forward.3} parent=11 // pred_check_branch
          %189 = sbr.rel (%p187) target = $region16
        $region15: #{lpi_forward.3} parent=11 // pred_region
          _
        $region16: #{lpi_forward.3} parent=11 // pred_fallthru
          _
        // Predicated region
        $region17: #{lpi_forward.3} parent=11 // pred_check
          %p190 = pneg %p83
        $region18: #{lpi_forward.3} parent=11 // pred_check_branch
          %192 = sbr.rel (%p190) target = $region20
        $region19: #{lpi_forward.3} parent=11 // pred_region
          _
        $region20: #{lpi_forward.3} parent=11 // pred_fallthru
          _
        // Predicated region
        $region21: #{lpi_forward.3} parent=11 // pred_check
          %p193 = pneg %p104
        $region22: #{lpi_forward.3} parent=11 // pred_check_branch
          %195 = sbr.rel (%p193) target = $region24
        $region23: #{lpi_forward.3} parent=11 // pred_region
          _
        $region24: #{lpi_forward.3} parent=11 // pred_fallthru
          _
        // Predicated region
        $region25: #{lpi_forward.3} parent=11 // pred_check
          %p196 = pneg %p125
        $region26: #{lpi_forward.3} parent=11 // pred_check_branch
          %198 = sbr.rel (%p196) target = $region28
        $region27: #{lpi_forward.3} parent=11 // pred_region
          _
        $region28: #{lpi_forward.3} parent=11 // pred_fallthru
          _
        // Predicated region
        $region29: #{lpi_forward.3} parent=11 // pred_check
          %p199 = pneg %p146
        $region30: #{lpi_forward.3} parent=11 // pred_check_branch
          %201 = sbr.rel (%p199) target = $region32
        $region31: #{lpi_forward.3} parent=11 // pred_region
          _
        $region32: #{lpi_forward.3} parent=11 // pred_fallthru
          _
      $region12: #{lpi_forward.3} parent=5 // pred_fallthru
        _
      %p202 = scmp.lt.s32.totalorder %s15, 2
      // Predicated region
      $region33: #{lpi_forward.3} parent=5 // pred_check
        %p203 = pneg %p202
      $region34: #{lpi_forward.3} parent=5 // pred_check_branch
        %205 = sbr.rel (%p203) target = $region36
      $region35: #{lpi_forward.3} parent=5 // pred_region
        // Predicated region
        $region37: #{lpi_forward.3} parent=35 // pred_check
          %p206 = pneg %p35
        $region38: #{lpi_forward.3} parent=35 // pred_check_branch
          %208 = sbr.rel (%p206) target = $region40
        $region39: #{lpi_forward.3} parent=35 // pred_region
          %p209 = scmp.lt.s32.totalorder %s15, 1
          %s210 = scalar_select %p209, %s15, 1
          %s211 = smul.addr %s210, 32
          %s212 = smul.addr %s211, 4
          %s213 = scalar_lea.vmem %s0, %s212
        $region40: #{lpi_forward.3} parent=35 // pred_fallthru
          _
      $region36: #{lpi_forward.3} parent=5 // pred_fallthru
        _
      %p214 = scmp.le.s32.totalorder 1, %s15
      %p215 = scmp.lt.s32.totalorder %s15, 3
      %p216 = pnand %p214, %p215
      %p217 = pneg %p216
      // Predicated region
      $region41: #{lpi_forward.3} parent=5 // pred_check
        _
      $region42: #{lpi_forward.3} parent=5 // pred_check_branch
        %219 = sbr.rel (%p216) target = $region44
      $region43: #{lpi_forward.3} parent=5 // pred_region
        %s220 = ssub.s32 %s15, 1
        %p221 = scmp.lt.s32.totalorder %s20, 1
        %s222 = scalar_select %p221, %s20, 1
        %s223 = smul.addr %s222, 32
        %s224 = smul.addr %s223, 4
        %s225 = scalar_lea.vmem %s0, %s224
        %p226 = pneg %p41
        %p227 = pneg %p38
        %p228 = pneg %p62
        %p229 = pneg %p59
        %p230 = pneg %p83
        %p231 = pneg %p80
        %p232 = pneg %p104
        %p233 = pneg %p101
        %p234 = pneg %p125
        %p235 = pneg %p122
        %p236 = pneg %p146
        %p237 = pneg %p143
        %p238 = pneg %p172
        %p239 = pneg %p169
        %s240 = sand.u32 %s159, 1
        %s241 = scalar_lea.sflag [#allocation3], %s240
        %s242 = sand.u32 %s159, 1
        %s243 = smul.addr %s242, 256
        %s244 = scalar_lea.vmem [#allocation2], %s243
        %p245 = scmp.lt.s32.totalorder %s20, 1
        %s246 = scalar_select %p245, %s20, 1
        %s247 = smul.addr %s246, 32
        %s248 = smul.addr %s247, 4
        %s249 = scalar_lea.vmem %s0, %s248
        %v250 = vld [vmem:[%s1] sm:$0x1]
        %v251 = vld [vmem:[%s1 + $0x1] sm:$0x1]
        %v252 = vmul.f32 %v250, 0.001953125
        %v253 = vmul.f32 %v251, 0.001953125
        %v254 = vmul.f32 %v252, %v252
        %v255 = vsub.f32 %v253, %v254
        %v256 = vmax.f32 %v255, 0.0
        %v257 = vadd.f32 %v256, 1e-05
        %v258 = vrsqrt.pop %v257
        %v259 = vld [vmem:[%s2] sm:$0x1]
        %v260 = vld [vmem:[%s3] sm:$0x1]
        %v261 = vmul.f32 %v259, %v258
        %v262 = vmul.f32 %v252, %v259
        %v263 = vmul.f32 %v262, %v258
        %v264 = vsub.f32 %v260, %v263
        %v265 = vld [vmem:[%s4] sm:$0x7]
        %v266 = vld [vmem:[%s4 + $0x4] sm:$0x7]
        %v267 = vld [vmem:[%s4 + $0x8] sm:$0x7]
        %v268 = vld [vmem:[%s5] sm:$0x1]
        %v270 = vlaneseq
        %v271 = vshrl.u32 %v270, 7
        %v272 = vsub.s32 0, %v271
        %v273 = vrot.slane %v268, %v272
        %v275 = vadd.f32 %v273, 0.0
        %v276 = vld [vmem:[%s249] sm:$0xf]
        %v277 = vld [vmem:[%s249 + $0x4] sm:$0xf]
        %v278 = vunpack.c.l.bf16 %v276
        %v279 = vunpack.c.l.bf16 %v277
        %v281 = vlaneseq
        %v282 = vshrl.u32 %v281, 7
        %v283 = vsub.s32 0, %v282
        %v284 = vrot.slane %v261, %v283
        %v286 = vmul.f32 %v278, %v284
        %v287 = vmul.f32 %v279, %v284
        %v289 = vlaneseq
        %v290 = vshrl.u32 %v289, 7
        %v291 = vsub.s32 0, %v290
        %v292 = vrot.slane %v264, %v291
        %v294 = vadd.f32 %v286, %v292
        %v295 = vadd.f32 %v287, %v292
        %vm298 = vcmask 1040384
        %v299 = vrot.slane %v294, 7
        %v300 = vrot.slane %v295, 7
        %v301 = vsel %vm298, %v299, %v300
        %v304 = vsel %vm298, 0.0, %v299
        %vm305 = vcmask 1046528
        %v306 = vrot.slane %v294, 1
        %v307 = vrot.slane %v295, 1
        %v308 = vsel %vm305, %v306, %v307
        %v311 = vsel %vm305, %v307, 0.0
        %v312 = vlaneseq
        %v313 = vshrl.u32 %v312, 7
        %v314 = vsub.s32 0, %v313
        %v315 = vrot.slane %v266, %v314
        %v316 = vmul.f32 %v304, %v315
        %v317 = vmul.f32 %v301, %v315
        %v318 = vadd.f32 %v275, %v316
        %v319 = vadd.f32 %v275, %v317
        %v320 = vlaneseq
        %v321 = vshrl.u32 %v320, 7
        %v322 = vsub.s32 1, %v321
        %v323 = vrot.slane %v266, %v322
        %v324 = vmul.f32 %v294, %v323
        %v325 = vmul.f32 %v295, %v323
        %v326 = vadd.f32 %v318, %v324
        %v327 = vadd.f32 %v319, %v325
        %v328 = vlaneseq
        %v329 = vshrl.u32 %v328, 7
        %v330 = vsub.s32 2, %v329
        %v331 = vrot.slane %v266, %v330
        %v332 = vmul.f32 %v308, %v331
        %v333 = vmul.f32 %v311, %v331
        %v334 = vadd.f32 %v326, %v332
        %v335 = vadd.f32 %v327, %v333
        %s336 = scalar_lea.vmem %s249, 8
        %v337 = vld [vmem:[%s336] sm:$0xf]
        %v338 = vld [vmem:[%s336 + $0x4] sm:$0xf]
        %v339 = vunpack.c.l.bf16 %v337
        %v340 = vunpack.c.l.bf16 %v338
        %v341 = vmul.f32 %v339, %v284
        %v342 = vmul.f32 %v340, %v284
        %v343 = vadd.f32 %v341, %v292
        %v344 = vadd.f32 %v342, %v292
        %v347 = vrot.slane %v343, 7
        %v348 = vrot.slane %v344, 7
        %v349 = vsel %vm298, %v347, %v348
        %v352 = vsel %vm298, 0.0, %v347
        %v353 = vrot.slane %v343, 1
        %v354 = vrot.slane %v344, 1
        %v355 = vsel %vm305, %v353, %v354
        %v358 = vsel %vm305, %v354, 0.0
        %v359 = vlaneseq
        %v360 = vshrl.u32 %v359, 7
        %v361 = vsub.s32 0, %v360
        %v362 = vrot.slane %v267, %v361
        %v363 = vmul.f32 %v352, %v362
        %v364 = vmul.f32 %v349, %v362
        %v365 = vadd.f32 %v334, %v363
        %v366 = vadd.f32 %v335, %v364
        %v367 = vlaneseq
        %v368 = vshrl.u32 %v367, 7
        %v369 = vsub.s32 1, %v368
        %v370 = vrot.slane %v267, %v369
        %v371 = vmul.f32 %v343, %v370
        %v372 = vmul.f32 %v344, %v370
        %v373 = vadd.f32 %v365, %v371
        %v374 = vadd.f32 %v366, %v372
        %v375 = vlaneseq
        %v376 = vshrl.u32 %v375, 7
        %v377 = vsub.s32 2, %v376
        %v378 = vrot.slane %v267, %v377
        %v379 = vmul.f32 %v355, %v378
        %v380 = vmul.f32 %v358, %v378
        %v381 = vadd.f32 %v373, %v379
        %v382 = vadd.f32 %v374, %v380
        %383 = vst [vmem:[%s244] sm:$0xff] %v381
        %384 = vst [vmem:[%s244 + $0x8] sm:$0xff] %v382
        %v385 = vlaneseq
        %v386 = vshrl.u32 %v385, 7
        %v387 = vsub.s32 0, %v386
        %v388 = vrot.slane %v265, %v387
        %v389 = vmul.f32 %v304, %v388
        %v390 = vmul.f32 %v301, %v388
        %v391 = vadd.f32 %v275, %v389
        %v392 = vadd.f32 %v275, %v390
        %v393 = vlaneseq
        %v394 = vshrl.u32 %v393, 7
        %v395 = vsub.s32 1, %v394
        %v396 = vrot.slane %v265, %v395
        %v397 = vmul.f32 %v294, %v396
        %v398 = vmul.f32 %v295, %v396
        %v399 = vadd.f32 %v391, %v397
        %v400 = vadd.f32 %v392, %v398
        %v401 = vlaneseq
        %v402 = vshrl.u32 %v401, 7
        %v403 = vsub.s32 2, %v402
        %v404 = vrot.slane %v265, %v403
        %v405 = vmul.f32 %v308, %v404
        %v406 = vmul.f32 %v311, %v404
        %v407 = vadd.f32 %v399, %v405
        %v408 = vadd.f32 %v400, %v406
        %v409 = vmul.f32 %v352, %v315
        %v410 = vmul.f32 %v349, %v315
        %v411 = vadd.f32 %v407, %v409
        %v412 = vadd.f32 %v408, %v410
        %v413 = vmul.f32 %v343, %v323
        %v414 = vmul.f32 %v344, %v323
        %v415 = vadd.f32 %v411, %v413
        %v416 = vadd.f32 %v412, %v414
        %v417 = vmul.f32 %v355, %v331
        %v418 = vmul.f32 %v358, %v331
        %v419 = vadd.f32 %v415, %v417
        %v420 = vadd.f32 %v416, %v418
        %s421 = scalar_lea.vmem %s249, 16
        %v422 = vld [vmem:[%s421] sm:$0xf]
        %v423 = vld [vmem:[%s421 + $0x4] sm:$0xf]
        %v424 = vunpack.c.l.bf16 %v422
        %v425 = vunpack.c.l.bf16 %v423
        %v426 = vmul.f32 %v424, %v284
        %v427 = vmul.f32 %v425, %v284
        %v428 = vadd.f32 %v426, %v292
        %v429 = vadd.f32 %v427, %v292
        %v432 = vrot.slane %v428, 7
        %v433 = vrot.slane %v429, 7
        %v434 = vsel %vm298, %v432, %v433
        %v437 = vsel %vm298, 0.0, %v432
        %v438 = vrot.slane %v428, 1
        %v439 = vrot.slane %v429, 1
        %v440 = vsel %vm305, %v438, %v439
        %v443 = vsel %vm305, %v439, 0.0
        %v444 = vmul.f32 %v437, %v362
        %v445 = vmul.f32 %v434, %v362
        %v446 = vadd.f32 %v419, %v444
        %v447 = vadd.f32 %v420, %v445
        %v448 = vmul.f32 %v428, %v370
        %v449 = vmul.f32 %v429, %v370
        %v450 = vadd.f32 %v446, %v448
        %v451 = vadd.f32 %v447, %v449
        %v452 = vmul.f32 %v440, %v378
        %v453 = vmul.f32 %v443, %v378
        %v454 = vadd.f32 %v450, %v452
        %v455 = vadd.f32 %v451, %v453
        %s456 = scalar_lea.vmem %s244, 16 [#allocation2]
        %457 = vst [vmem:[%s456] sm:$0xff] %v454
        %458 = vst [vmem:[%s456 + $0x8] sm:$0xff] %v455
        %v459 = vmul.f32 %v352, %v388
        %v460 = vmul.f32 %v349, %v388
        %v461 = vadd.f32 %v275, %v459
        %v462 = vadd.f32 %v275, %v460
        %v463 = vmul.f32 %v343, %v396
        %v464 = vmul.f32 %v344, %v396
        %v465 = vadd.f32 %v461, %v463
        %v466 = vadd.f32 %v462, %v464
        %v467 = vmul.f32 %v355, %v404
        %v468 = vmul.f32 %v358, %v404
        %v469 = vadd.f32 %v465, %v467
        %v470 = vadd.f32 %v466, %v468
        %v471 = vmul.f32 %v437, %v315
        %v472 = vmul.f32 %v434, %v315
        %v473 = vadd.f32 %v469, %v471
        %v474 = vadd.f32 %v470, %v472
        %v475 = vmul.f32 %v428, %v323
        %v476 = vmul.f32 %v429, %v323
        %v477 = vadd.f32 %v473, %v475
        %v478 = vadd.f32 %v474, %v476
        %v479 = vmul.f32 %v440, %v331
        %v480 = vmul.f32 %v443, %v331
        %v481 = vadd.f32 %v477, %v479
        %v482 = vadd.f32 %v478, %v480
        %s483 = scalar_lea.vmem %s249, 24
        %v484 = vld [vmem:[%s483] sm:$0xf]
        %v485 = vld [vmem:[%s483 + $0x4] sm:$0xf]
        %v486 = vunpack.c.l.bf16 %v484
        %v487 = vunpack.c.l.bf16 %v485
        %v488 = vmul.f32 %v486, %v284
        %v489 = vmul.f32 %v487, %v284
        %v490 = vadd.f32 %v488, %v292
        %v491 = vadd.f32 %v489, %v292
        %v494 = vrot.slane %v490, 7
        %v495 = vrot.slane %v491, 7
        %v496 = vsel %vm298, %v494, %v495
        %v499 = vsel %vm298, 0.0, %v494
        %v500 = vrot.slane %v490, 1
        %v501 = vrot.slane %v491, 1
        %v502 = vsel %vm305, %v500, %v501
        %v505 = vsel %vm305, %v501, 0.0
        %v506 = vmul.f32 %v499, %v362
        %v507 = vmul.f32 %v496, %v362
        %v508 = vadd.f32 %v481, %v506
        %v509 = vadd.f32 %v482, %v507
        %v510 = vmul.f32 %v490, %v370
        %v511 = vmul.f32 %v491, %v370
        %v512 = vadd.f32 %v508, %v510
        %v513 = vadd.f32 %v509, %v511
        %v514 = vmul.f32 %v502, %v378
        %v515 = vmul.f32 %v505, %v378
        %v516 = vadd.f32 %v512, %v514
        %v517 = vadd.f32 %v513, %v515
        %s518 = scalar_lea.vmem %s244, 32 [#allocation2]
        %519 = vst [vmem:[%s518] sm:$0xff] %v516
        %520 = vst [vmem:[%s518 + $0x8] sm:$0xff] %v517
        %v521 = vmul.f32 %v437, %v388
        %v522 = vmul.f32 %v434, %v388
        %v523 = vadd.f32 %v275, %v521
        %v524 = vadd.f32 %v275, %v522
        %v525 = vmul.f32 %v428, %v396
        %v526 = vmul.f32 %v429, %v396
        %v527 = vadd.f32 %v523, %v525
        %v528 = vadd.f32 %v524, %v526
        %v529 = vmul.f32 %v440, %v404
        %v530 = vmul.f32 %v443, %v404
        %v531 = vadd.f32 %v527, %v529
        %v532 = vadd.f32 %v528, %v530
        %v533 = vmul.f32 %v499, %v315
        %v534 = vmul.f32 %v496, %v315
        %v535 = vadd.f32 %v531, %v533
        %v536 = vadd.f32 %v532, %v534
        %v537 = vmul.f32 %v490, %v323
        %v538 = vmul.f32 %v491, %v323
        %v539 = vadd.f32 %v535, %v537
        %v540 = vadd.f32 %v536, %v538
        %v541 = vmul.f32 %v502, %v331
        %v542 = vmul.f32 %v505, %v331
        %v543 = vadd.f32 %v539, %v541
        %v544 = vadd.f32 %v540, %v542
        %s545 = scalar_lea.vmem %s249, 32
        %v546 = vld [vmem:[%s545] sm:$0xf]
        %v547 = vld [vmem:[%s545 + $0x4] sm:$0xf]
        %v548 = vunpack.c.l.bf16 %v546
        %v549 = vunpack.c.l.bf16 %v547
        %v550 = vmul.f32 %v548, %v284
        %v551 = vmul.f32 %v549, %v284
        %v552 = vadd.f32 %v550, %v292
        %v553 = vadd.f32 %v551, %v292
        %v556 = vrot.slane %v552, 7
        %v557 = vrot.slane %v553, 7
        %v558 = vsel %vm298, %v556, %v557
        %v561 = vsel %vm298, 0.0, %v556
        %v562 = vrot.slane %v552, 1
        %v563 = vrot.slane %v553, 1
        %v564 = vsel %vm305, %v562, %v563
        %v567 = vsel %vm305, %v563, 0.0
        %v568 = vmul.f32 %v561, %v362
        %v569 = vmul.f32 %v558, %v362
        %v570 = vadd.f32 %v543, %v568
        %v571 = vadd.f32 %v544, %v569
        %v572 = vmul.f32 %v552, %v370
        %v573 = vmul.f32 %v553, %v370
        %v574 = vadd.f32 %v570, %v572
        %v575 = vadd.f32 %v571, %v573
        %v576 = vmul.f32 %v564, %v378
        %v577 = vmul.f32 %v567, %v378
        %v578 = vadd.f32 %v574, %v576
        %v579 = vadd.f32 %v575, %v577
        %s580 = scalar_lea.vmem %s244, 48 [#allocation2]
        %581 = vst [vmem:[%s580] sm:$0xff] %v578
        %582 = vst [vmem:[%s580 + $0x8] sm:$0xff] %v579
        %v583 = vmul.f32 %v499, %v388
        %v584 = vmul.f32 %v496, %v388
        %v585 = vadd.f32 %v275, %v583
        %v586 = vadd.f32 %v275, %v584
        %v587 = vmul.f32 %v490, %v396
        %v588 = vmul.f32 %v491, %v396
        %v589 = vadd.f32 %v585, %v587
        %v590 = vadd.f32 %v586, %v588
        %v591 = vmul.f32 %v502, %v404
        %v592 = vmul.f32 %v505, %v404
        %v593 = vadd.f32 %v589, %v591
        %v594 = vadd.f32 %v590, %v592
        %v595 = vmul.f32 %v561, %v315
        %v596 = vmul.f32 %v558, %v315
        %v597 = vadd.f32 %v593, %v595
        %v598 = vadd.f32 %v594, %v596
        %v599 = vmul.f32 %v552, %v323
        %v600 = vmul.f32 %v553, %v323
        %v601 = vadd.f32 %v597, %v599
        %v602 = vadd.f32 %v598, %v600
        %v603 = vmul.f32 %v564, %v331
        %v604 = vmul.f32 %v567, %v331
        %v605 = vadd.f32 %v601, %v603
        %v606 = vadd.f32 %v602, %v604
        %s607 = scalar_lea.vmem %s249, 40
        %v608 = vld [vmem:[%s607] sm:$0xf]
        %v609 = vld [vmem:[%s607 + $0x4] sm:$0xf]
        %v610 = vunpack.c.l.bf16 %v608
        %v611 = vunpack.c.l.bf16 %v609
        %v612 = vmul.f32 %v610, %v284
        %v613 = vmul.f32 %v611, %v284
        %v614 = vadd.f32 %v612, %v292
        %v615 = vadd.f32 %v613, %v292
        %v618 = vrot.slane %v614, 7
        %v619 = vrot.slane %v615, 7
        %v620 = vsel %vm298, %v618, %v619
        %v623 = vsel %vm298, 0.0, %v618
        %v624 = vrot.slane %v614, 1
        %v625 = vrot.slane %v615, 1
        %v626 = vsel %vm305, %v624, %v625
        %v629 = vsel %vm305, %v625, 0.0
        %v630 = vmul.f32 %v623, %v362
        %v631 = vmul.f32 %v620, %v362
        %v632 = vadd.f32 %v605, %v630
        %v633 = vadd.f32 %v606, %v631
        %v634 = vmul.f32 %v614, %v370
        %v635 = vmul.f32 %v615, %v370
        %v636 = vadd.f32 %v632, %v634
        %v637 = vadd.f32 %v633, %v635
        %v638 = vmul.f32 %v626, %v378
        %v639 = vmul.f32 %v629, %v378
        %v640 = vadd.f32 %v636, %v638
        %v641 = vadd.f32 %v637, %v639
        %s642 = scalar_lea.vmem %s244, 64 [#allocation2]
        %643 = vst [vmem:[%s642] sm:$0xff] %v640
        %644 = vst [vmem:[%s642 + $0x8] sm:$0xff] %v641
        %v645 = vmul.f32 %v561, %v388
        %v646 = vmul.f32 %v558, %v388
        %v647 = vadd.f32 %v275, %v645
        %v648 = vadd.f32 %v275, %v646
        %v649 = vmul.f32 %v552, %v396
        %v650 = vmul.f32 %v553, %v396
        %v651 = vadd.f32 %v647, %v649
        %v652 = vadd.f32 %v648, %v650
        %v653 = vmul.f32 %v564, %v404
        %v654 = vmul.f32 %v567, %v404
        %v655 = vadd.f32 %v651, %v653
        %v656 = vadd.f32 %v652, %v654
        %v657 = vmul.f32 %v623, %v315
        %v658 = vmul.f32 %v620, %v315
        %v659 = vadd.f32 %v655, %v657
        %v660 = vadd.f32 %v656, %v658
        %v661 = vmul.f32 %v614, %v323
        %v662 = vmul.f32 %v615, %v323
        %v663 = vadd.f32 %v659, %v661
        %v664 = vadd.f32 %v660, %v662
        %v665 = vmul.f32 %v626, %v331
        %v666 = vmul.f32 %v629, %v331
        %v667 = vadd.f32 %v663, %v665
        %v668 = vadd.f32 %v664, %v666
        %s669 = scalar_lea.vmem %s249, 48
        %v670 = vld [vmem:[%s669] sm:$0xf]
        %v671 = vld [vmem:[%s669 + $0x4] sm:$0xf]
        %v672 = vunpack.c.l.bf16 %v670
        %v673 = vunpack.c.l.bf16 %v671
        %v674 = vmul.f32 %v672, %v284
        %v675 = vmul.f32 %v673, %v284
        %v676 = vadd.f32 %v674, %v292
        %v677 = vadd.f32 %v675, %v292
        %v680 = vrot.slane %v676, 7
        %v681 = vrot.slane %v677, 7
        %v682 = vsel %vm298, %v680, %v681
        %v685 = vsel %vm298, 0.0, %v680
        %v686 = vrot.slane %v676, 1
        %v687 = vrot.slane %v677, 1
        %v688 = vsel %vm305, %v686, %v687
        %v691 = vsel %vm305, %v687, 0.0
        %v692 = vmul.f32 %v685, %v362
        %v693 = vmul.f32 %v682, %v362
        %v694 = vadd.f32 %v667, %v692
        %v695 = vadd.f32 %v668, %v693
        %v696 = vmul.f32 %v676, %v370
        %v697 = vmul.f32 %v677, %v370
        %v698 = vadd.f32 %v694, %v696
        %v699 = vadd.f32 %v695, %v697
        %v700 = vmul.f32 %v688, %v378
        %v701 = vmul.f32 %v691, %v378
        %v702 = vadd.f32 %v698, %v700
        %v703 = vadd.f32 %v699, %v701
        %s704 = scalar_lea.vmem %s244, 80 [#allocation2]
        %705 = vst [vmem:[%s704] sm:$0xff] %v702
        %706 = vst [vmem:[%s704 + $0x8] sm:$0xff] %v703
        %v707 = vmul.f32 %v623, %v388
        %v708 = vmul.f32 %v620, %v388
        %v709 = vadd.f32 %v275, %v707
        %v710 = vadd.f32 %v275, %v708
        %v711 = vmul.f32 %v614, %v396
        %v712 = vmul.f32 %v615, %v396
        %v713 = vadd.f32 %v709, %v711
        %v714 = vadd.f32 %v710, %v712
        %v715 = vmul.f32 %v626, %v404
        %v716 = vmul.f32 %v629, %v404
        %v717 = vadd.f32 %v713, %v715
        %v718 = vadd.f32 %v714, %v716
        %v719 = vmul.f32 %v685, %v315
        %v720 = vmul.f32 %v682, %v315
        %v721 = vadd.f32 %v717, %v719
        %v722 = vadd.f32 %v718, %v720
        %v723 = vmul.f32 %v676, %v323
        %v724 = vmul.f32 %v677, %v323
        %v725 = vadd.f32 %v721, %v723
        %v726 = vadd.f32 %v722, %v724
        %v727 = vmul.f32 %v688, %v331
        %v728 = vmul.f32 %v691, %v331
        %v729 = vadd.f32 %v725, %v727
        %v730 = vadd.f32 %v726, %v728
        %s731 = scalar_lea.vmem %s249, 56
        %v732 = vld [vmem:[%s731] sm:$0xf]
        %v733 = vld [vmem:[%s731 + $0x4] sm:$0xf]
        %v734 = vunpack.c.l.bf16 %v732
        %v735 = vunpack.c.l.bf16 %v733
        %v736 = vmul.f32 %v734, %v284
        %v737 = vmul.f32 %v735, %v284
        %v738 = vadd.f32 %v736, %v292
        %v739 = vadd.f32 %v737, %v292
        %v742 = vrot.slane %v738, 7
        %v743 = vrot.slane %v739, 7
        %v744 = vsel %vm298, %v742, %v743
        %v747 = vsel %vm298, 0.0, %v742
        %v748 = vrot.slane %v738, 1
        %v749 = vrot.slane %v739, 1
        %v750 = vsel %vm305, %v748, %v749
        %v753 = vsel %vm305, %v749, 0.0
        %v754 = vmul.f32 %v747, %v362
        %v755 = vmul.f32 %v744, %v362
        %v756 = vadd.f32 %v729, %v754
        %v757 = vadd.f32 %v730, %v755
        %v758 = vmul.f32 %v738, %v370
        %v759 = vmul.f32 %v739, %v370
        %v760 = vadd.f32 %v756, %v758
        %v761 = vadd.f32 %v757, %v759
        %v762 = vmul.f32 %v750, %v378
        %v763 = vmul.f32 %v753, %v378
        %v764 = vadd.f32 %v760, %v762
        %v765 = vadd.f32 %v761, %v763
        %s766 = scalar_lea.vmem %s244, 96 [#allocation2]
        %767 = vst [vmem:[%s766] sm:$0xff] %v764
        %768 = vst [vmem:[%s766 + $0x8] sm:$0xff] %v765
        %v769 = vmul.f32 %v685, %v388
        %v770 = vmul.f32 %v682, %v388
        %v771 = vadd.f32 %v275, %v769
        %v772 = vadd.f32 %v275, %v770
        %v773 = vmul.f32 %v676, %v396
        %v774 = vmul.f32 %v677, %v396
        %v775 = vadd.f32 %v771, %v773
        %v776 = vadd.f32 %v772, %v774
        %v777 = vmul.f32 %v688, %v404
        %v778 = vmul.f32 %v691, %v404
        %v779 = vadd.f32 %v775, %v777
        %v780 = vadd.f32 %v776, %v778
        %v781 = vmul.f32 %v747, %v315
        %v782 = vmul.f32 %v744, %v315
        %v783 = vadd.f32 %v779, %v781
        %v784 = vadd.f32 %v780, %v782
        %v785 = vmul.f32 %v738, %v323
        %v786 = vmul.f32 %v739, %v323
        %v787 = vadd.f32 %v783, %v785
        %v788 = vadd.f32 %v784, %v786
        %v789 = vmul.f32 %v750, %v331
        %v790 = vmul.f32 %v753, %v331
        %v791 = vadd.f32 %v787, %v789
        %v792 = vadd.f32 %v788, %v790
        %s793 = scalar_lea.vmem %s249, 64
        %v794 = vld [vmem:[%s793] sm:$0xf]
        %v795 = vld [vmem:[%s793 + $0x4] sm:$0xf]
        %v796 = vunpack.c.l.bf16 %v794
        %v797 = vunpack.c.l.bf16 %v795
        %v798 = vmul.f32 %v796, %v284
        %v799 = vmul.f32 %v797, %v284
        %v800 = vadd.f32 %v798, %v292
        %v801 = vadd.f32 %v799, %v292
        %v804 = vrot.slane %v800, 7
        %v805 = vrot.slane %v801, 7
        %v806 = vsel %vm298, %v804, %v805
        %v809 = vsel %vm298, 0.0, %v804
        %v810 = vrot.slane %v800, 1
        %v811 = vrot.slane %v801, 1
        %v812 = vsel %vm305, %v810, %v811
        %v815 = vsel %vm305, %v811, 0.0
        %v816 = vmul.f32 %v809, %v362
        %v817 = vmul.f32 %v806, %v362
        %v818 = vadd.f32 %v791, %v816
        %v819 = vadd.f32 %v792, %v817
        %v820 = vmul.f32 %v800, %v370
        %v821 = vmul.f32 %v801, %v370
        %v822 = vadd.f32 %v818, %v820
        %v823 = vadd.f32 %v819, %v821
        %v824 = vmul.f32 %v812, %v378
        %v825 = vmul.f32 %v815, %v378
        %v826 = vadd.f32 %v822, %v824
        %v827 = vadd.f32 %v823, %v825
        %s828 = scalar_lea.vmem %s244, 112 [#allocation2]
        %829 = vst [vmem:[%s828] sm:$0xff] %v826
        %830 = vst [vmem:[%s828 + $0x8] sm:$0xff] %v827
        %v831 = vmul.f32 %v747, %v388
        %v832 = vmul.f32 %v744, %v388
        %v833 = vadd.f32 %v275, %v831
        %v834 = vadd.f32 %v275, %v832
        %v835 = vmul.f32 %v738, %v396
        %v836 = vmul.f32 %v739, %v396
        %v837 = vadd.f32 %v833, %v835
        %v838 = vadd.f32 %v834, %v836
        %v839 = vmul.f32 %v750, %v404
        %v840 = vmul.f32 %v753, %v404
        %v841 = vadd.f32 %v837, %v839
        %v842 = vadd.f32 %v838, %v840
        %v843 = vmul.f32 %v809, %v315
        %v844 = vmul.f32 %v806, %v315
        %v845 = vadd.f32 %v841, %v843
        %v846 = vadd.f32 %v842, %v844
        %v847 = vmul.f32 %v800, %v323
        %v848 = vmul.f32 %v801, %v323
        %v849 = vadd.f32 %v845, %v847
        %v850 = vadd.f32 %v846, %v848
        %v851 = vmul.f32 %v812, %v331
        %v852 = vmul.f32 %v815, %v331
        %v853 = vadd.f32 %v849, %v851
        %v854 = vadd.f32 %v850, %v852
        %s855 = scalar_lea.vmem %s249, 72
        %v856 = vld [vmem:[%s855] sm:$0xf]
        %v857 = vld [vmem:[%s855 + $0x4] sm:$0xf]
        %v858 = vunpack.c.l.bf16 %v856
        %v859 = vunpack.c.l.bf16 %v857
        %v860 = vmul.f32 %v858, %v284
        %v861 = vmul.f32 %v859, %v284
        %v862 = vadd.f32 %v860, %v292
        %v863 = vadd.f32 %v861, %v292
        %v866 = vrot.slane %v862, 7
        %v867 = vrot.slane %v863, 7
        %v868 = vsel %vm298, %v866, %v867
        %v871 = vsel %vm298, 0.0, %v866
        %v872 = vrot.slane %v862, 1
        %v873 = vrot.slane %v863, 1
        %v874 = vsel %vm305, %v872, %v873
        %v877 = vsel %vm305, %v873, 0.0
        %v878 = vmul.f32 %v871, %v362
        %v879 = vmul.f32 %v868, %v362
        %v880 = vadd.f32 %v853, %v878
        %v881 = vadd.f32 %v854, %v879
        %v882 = vmul.f32 %v862, %v370
        %v883 = vmul.f32 %v863, %v370
        %v884 = vadd.f32 %v880, %v882
        %v885 = vadd.f32 %v881, %v883
        %v886 = vmul.f32 %v874, %v378
        %v887 = vmul.f32 %v877, %v378
        %v888 = vadd.f32 %v884, %v886
        %v889 = vadd.f32 %v885, %v887
        %s890 = scalar_lea.vmem %s244, 128 [#allocation2]
        %891 = vst [vmem:[%s890] sm:$0xff] %v888
        %892 = vst [vmem:[%s890 + $0x8] sm:$0xff] %v889
        %v893 = vmul.f32 %v809, %v388
        %v894 = vmul.f32 %v806, %v388
        %v895 = vadd.f32 %v275, %v893
        %v896 = vadd.f32 %v275, %v894
        %v897 = vmul.f32 %v800, %v396
        %v898 = vmul.f32 %v801, %v396
        %v899 = vadd.f32 %v895, %v897
        %v900 = vadd.f32 %v896, %v898
        %v901 = vmul.f32 %v812, %v404
        %v902 = vmul.f32 %v815, %v404
        %v903 = vadd.f32 %v899, %v901
        %v904 = vadd.f32 %v900, %v902
        %v905 = vmul.f32 %v871, %v315
        %v906 = vmul.f32 %v868, %v315
        %v907 = vadd.f32 %v903, %v905
        %v908 = vadd.f32 %v904, %v906
        %v909 = vmul.f32 %v862, %v323
        %v910 = vmul.f32 %v863, %v323
        %v911 = vadd.f32 %v907, %v909
        %v912 = vadd.f32 %v908, %v910
        %v913 = vmul.f32 %v874, %v331
        %v914 = vmul.f32 %v877, %v331
        %v915 = vadd.f32 %v911, %v913
        %v916 = vadd.f32 %v912, %v914
        %s917 = scalar_lea.vmem %s249, 80
        %v918 = vld [vmem:[%s917] sm:$0xf]
        %v919 = vld [vmem:[%s917 + $0x4] sm:$0xf]
        %v920 = vunpack.c.l.bf16 %v918
        %v921 = vunpack.c.l.bf16 %v919
        %v922 = vmul.f32 %v920, %v284
        %v923 = vmul.f32 %v921, %v284
        %v924 = vadd.f32 %v922, %v292
        %v925 = vadd.f32 %v923, %v292
        %v928 = vrot.slane %v924, 7
        %v929 = vrot.slane %v925, 7
        %v930 = vsel %vm298, %v928, %v929
        %v933 = vsel %vm298, 0.0, %v928
        %v934 = vrot.slane %v924, 1
        %v935 = vrot.slane %v925, 1
        %v936 = vsel %vm305, %v934, %v935
        %v939 = vsel %vm305, %v935, 0.0
        %v940 = vmul.f32 %v933, %v362
        %v941 = vmul.f32 %v930, %v362
        %v942 = vadd.f32 %v915, %v940
        %v943 = vadd.f32 %v916, %v941
        %v944 = vmul.f32 %v924, %v370
        %v945 = vmul.f32 %v925, %v370
        %v946 = vadd.f32 %v942, %v944
        %v947 = vadd.f32 %v943, %v945
        %v948 = vmul.f32 %v936, %v378
        %v949 = vmul.f32 %v939, %v378
        %v950 = vadd.f32 %v946, %v948
        %v951 = vadd.f32 %v947, %v949
        %s952 = scalar_lea.vmem %s244, 144 [#allocation2]
        %953 = vst [vmem:[%s952] sm:$0xff] %v950
        %954 = vst [vmem:[%s952 + $0x8] sm:$0xff] %v951
        %v955 = vmul.f32 %v871, %v388
        %v956 = vmul.f32 %v868, %v388
        %v957 = vadd.f32 %v275, %v955
        %v958 = vadd.f32 %v275, %v956
        %v959 = vmul.f32 %v862, %v396
        %v960 = vmul.f32 %v863, %v396
        %v961 = vadd.f32 %v957, %v959
        %v962 = vadd.f32 %v958, %v960
        %v963 = vmul.f32 %v874, %v404
        %v964 = vmul.f32 %v877, %v404
        %v965 = vadd.f32 %v961, %v963
        %v966 = vadd.f32 %v962, %v964
        %v967 = vmul.f32 %v933, %v315
        %v968 = vmul.f32 %v930, %v315
        %v969 = vadd.f32 %v965, %v967
        %v970 = vadd.f32 %v966, %v968
        %v971 = vmul.f32 %v924, %v323
        %v972 = vmul.f32 %v925, %v323
        %v973 = vadd.f32 %v969, %v971
        %v974 = vadd.f32 %v970, %v972
        %v975 = vmul.f32 %v936, %v331
        %v976 = vmul.f32 %v939, %v331
        %v977 = vadd.f32 %v973, %v975
        %v978 = vadd.f32 %v974, %v976
        %s979 = scalar_lea.vmem %s249, 88
        %v980 = vld [vmem:[%s979] sm:$0xf]
        %v981 = vld [vmem:[%s979 + $0x4] sm:$0xf]
        %v982 = vunpack.c.l.bf16 %v980
        %v983 = vunpack.c.l.bf16 %v981
        %v984 = vmul.f32 %v982, %v284
        %v985 = vmul.f32 %v983, %v284
        %v986 = vadd.f32 %v984, %v292
        %v987 = vadd.f32 %v985, %v292
        %v990 = vrot.slane %v986, 7
        %v991 = vrot.slane %v987, 7
        %v992 = vsel %vm298, %v990, %v991
        %v995 = vsel %vm298, 0.0, %v990
        %v996 = vrot.slane %v986, 1
        %v997 = vrot.slane %v987, 1
        %v998 = vsel %vm305, %v996, %v997
        %v1001 = vsel %vm305, %v997, 0.0
        %v1002 = vmul.f32 %v995, %v362
        %v1003 = vmul.f32 %v992, %v362
        %v1004 = vadd.f32 %v977, %v1002
        %v1005 = vadd.f32 %v978, %v1003
        %v1006 = vmul.f32 %v986, %v370
        %v1007 = vmul.f32 %v987, %v370
        %v1008 = vadd.f32 %v1004, %v1006
        %v1009 = vadd.f32 %v1005, %v1007
        %v1010 = vmul.f32 %v998, %v378
        %v1011 = vmul.f32 %v1001, %v378
        %v1012 = vadd.f32 %v1008, %v1010
        %v1013 = vadd.f32 %v1009, %v1011
        %s1014 = scalar_lea.vmem %s244, 160 [#allocation2]
        %1015 = vst [vmem:[%s1014] sm:$0xff] %v1012
        %1016 = vst [vmem:[%s1014 + $0x8] sm:$0xff] %v1013
        %v1017 = vmul.f32 %v933, %v388
        %v1018 = vmul.f32 %v930, %v388
        %v1019 = vadd.f32 %v275, %v1017
        %v1020 = vadd.f32 %v275, %v1018
        %v1021 = vmul.f32 %v924, %v396
        %v1022 = vmul.f32 %v925, %v396
        %v1023 = vadd.f32 %v1019, %v1021
        %v1024 = vadd.f32 %v1020, %v1022
        %v1025 = vmul.f32 %v936, %v404
        %v1026 = vmul.f32 %v939, %v404
        %v1027 = vadd.f32 %v1023, %v1025
        %v1028 = vadd.f32 %v1024, %v1026
        %v1029 = vmul.f32 %v995, %v315
        %v1030 = vmul.f32 %v992, %v315
        %v1031 = vadd.f32 %v1027, %v1029
        %v1032 = vadd.f32 %v1028, %v1030
        %v1033 = vmul.f32 %v986, %v323
        %v1034 = vmul.f32 %v987, %v323
        %v1035 = vadd.f32 %v1031, %v1033
        %v1036 = vadd.f32 %v1032, %v1034
        %v1037 = vmul.f32 %v998, %v331
        %v1038 = vmul.f32 %v1001, %v331
        %v1039 = vadd.f32 %v1035, %v1037
        %v1040 = vadd.f32 %v1036, %v1038
        %s1041 = scalar_lea.vmem %s249, 96
        %v1042 = vld [vmem:[%s1041] sm:$0xf]
        %v1043 = vld [vmem:[%s1041 + $0x4] sm:$0xf]
        %v1044 = vunpack.c.l.bf16 %v1042
        %v1045 = vunpack.c.l.bf16 %v1043
        %v1046 = vmul.f32 %v1044, %v284
        %v1047 = vmul.f32 %v1045, %v284
        %v1048 = vadd.f32 %v1046, %v292
        %v1049 = vadd.f32 %v1047, %v292
        %v1052 = vrot.slane %v1048, 7
        %v1053 = vrot.slane %v1049, 7
        %v1054 = vsel %vm298, %v1052, %v1053
        %v1057 = vsel %vm298, 0.0, %v1052
        %v1058 = vrot.slane %v1048, 1
        %v1059 = vrot.slane %v1049, 1
        %v1060 = vsel %vm305, %v1058, %v1059
        %v1063 = vsel %vm305, %v1059, 0.0
        %v1064 = vmul.f32 %v1057, %v362
        %v1065 = vmul.f32 %v1054, %v362
        %v1066 = vadd.f32 %v1039, %v1064
        %v1067 = vadd.f32 %v1040, %v1065
        %v1068 = vmul.f32 %v1048, %v370
        %v1069 = vmul.f32 %v1049, %v370
        %v1070 = vadd.f32 %v1066, %v1068
        %v1071 = vadd.f32 %v1067, %v1069
        %v1072 = vmul.f32 %v1060, %v378
        %v1073 = vmul.f32 %v1063, %v378
        %v1074 = vadd.f32 %v1070, %v1072
        %v1075 = vadd.f32 %v1071, %v1073
        %s1076 = scalar_lea.vmem %s244, 176 [#allocation2]
        %1077 = vst [vmem:[%s1076] sm:$0xff] %v1074
        %1078 = vst [vmem:[%s1076 + $0x8] sm:$0xff] %v1075
        %v1079 = vmul.f32 %v995, %v388
        %v1080 = vmul.f32 %v992, %v388
        %v1081 = vadd.f32 %v275, %v1079
        %v1082 = vadd.f32 %v275, %v1080
        %v1083 = vmul.f32 %v986, %v396
        %v1084 = vmul.f32 %v987, %v396
        %v1085 = vadd.f32 %v1081, %v1083
        %v1086 = vadd.f32 %v1082, %v1084
        %v1087 = vmul.f32 %v998, %v404
        %v1088 = vmul.f32 %v1001, %v404
        %v1089 = vadd.f32 %v1085, %v1087
        %v1090 = vadd.f32 %v1086, %v1088
        %v1091 = vmul.f32 %v1057, %v315
        %v1092 = vmul.f32 %v1054, %v315
        %v1093 = vadd.f32 %v1089, %v1091
        %v1094 = vadd.f32 %v1090, %v1092
        %v1095 = vmul.f32 %v1048, %v323
        %v1096 = vmul.f32 %v1049, %v323
        %v1097 = vadd.f32 %v1093, %v1095
        %v1098 = vadd.f32 %v1094, %v1096
        %v1099 = vmul.f32 %v1060, %v331
        %v1100 = vmul.f32 %v1063, %v331
        %v1101 = vadd.f32 %v1097, %v1099
        %v1102 = vadd.f32 %v1098, %v1100
        %s1103 = scalar_lea.vmem %s249, 104
        %v1104 = vld [vmem:[%s1103] sm:$0xf]
        %v1105 = vld [vmem:[%s1103 + $0x4] sm:$0xf]
        %v1106 = vunpack.c.l.bf16 %v1104
        %v1107 = vunpack.c.l.bf16 %v1105
        %v1108 = vmul.f32 %v1106, %v284
        %v1109 = vmul.f32 %v1107, %v284
        %v1110 = vadd.f32 %v1108, %v292
        %v1111 = vadd.f32 %v1109, %v292
        %v1114 = vrot.slane %v1110, 7
        %v1115 = vrot.slane %v1111, 7
        %v1116 = vsel %vm298, %v1114, %v1115
        %v1119 = vsel %vm298, 0.0, %v1114
        %v1120 = vrot.slane %v1110, 1
        %v1121 = vrot.slane %v1111, 1
        %v1122 = vsel %vm305, %v1120, %v1121
        %v1125 = vsel %vm305, %v1121, 0.0
        %v1126 = vmul.f32 %v1119, %v362
        %v1127 = vmul.f32 %v1116, %v362
        %v1128 = vadd.f32 %v1101, %v1126
        %v1129 = vadd.f32 %v1102, %v1127
        %v1130 = vmul.f32 %v1110, %v370
        %v1131 = vmul.f32 %v1111, %v370
        %v1132 = vadd.f32 %v1128, %v1130
        %v1133 = vadd.f32 %v1129, %v1131
        %v1134 = vmul.f32 %v1122, %v378
        %v1135 = vmul.f32 %v1125, %v378
        %v1136 = vadd.f32 %v1132, %v1134
        %v1137 = vadd.f32 %v1133, %v1135
        %s1138 = scalar_lea.vmem %s244, 192 [#allocation2]
        %1139 = vst [vmem:[%s1138] sm:$0xff] %v1136
        %1140 = vst [vmem:[%s1138 + $0x8] sm:$0xff] %v1137
        %v1141 = vmul.f32 %v1057, %v388
        %v1142 = vmul.f32 %v1054, %v388
        %v1143 = vadd.f32 %v275, %v1141
        %v1144 = vadd.f32 %v275, %v1142
        %v1145 = vmul.f32 %v1048, %v396
        %v1146 = vmul.f32 %v1049, %v396
        %v1147 = vadd.f32 %v1143, %v1145
        %v1148 = vadd.f32 %v1144, %v1146
        %v1149 = vmul.f32 %v1060, %v404
        %v1150 = vmul.f32 %v1063, %v404
        %v1151 = vadd.f32 %v1147, %v1149
        %v1152 = vadd.f32 %v1148, %v1150
        %v1153 = vmul.f32 %v1119, %v315
        %v1154 = vmul.f32 %v1116, %v315
        %v1155 = vadd.f32 %v1151, %v1153
        %v1156 = vadd.f32 %v1152, %v1154
        %v1157 = vmul.f32 %v1110, %v323
        %v1158 = vmul.f32 %v1111, %v323
        %v1159 = vadd.f32 %v1155, %v1157
        %v1160 = vadd.f32 %v1156, %v1158
        %v1161 = vmul.f32 %v1122, %v331
        %v1162 = vmul.f32 %v1125, %v331
        %v1163 = vadd.f32 %v1159, %v1161
        %v1164 = vadd.f32 %v1160, %v1162
        %s1165 = scalar_lea.vmem %s249, 112
        %v1166 = vld [vmem:[%s1165] sm:$0xf]
        %v1167 = vld [vmem:[%s1165 + $0x4] sm:$0xf]
        %v1168 = vunpack.c.l.bf16 %v1166
        %v1169 = vunpack.c.l.bf16 %v1167
        %v1170 = vmul.f32 %v1168, %v284
        %v1171 = vmul.f32 %v1169, %v284
        %v1172 = vadd.f32 %v1170, %v292
        %v1173 = vadd.f32 %v1171, %v292
        %v1176 = vrot.slane %v1172, 7
        %v1177 = vrot.slane %v1173, 7
        %v1178 = vsel %vm298, %v1176, %v1177
        %v1181 = vsel %vm298, 0.0, %v1176
        %v1182 = vrot.slane %v1172, 1
        %v1183 = vrot.slane %v1173, 1
        %v1184 = vsel %vm305, %v1182, %v1183
        %v1187 = vsel %vm305, %v1183, 0.0
        %v1188 = vmul.f32 %v1181, %v362
        %v1189 = vmul.f32 %v1178, %v362
        %v1190 = vadd.f32 %v1163, %v1188
        %v1191 = vadd.f32 %v1164, %v1189
        %v1192 = vmul.f32 %v1172, %v370
        %v1193 = vmul.f32 %v1173, %v370
        %v1194 = vadd.f32 %v1190, %v1192
        %v1195 = vadd.f32 %v1191, %v1193
        %v1196 = vmul.f32 %v1184, %v378
        %v1197 = vmul.f32 %v1187, %v378
        %v1198 = vadd.f32 %v1194, %v1196
        %v1199 = vadd.f32 %v1195, %v1197
        %s1200 = scalar_lea.vmem %s244, 208 [#allocation2]
        %1201 = vst [vmem:[%s1200] sm:$0xff] %v1198
        %1202 = vst [vmem:[%s1200 + $0x8] sm:$0xff] %v1199
        %v1203 = vmul.f32 %v1119, %v388
        %v1204 = vmul.f32 %v1116, %v388
        %v1205 = vadd.f32 %v275, %v1203
        %v1206 = vadd.f32 %v275, %v1204
        %v1207 = vmul.f32 %v1110, %v396
        %v1208 = vmul.f32 %v1111, %v396
        %v1209 = vadd.f32 %v1205, %v1207
        %v1210 = vadd.f32 %v1206, %v1208
        %v1211 = vmul.f32 %v1122, %v404
        %v1212 = vmul.f32 %v1125, %v404
        %v1213 = vadd.f32 %v1209, %v1211
        %v1214 = vadd.f32 %v1210, %v1212
        %v1215 = vmul.f32 %v1181, %v315
        %v1216 = vmul.f32 %v1178, %v315
        %v1217 = vadd.f32 %v1213, %v1215
        %v1218 = vadd.f32 %v1214, %v1216
        %v1219 = vmul.f32 %v1172, %v323
        %v1220 = vmul.f32 %v1173, %v323
        %v1221 = vadd.f32 %v1217, %v1219
        %v1222 = vadd.f32 %v1218, %v1220
        %v1223 = vmul.f32 %v1184, %v331
        %v1224 = vmul.f32 %v1187, %v331
        %v1225 = vadd.f32 %v1221, %v1223
        %v1226 = vadd.f32 %v1222, %v1224
        %s1227 = scalar_lea.vmem %s249, 120
        %v1228 = vld [vmem:[%s1227] sm:$0xf]
        %v1229 = vld [vmem:[%s1227 + $0x4] sm:$0xf]
        %v1230 = vunpack.c.l.bf16 %v1228
        %v1231 = vunpack.c.l.bf16 %v1229
        %v1232 = vmul.f32 %v1230, %v284
        %v1233 = vmul.f32 %v1231, %v284
        %v1234 = vadd.f32 %v1232, %v292
        %v1235 = vadd.f32 %v1233, %v292
        %v1238 = vrot.slane %v1234, 7
        %v1239 = vrot.slane %v1235, 7
        %v1240 = vsel %vm298, %v1238, %v1239
        %v1243 = vsel %vm298, 0.0, %v1238
        %v1244 = vrot.slane %v1234, 1
        %v1245 = vrot.slane %v1235, 1
        %v1246 = vsel %vm305, %v1244, %v1245
        %v1249 = vsel %vm305, %v1245, 0.0
        %v1250 = vmul.f32 %v1243, %v362
        %v1251 = vmul.f32 %v1240, %v362
        %v1252 = vadd.f32 %v1225, %v1250
        %v1253 = vadd.f32 %v1226, %v1251
        %v1254 = vmul.f32 %v1234, %v370
        %v1255 = vmul.f32 %v1235, %v370
        %v1256 = vadd.f32 %v1252, %v1254
        %v1257 = vadd.f32 %v1253, %v1255
        %v1258 = vmul.f32 %v1246, %v378
        %v1259 = vmul.f32 %v1249, %v378
        %v1260 = vadd.f32 %v1256, %v1258
        %v1261 = vadd.f32 %v1257, %v1259
        %s1262 = scalar_lea.vmem %s244, 224 [#allocation2]
        %1263 = vst [vmem:[%s1262] sm:$0xff] %v1260
        %1264 = vst [vmem:[%s1262 + $0x8] sm:$0xff] %v1261
        %v1265 = vmul.f32 %v1181, %v388
        %v1266 = vmul.f32 %v1178, %v388
        %v1267 = vadd.f32 %v275, %v1265
        %v1268 = vadd.f32 %v275, %v1266
        %v1269 = vmul.f32 %v1172, %v396
        %v1270 = vmul.f32 %v1173, %v396
        %v1271 = vadd.f32 %v1267, %v1269
        %v1272 = vadd.f32 %v1268, %v1270
        %v1273 = vmul.f32 %v1184, %v404
        %v1274 = vmul.f32 %v1187, %v404
        %v1275 = vadd.f32 %v1271, %v1273
        %v1276 = vadd.f32 %v1272, %v1274
        %v1277 = vmul.f32 %v1243, %v315
        %v1278 = vmul.f32 %v1240, %v315
        %v1279 = vadd.f32 %v1275, %v1277
        %v1280 = vadd.f32 %v1276, %v1278
        %v1281 = vmul.f32 %v1234, %v323
        %v1282 = vmul.f32 %v1235, %v323
        %v1283 = vadd.f32 %v1279, %v1281
        %v1284 = vadd.f32 %v1280, %v1282
        %v1285 = vmul.f32 %v1246, %v331
        %v1286 = vmul.f32 %v1249, %v331
        %v1287 = vadd.f32 %v1283, %v1285
        %v1288 = vadd.f32 %v1284, %v1286
        %s1289 = scalar_lea.vmem %s244, 240 [#allocation2]
        %1290 = vst [vmem:[%s1289] sm:$0xff] %v1287
        %1291 = vst [vmem:[%s1289 + $0x8] sm:$0xff] %v1288
        %s1292 = sand.u32 %s159, 1
        %s1293 = scalar_lea.sflag [#allocation3], %s1292
        %s1294 = sand.u32 %s159, 1
        %s1295 = smul.addr %s1294, 256
        %s1296 = scalar_lea.vmem [#allocation2], %s1295
        // Predicated region
        $region45: #{lpi_forward.3} parent=43 // pred_check
          %p1297 = pneg %p169
        $region46: #{lpi_forward.3} parent=43 // pred_check_branch
          %1299 = sbr.rel (%p1297) target = $region48
        $region47: #{lpi_forward.3} parent=43 // pred_region
          %s1301 = ssub.s32 4096, 4096
          %1302 = vsyncadd %s1293, %s1301
          %s1303 = smul.addr %s20, 32
          %s1304 = smul.addr %s1303, 128
          %s1305 = scalar_lea.hbm %s6, %s1304
          %s1306 = sshll.u32 %s1296, 4
          %s1307 = int_to_ptr.vmem [resolvable:$true] %s1306
          %1312 = dma.vmem_to_hbm [thread:$0]  %s1307, 4096, %s1305, %s1293, 128, 128, 8
        $region48: #{lpi_forward.3} parent=43 // pred_fallthru
          _
      $region44: #{lpi_forward.3} parent=5 // pred_fallthru
        _
      %p1313 = scmp.le.s32.totalorder 2, %s15
      // Predicated region
      $region49: #{lpi_forward.3} parent=5 // pred_check
        %p1314 = pneg %p1313
      $region50: #{lpi_forward.3} parent=5 // pred_check_branch
        %1316 = sbr.rel (%p1314) target = $region52
      $region51: #{lpi_forward.3} parent=5 // pred_region
        %s1317 = ssub.s32 %s15, 2
        // Predicated region
        $region53: #{lpi_forward.3} parent=51 // pred_check
          %p1318 = pneg %p175
        $region54: #{lpi_forward.3} parent=51 // pred_check_branch
          %1320 = sbr.rel (%p1318) target = $region56
        $region55: #{lpi_forward.3} parent=51 // pred_region
          %s1321 = sand.u32 %s160, 1
          %s1322 = scalar_lea.sflag [#allocation3], %s1321
          %s1323 = sand.u32 %s160, 1
          %s1324 = smul.addr %s1323, 256
          %s1325 = scalar_lea.vmem [#allocation2], %s1324
          %1326 = dma.done %s1322, 4096
        $region56: #{lpi_forward.3} parent=51 // pred_fallthru
          _
      $region52: #{lpi_forward.3} parent=5 // pred_fallthru
        _
    $region6: #{lpi_forward.3} parent=1 // loop_footer
      %s19 = sadd.s32 1, %s15
    $region7: #{lpi_forward.3} parent=1 // loop_footer_branch
      %14 = sbr.rel target = $region3
    $region8: #{lpi_forward.3} parent=1 // loop_exit
      _
    %1327 = vsyncpa [#allocation3], 1
    %s1328 = scalar_lea.sflag [#allocation3], 1
    %1329 = vsyncpa %s1328, 1

// kernel: lpi_forward.2
$region0: #{lpi_forward.2}
  #allocation0 [shape = 'u32[]', space=smem, size = 0x4, offset = 0x4, fixed_abs, tag = 'smem constant byte address 0x4 - core index']
  #allocation1 [shape = 'u32[144,128]{1,0:T(1,128)}', space=vmem, size = 0x12000, scoped, tag = 'internal scratch']
  %s0 = inlined_call_operand.hbm [shape: f32[2,16,16,128], index: 0, kind: input, shape index: {}]
  %s1 = inlined_call_operand.hbm [shape: f32[3,3,128], index: 1, kind: input, shape index: {}]
  %s2 = inlined_call_operand.vmem [shape: f32[1,128], index: 2, kind: input, shape index: {}]
  %s3 = inlined_call_operand.vmem [shape: bf16[2,16,16,128], index: 3, kind: output, shape index: {0}]
  %s4 = inlined_call_operand.vmem [shape: f32[2,2,128], index: 4, kind: output, shape index: {1}]
  %5 = xla_tuple %s3, %s4
  %s6 = sld [smem:[#allocation0]]
  $region61: #{lpi_forward.2} parent=0
    _
  %s8 = ssub.s32 1, %s6
  %s9 = scalar_select 0, %s8, %s6
  $region1: #{lpi_forward.2} parent=0
    #allocation2 [shape = 'u8[262144]{0}', space=vmem, size = 0x40000, scoped, tag = 'input window, operand 0']
    #allocation3 [shape = 's32[2]{0}', space=sflag, size = 0x8, scoped, tag = 'scoped memory for lpi_forward.2']
    #allocation4 [shape = 'u8[6144]{0}', space=vmem, size = 0x1800, scoped, tag = 'input window, operand 1, single buffered']
    #allocation5 [shape = 's32[1]{0}', space=sflag, size = 0x4, scoped, tag = 'scoped memory for lpi_forward.2']
    %10 = vsyncpa [#allocation3], 0
    %s11 = scalar_lea.sflag [#allocation3], 1
    %12 = vsyncpa %s11, 0
    %13 = vsyncpa [#allocation5], 0
    loop: start=0, step=1, limit=4
    $region2: #{lpi_forward.2} parent=1 // loop_pre_header
      _
    $region3: #{lpi_forward.2} parent=1 // loop_header
      %s15 = sphi 0, %s19
      %p16 = scmp.ge.s32.totalorder %s15, 4
      %s25 = sphi 0, %s27
      %s28 = sphi 0, %s25
      %s29 = sphi 0, %s28
      %s45 = sphi 0, %s29
      %s49 = sphi 0, %s49
      %s51 = sphi 0, %s49
      %s52 = sphi 0, %s51
      %s66 = sphi 0, %s52
      %s70 = sphi 0, %s70
      %s72 = sphi 0, %s70
      %s73 = sphi 0, %s72
      %s87 = sphi 0, %s73
      %s93 = sphi 0, %s95
      %s96 = sphi 0, %s93
      %s97 = sphi 0, %s96
      %s113 = sphi 0, %s97
      %s119 = sphi 0, %s121
      %s122 = sphi 0, %s119
      %s123 = sphi 0, %s122
      %s139 = sphi 0, %s123
    $region4: #{lpi_forward.2} parent=1 // loop_header_branch
      %18 = sbr.rel (%p16) target = $region8
    $region5: #{lpi_forward.2} parent=1 // loop_body
      %s20 = ssub.s32 %s15, 1
      %s21 = ssub.s32 %s15, 2
      %s22 = sadd.s32 %s15, 1
      %s23 = ssub.s32 %s15, %s22
      %p24 = scmp.eq.s32.totalorder %s23, 0
      %s26 = sadd.s32 %s25, 1
      %s27 = scalar_select %p24, %s25, %s26
      %p30 = pneg %p24
      %p31 = scmp.eq.s32.totalorder %s15, 1
      %p32 = por %p30, %p31
      %p33 = scmp.ne.s32.totalorder %s25, %s28
      %p34 = scmp.eq.s32.totalorder %s15, 0
      %p35 = por %p33, %p34
      %p36 = scmp.ne.s32.totalorder %s25, %s28
      %p37 = scmp.eq.s32.totalorder %s20, 1
      %p38 = por %p36, %p37
      %p39 = scmp.ne.s32.totalorder %s28, %s29
      %p40 = scmp.eq.s32.totalorder %s20, 0
      %p41 = por %p39, %p40
      %p42 = scmp.ne.s32.totalorder %s28, %s29
      %p43 = scmp.eq.s32.totalorder %s21, 1
      %p44 = por %p42, %p43
      %p46 = scmp.ne.s32.totalorder %s29, %s45
      %p47 = scmp.eq.s32.totalorder %s21, 0
      %p48 = por %p46, %p47
      %s50 = sadd.s32 %s49, 1
      %p53 = scmp.eq.s32.totalorder %s15, 1
      %p54 = scmp.ne.s32.totalorder %s49, %s51
      %p55 = scmp.eq.s32.totalorder %s15, 0
      %p56 = por %p54, %p55
      %p57 = scmp.ne.s32.totalorder %s49, %s51
      %p58 = scmp.eq.s32.totalorder %s20, 1
      %p59 = por %p57, %p58
      %p60 = scmp.ne.s32.totalorder %s51, %s52
      %p61 = scmp.eq.s32.totalorder %s20, 0
      %p62 = por %p60, %p61
      %p63 = scmp.ne.s32.totalorder %s51, %s52
      %p64 = scmp.eq.s32.totalorder %s21, 1
      %p65 = por %p63, %p64
      %p67 = scmp.ne.s32.totalorder %s52, %s66
      %p68 = scmp.eq.s32.totalorder %s21, 0
      %p69 = por %p67, %p68
      %s71 = sadd.s32 %s70, 1
      %p74 = scmp.eq.s32.totalorder %s15, 1
      %p75 = scmp.ne.s32.totalorder %s70, %s72
      %p76 = scmp.eq.s32.totalorder %s15, 0
      %p77 = por %p75, %p76
      %p78 = scmp.ne.s32.totalorder %s70, %s72
      %p79 = scmp.eq.s32.totalorder %s20, 1
      %p80 = por %p78, %p79
      %p81 = scmp.ne.s32.totalorder %s72, %s73
      %p82 = scmp.eq.s32.totalorder %s20, 0
      %p83 = por %p81, %p82
      %p84 = scmp.ne.s32.totalorder %s72, %s73
      %p85 = scmp.eq.s32.totalorder %s21, 1
      %p86 = por %p84, %p85
      %p88 = scmp.ne.s32.totalorder %s73, %s87
      %p89 = scmp.eq.s32.totalorder %s21, 0
      %p90 = por %p88, %p89
      %s91 = ssub.s32 %s15, %s22
      %p92 = scmp.eq.s32.totalorder %s91, 0
      %s94 = sadd.s32 %s93, 1
      %s95 = scalar_select %p92, %s93, %s94
      %p98 = pneg %p92
      %p99 = scmp.eq.s32.totalorder %s15, 1
      %p100 = por %p98, %p99
      %p101 = scmp.ne.s32.totalorder %s93, %s96
      %p102 = scmp.eq.s32.totalorder %s15, 0
      %p103 = por %p101, %p102
      %p104 = scmp.ne.s32.totalorder %s93, %s96
      %p105 = scmp.eq.s32.totalorder %s20, 1
      %p106 = por %p104, %p105
      %p107 = scmp.ne.s32.totalorder %s96, %s97
      %p108 = scmp.eq.s32.totalorder %s20, 0
      %p109 = por %p107, %p108
      %p110 = scmp.ne.s32.totalorder %s96, %s97
      %p111 = scmp.eq.s32.totalorder %s21, 1
      %p112 = por %p110, %p111
      %p114 = scmp.ne.s32.totalorder %s97, %s113
      %p115 = scmp.eq.s32.totalorder %s21, 0
      %p116 = por %p114, %p115
      %s117 = ssub.s32 %s15, %s22
      %p118 = scmp.eq.s32.totalorder %s117, 0
      %s120 = sadd.s32 %s119, 1
      %s121 = scalar_select %p118, %s119, %s120
      %p124 = pneg %p118
      %p125 = scmp.eq.s32.totalorder %s15, 1
      %p126 = por %p124, %p125
      %p127 = scmp.ne.s32.totalorder %s119, %s122
      %p128 = scmp.eq.s32.totalorder %s15, 0
      %p129 = por %p127, %p128
      %p130 = scmp.ne.s32.totalorder %s119, %s122
      %p131 = scmp.eq.s32.totalorder %s20, 1
      %p132 = por %p130, %p131
      %p133 = scmp.ne.s32.totalorder %s122, %s123
      %p134 = scmp.eq.s32.totalorder %s20, 0
      %p135 = por %p133, %p134
      %p136 = scmp.ne.s32.totalorder %s122, %s123
      %p137 = scmp.eq.s32.totalorder %s21, 1
      %p138 = por %p136, %p137
      %p140 = scmp.ne.s32.totalorder %s123, %s139
      %p141 = scmp.eq.s32.totalorder %s21, 0
      %p142 = por %p140, %p141
      %p143 = scmp.le.s32.totalorder 1, %s15
      %p144 = scmp.lt.s32.totalorder %s15, 3
      %p145 = pnand %p143, %p144
      %p146 = pneg %p145
      // Predicated region
      $region9: #{lpi_forward.2} parent=5 // pred_check
        _
      $region10: #{lpi_forward.2} parent=5 // pred_check_branch
        %148 = sbr.rel (%p145) target = $region12
      $region11: #{lpi_forward.2} parent=5 // pred_region
        %s149 = ssub.s32 %s15, 1
        // Predicated region
        $region13: #{lpi_forward.2} parent=11 // pred_check
          %p150 = pneg %p62
        $region14: #{lpi_forward.2} parent=11 // pred_check_branch
          %152 = sbr.rel (%p150) target = $region16
        $region15: #{lpi_forward.2} parent=11 // pred_region
          %s154 = ssub.s32 192, 192
          %155 = vsyncadd [#allocation5], %s154
          %s156 = sshll.u32 [#allocation4], 4
          %s157 = int_to_ptr.vmem [resolvable:$true] %s156
          %162 = dma.hbm_to_vmem [thread:$0]  %s1, 192, %s157, [#allocation5], 64, 64, 4
        $region16: #{lpi_forward.2} parent=11 // pred_fallthru
          _
        // Predicated region
        $region17: #{lpi_forward.2} parent=11 // pred_check
          %p163 = pneg %p83
        $region18: #{lpi_forward.2} parent=11 // pred_check_branch
          %165 = sbr.rel (%p163) target = $region20
        $region19: #{lpi_forward.2} parent=11 // pred_region
          _
        $region20: #{lpi_forward.2} parent=11 // pred_fallthru
          _
      $region12: #{lpi_forward.2} parent=5 // pred_fallthru
        _
      %p166 = scmp.lt.s32.totalorder %s15, 2
      // Predicated region
      $region21: #{lpi_forward.2} parent=5 // pred_check
        %p167 = pneg %p166
      $region22: #{lpi_forward.2} parent=5 // pred_check_branch
        %169 = sbr.rel (%p167) target = $region24
      $region23: #{lpi_forward.2} parent=5 // pred_region
        // Predicated region
        $region25: #{lpi_forward.2} parent=23 // pred_check
          %p170 = pneg %p35
        $region26: #{lpi_forward.2} parent=23 // pred_check_branch
          %172 = sbr.rel (%p170) target = $region28
        $region27: #{lpi_forward.2} parent=23 // pred_region
          %s173 = sand.u32 %s25, 1
          %s174 = scalar_lea.sflag [#allocation3], %s173
          %s175 = sand.u32 %s25, 1
          %s176 = smul.addr %s175, 256
          %s177 = scalar_lea.vmem [#allocation2], %s176
          %s179 = ssub.s32 4096, 4096
          %180 = vsyncadd %s174, %s179
          %s181 = smul.addr %s15, 32
          %s182 = smul.addr %s181, 128
          %s183 = scalar_lea.hbm %s0, %s182
          %s184 = sshll.u32 %s177, 4
          %s185 = int_to_ptr.vmem [resolvable:$true] %s184
          %190 = dma.hbm_to_vmem [thread:$0]  %s183, 4096, %s185, %s174, 128, 128, 8
        $region28: #{lpi_forward.2} parent=23 // pred_fallthru
          _
      $region24: #{lpi_forward.2} parent=5 // pred_fallthru
        _
      %p191 = scmp.le.s32.totalorder 1, %s15
      %p192 = scmp.lt.s32.totalorder %s15, 3
      %p193 = pnand %p191, %p192
      %p194 = pneg %p193
      // Predicated region
      $region29: #{lpi_forward.2} parent=5 // pred_check
        _
      $region30: #{lpi_forward.2} parent=5 // pred_check_branch
        %196 = sbr.rel (%p193) target = $region32
      $region31: #{lpi_forward.2} parent=5 // pred_region
        %s197 = ssub.s32 %s15, 1
        %s198 = sand.u32 %s28, 1
        %s199 = scalar_lea.sflag [#allocation3], %s198
        %s200 = sand.u32 %s28, 1
        %s201 = smul.addr %s200, 256
        %s202 = scalar_lea.vmem [#allocation2], %s201
        // Predicated region
        $region33: #{lpi_forward.2} parent=31 // pred_check
          %p203 = pneg %p41
        $region34: #{lpi_forward.2} parent=31 // pred_check_branch
          %205 = sbr.rel (%p203) target = $region36
        $region35: #{lpi_forward.2} parent=31 // pred_region
          %206 = dma.done %s199, 4096
        $region36: #{lpi_forward.2} parent=31 // pred_fallthru
          _
        // Predicated region
        $region37: #{lpi_forward.2} parent=31 // pred_check
          %p207 = pneg %p62
        $region38: #{lpi_forward.2} parent=31 // pred_check_branch
          %209 = sbr.rel (%p207) target = $region40
        $region39: #{lpi_forward.2} parent=31 // pred_region
          %210 = dma.done [#allocation5], 192
        $region40: #{lpi_forward.2} parent=31 // pred_fallthru
          _
        %s211 = sand.u32 %s28, 1
        %s212 = scalar_lea.sflag [#allocation3], %s211
        %s213 = sand.u32 %s28, 1
        %s214 = smul.addr %s213, 256
        %s215 = scalar_lea.vmem [#allocation2], %s214
        %p216 = pneg %p41
        %p217 = pneg %p38
        %p218 = pneg %p62
        %p219 = pneg %p59
        %p220 = pneg %p83
        %p221 = pneg %p80
        %p222 = pneg %p109
        %p223 = pneg %p106
        %p224 = scmp.lt.s32.totalorder %s20, 1
        %s225 = scalar_select %p224, %s20, 1
        %s226 = smul.addr %s225, 32
        %s227 = smul.addr %s226, 4
        %s228 = scalar_lea.vmem %s3, %s227
        %p229 = pneg %p135
        %p230 = pneg %p132
        %p231 = scmp.lt.s32.totalorder %s20, 1
        %s232 = scalar_select %p231, %s20, 1
        %s233 = smul.addr %s232, 2
        %s234 = scalar_lea.vmem %s4, %s233
        %p235 = scmp.lt.s32.totalorder %s20, 1
        %s236 = scalar_select %p235, %s20, 1
        %s237 = smul.addr %s236, 32
        %s238 = smul.addr %s237, 4
        %s239 = scalar_lea.vmem %s3, %s238
        %p240 = scmp.lt.s32.totalorder %s20, 1
        %s241 = scalar_select %p240, %s20, 1
        %s242 = smul.addr %s241, 2
        %s243 = scalar_lea.vmem %s4, %s242
        %v244 = vld [vmem:[#allocation4] sm:$0x7]
        %v245 = vld [vmem:[#allocation4 + $0x4] sm:$0x7]
        %v246 = vld [vmem:[#allocation4 + $0x8] sm:$0x7]
        %v247 = vld [vmem:[%s2] sm:$0x1]
        %v249 = vlaneseq
        %v250 = vshrl.u32 %v249, 7
        %v251 = vsub.s32 0, %v250
        %v252 = vrot.slane %v247, %v251
        %v254 = vadd.f32 %v252, 0.0
        %v255 = vld [vmem:[%s202] sm:$0xff]
        %v256 = vld [vmem:[%s202 + $0x8] sm:$0xff]
        %vm259 = vcmask 1040384
        %v260 = vrot.slane %v255, 7
        %v261 = vrot.slane %v256, 7
        %v262 = vsel %vm259, %v260, %v261
        %v265 = vsel %vm259, 0.0, %v260
        %vm266 = vcmask 1046528
        %v267 = vrot.slane %v255, 1
        %v268 = vrot.slane %v256, 1
        %v269 = vsel %vm266, %v267, %v268
        %v272 = vsel %vm266, %v268, 0.0
        %v273 = vlaneseq
        %v274 = vshrl.u32 %v273, 7
        %v275 = vsub.s32 0, %v274
        %v276 = vrot.slane %v245, %v275
        %v277 = vmul.f32 %v265, %v276
        %v278 = vmul.f32 %v262, %v276
        %v279 = vadd.f32 %v254, %v277
        %v280 = vadd.f32 %v254, %v278
        %v281 = vlaneseq
        %v282 = vshrl.u32 %v281, 7
        %v283 = vsub.s32 1, %v282
        %v284 = vrot.slane %v245, %v283
        %v285 = vmul.f32 %v255, %v284
        %v286 = vmul.f32 %v256, %v284
        %v287 = vadd.f32 %v279, %v285
        %v288 = vadd.f32 %v280, %v286
        %v289 = vlaneseq
        %v290 = vshrl.u32 %v289, 7
        %v291 = vsub.s32 2, %v290
        %v292 = vrot.slane %v245, %v291
        %v293 = vmul.f32 %v269, %v292
        %v294 = vmul.f32 %v272, %v292
        %v295 = vadd.f32 %v287, %v293
        %v296 = vadd.f32 %v288, %v294
        %s297 = scalar_lea.vmem %s202, 16 [#allocation2]
        %v298 = vld [vmem:[%s297] sm:$0xff]
        %v299 = vld [vmem:[%s297 + $0x8] sm:$0xff]
        %v302 = vrot.slane %v298, 7
        %v303 = vrot.slane %v299, 7
        %v304 = vsel %vm259, %v302, %v303
        %v307 = vsel %vm259, 0.0, %v302
        %v308 = vrot.slane %v298, 1
        %v309 = vrot.slane %v299, 1
        %v310 = vsel %vm266, %v308, %v309
        %v313 = vsel %vm266, %v309, 0.0
        %v314 = vlaneseq
        %v315 = vshrl.u32 %v314, 7
        %v316 = vsub.s32 0, %v315
        %v317 = vrot.slane %v246, %v316
        %v318 = vmul.f32 %v307, %v317
        %v319 = vmul.f32 %v304, %v317
        %v320 = vadd.f32 %v295, %v318
        %v321 = vadd.f32 %v296, %v319
        %v322 = vlaneseq
        %v323 = vshrl.u32 %v322, 7
        %v324 = vsub.s32 1, %v323
        %v325 = vrot.slane %v246, %v324
        %v326 = vmul.f32 %v298, %v325
        %v327 = vmul.f32 %v299, %v325
        %v328 = vadd.f32 %v320, %v326
        %v329 = vadd.f32 %v321, %v327
        %v330 = vlaneseq
        %v331 = vshrl.u32 %v330, 7
        %v332 = vsub.s32 2, %v331
        %v333 = vrot.slane %v246, %v332
        %v334 = vmul.f32 %v310, %v333
        %v335 = vmul.f32 %v313, %v333
        %v336 = vadd.f32 %v328, %v334
        %v337 = vadd.f32 %v329, %v335
        %v338 = vmul.f32 %v336, 0.5
        %v339 = vmul.f32 %v337, 0.5
        %v340 = vmul.f32 %v336, 0.70710677
        %v341 = vmul.f32 %v337, 0.70710677
        %v342 = verf.f32.pop %v340
        %v343 = verf.f32.pop %v341
        %v344 = vadd.f32 %v342, 1.0
        %v345 = vadd.f32 %v343, 1.0
        %v346 = vmul.f32 %v338, %v344
        %v347 = vmul.f32 %v339, %v345
        %v348 = vpack.c.bf16 %v347, %v346
        %v350 = vunpack.c.l.b16 %v348
        %v351 = vunpack.c.h.b16 %v348
        %v352 = vpack.c.b16 %v350, %v350
        %v353 = vpack.c.b16 %v351, %v351
        %356 = vst [vmem:[%s239] sm:$0xf] %v352
        %357 = vst [vmem:[%s239 + $0x4] sm:$0xf] %v353
        %v358 = vadd.f32 %v346, %v347
        %v359 = vrot.slane %v358, 4
        %v360 = vadd.f32 %v358, %v359
        %v361 = vrot.slane %v360, 2
        %v362 = vadd.f32 %v360, %v361
        %v363 = vrot.slane %v362, 1
        %v364 = vadd.f32 %v362, %v363
        %v365 = vadd.f32 %v364, 0.0
        %v366 = vmul.f32 %v346, %v346
        %v367 = vmul.f32 %v347, %v347
        %v368 = vadd.f32 %v366, %v367
        %v369 = vrot.slane %v368, 4
        %v370 = vadd.f32 %v368, %v369
        %v371 = vrot.slane %v370, 2
        %v372 = vadd.f32 %v370, %v371
        %v373 = vrot.slane %v372, 1
        %v374 = vadd.f32 %v372, %v373
        %v375 = vadd.f32 %v374, 0.0
        %v376 = vlaneseq
        %v377 = vshrl.u32 %v376, 7
        %v378 = vsub.s32 0, %v377
        %v379 = vrot.slane %v244, %v378
        %v380 = vmul.f32 %v265, %v379
        %v381 = vmul.f32 %v262, %v379
        %v382 = vadd.f32 %v254, %v380
        %v383 = vadd.f32 %v254, %v381
        %v384 = vlaneseq
        %v385 = vshrl.u32 %v384, 7
        %v386 = vsub.s32 1, %v385
        %v387 = vrot.slane %v244, %v386
        %v388 = vmul.f32 %v255, %v387
        %v389 = vmul.f32 %v256, %v387
        %v390 = vadd.f32 %v382, %v388
        %v391 = vadd.f32 %v383, %v389
        %v392 = vlaneseq
        %v393 = vshrl.u32 %v392, 7
        %v394 = vsub.s32 2, %v393
        %v395 = vrot.slane %v244, %v394
        %v396 = vmul.f32 %v269, %v395
        %v397 = vmul.f32 %v272, %v395
        %v398 = vadd.f32 %v390, %v396
        %v399 = vadd.f32 %v391, %v397
        %v400 = vmul.f32 %v307, %v276
        %v401 = vmul.f32 %v304, %v276
        %v402 = vadd.f32 %v398, %v400
        %v403 = vadd.f32 %v399, %v401
        %v404 = vmul.f32 %v298, %v284
        %v405 = vmul.f32 %v299, %v284
        %v406 = vadd.f32 %v402, %v404
        %v407 = vadd.f32 %v403, %v405
        %v408 = vmul.f32 %v310, %v292
        %v409 = vmul.f32 %v313, %v292
        %v410 = vadd.f32 %v406, %v408
        %v411 = vadd.f32 %v407, %v409
        %s412 = scalar_lea.vmem %s202, 32 [#allocation2]
        %v413 = vld [vmem:[%s412] sm:$0xff]
        %v414 = vld [vmem:[%s412 + $0x8] sm:$0xff]
        %v417 = vrot.slane %v413, 7
        %v418 = vrot.slane %v414, 7
        %v419 = vsel %vm259, %v417, %v418
        %v422 = vsel %vm259, 0.0, %v417
        %v423 = vrot.slane %v413, 1
        %v424 = vrot.slane %v414, 1
        %v425 = vsel %vm266, %v423, %v424
        %v428 = vsel %vm266, %v424, 0.0
        %v429 = vmul.f32 %v422, %v317
        %v430 = vmul.f32 %v419, %v317
        %v431 = vadd.f32 %v410, %v429
        %v432 = vadd.f32 %v411, %v430
        %v433 = vmul.f32 %v413, %v325
        %v434 = vmul.f32 %v414, %v325
        %v435 = vadd.f32 %v431, %v433
        %v436 = vadd.f32 %v432, %v434
        %v437 = vmul.f32 %v425, %v333
        %v438 = vmul.f32 %v428, %v333
        %v439 = vadd.f32 %v435, %v437
        %v440 = vadd.f32 %v436, %v438
        %v441 = vmul.f32 %v439, 0.5
        %v442 = vmul.f32 %v440, 0.5
        %v443 = vmul.f32 %v439, 0.70710677
        %v444 = vmul.f32 %v440, 0.70710677
        %v445 = verf.f32.pop %v443
        %v446 = verf.f32.pop %v444
        %v447 = vadd.f32 %v445, 1.0
        %v448 = vadd.f32 %v446, 1.0
        %v449 = vmul.f32 %v441, %v447
        %v450 = vmul.f32 %v442, %v448
        %v451 = vpack.c.bf16 %v450, %v449
        %v453 = vunpack.c.l.b16 %v451
        %v454 = vunpack.c.h.b16 %v451
        %v455 = vpack.c.b16 %v453, %v453
        %v456 = vpack.c.b16 %v454, %v454
        %s459 = scalar_lea.vmem %s239, 8
        %460 = vst [vmem:[%s459] sm:$0xf] %v455
        %461 = vst [vmem:[%s459 + $0x4] sm:$0xf] %v456
        %v462 = vadd.f32 %v449, %v450
        %v463 = vrot.slane %v462, 4
        %v464 = vadd.f32 %v462, %v463
        %v465 = vrot.slane %v464, 2
        %v466 = vadd.f32 %v464, %v465
        %v467 = vrot.slane %v466, 1
        %v468 = vadd.f32 %v466, %v467
        %v469 = vadd.f32 %v365, %v468
        %v470 = vmul.f32 %v449, %v449
        %v471 = vmul.f32 %v450, %v450
        %v472 = vadd.f32 %v470, %v471
        %v473 = vrot.slane %v472, 4
        %v474 = vadd.f32 %v472, %v473
        %v475 = vrot.slane %v474, 2
        %v476 = vadd.f32 %v474, %v475
        %v477 = vrot.slane %v476, 1
        %v478 = vadd.f32 %v476, %v477
        %v479 = vadd.f32 %v375, %v478
        %v480 = vmul.f32 %v307, %v379
        %v481 = vmul.f32 %v304, %v379
        %v482 = vadd.f32 %v254, %v480
        %v483 = vadd.f32 %v254, %v481
        %v484 = vmul.f32 %v298, %v387
        %v485 = vmul.f32 %v299, %v387
        %v486 = vadd.f32 %v482, %v484
        %v487 = vadd.f32 %v483, %v485
        %v488 = vmul.f32 %v310, %v395
        %v489 = vmul.f32 %v313, %v395
        %v490 = vadd.f32 %v486, %v488
        %v491 = vadd.f32 %v487, %v489
        %v492 = vmul.f32 %v422, %v276
        %v493 = vmul.f32 %v419, %v276
        %v494 = vadd.f32 %v490, %v492
        %v495 = vadd.f32 %v491, %v493
        %v496 = vmul.f32 %v413, %v284
        %v497 = vmul.f32 %v414, %v284
        %v498 = vadd.f32 %v494, %v496
        %v499 = vadd.f32 %v495, %v497
        %v500 = vmul.f32 %v425, %v292
        %v501 = vmul.f32 %v428, %v292
        %v502 = vadd.f32 %v498, %v500
        %v503 = vadd.f32 %v499, %v501
        %s504 = scalar_lea.vmem %s202, 48 [#allocation2]
        %v505 = vld [vmem:[%s504] sm:$0xff]
        %v506 = vld [vmem:[%s504 + $0x8] sm:$0xff]
        %v509 = vrot.slane %v505, 7
        %v510 = vrot.slane %v506, 7
        %v511 = vsel %vm259, %v509, %v510
        %v514 = vsel %vm259, 0.0, %v509
        %v515 = vrot.slane %v505, 1
        %v516 = vrot.slane %v506, 1
        %v517 = vsel %vm266, %v515, %v516
        %v520 = vsel %vm266, %v516, 0.0
        %v521 = vmul.f32 %v514, %v317
        %v522 = vmul.f32 %v511, %v317
        %v523 = vadd.f32 %v502, %v521
        %v524 = vadd.f32 %v503, %v522
        %v525 = vmul.f32 %v505, %v325
        %v526 = vmul.f32 %v506, %v325
        %v527 = vadd.f32 %v523, %v525
        %v528 = vadd.f32 %v524, %v526
        %v529 = vmul.f32 %v517, %v333
        %v530 = vmul.f32 %v520, %v333
        %v531 = vadd.f32 %v527, %v529
        %v532 = vadd.f32 %v528, %v530
        %v533 = vmul.f32 %v531, 0.5
        %v534 = vmul.f32 %v532, 0.5
        %v535 = vmul.f32 %v531, 0.70710677
        %v536 = vmul.f32 %v532, 0.70710677
        %v537 = verf.f32.pop %v535
        %v538 = verf.f32.pop %v536
        %v539 = vadd.f32 %v537, 1.0
        %v540 = vadd.f32 %v538, 1.0
        %v541 = vmul.f32 %v533, %v539
        %v542 = vmul.f32 %v534, %v540
        %v543 = vpack.c.bf16 %v542, %v541
        %v545 = vunpack.c.l.b16 %v543
        %v546 = vunpack.c.h.b16 %v543
        %v547 = vpack.c.b16 %v545, %v545
        %v548 = vpack.c.b16 %v546, %v546
        %s551 = scalar_lea.vmem %s239, 16
        %552 = vst [vmem:[%s551] sm:$0xf] %v547
        %553 = vst [vmem:[%s551 + $0x4] sm:$0xf] %v548
        %v554 = vadd.f32 %v541, %v542
        %v555 = vrot.slane %v554, 4
        %v556 = vadd.f32 %v554, %v555
        %v557 = vrot.slane %v556, 2
        %v558 = vadd.f32 %v556, %v557
        %v559 = vrot.slane %v558, 1
        %v560 = vadd.f32 %v558, %v559
        %v561 = vadd.f32 %v469, %v560
        %v562 = vmul.f32 %v541, %v541
        %v563 = vmul.f32 %v542, %v542
        %v564 = vadd.f32 %v562, %v563
        %v565 = vrot.slane %v564, 4
        %v566 = vadd.f32 %v564, %v565
        %v567 = vrot.slane %v566, 2
        %v568 = vadd.f32 %v566, %v567
        %v569 = vrot.slane %v568, 1
        %v570 = vadd.f32 %v568, %v569
        %v571 = vadd.f32 %v479, %v570
        %v572 = vmul.f32 %v422, %v379
        %v573 = vmul.f32 %v419, %v379
        %v574 = vadd.f32 %v254, %v572
        %v575 = vadd.f32 %v254, %v573
        %v576 = vmul.f32 %v413, %v387
        %v577 = vmul.f32 %v414, %v387
        %v578 = vadd.f32 %v574, %v576
        %v579 = vadd.f32 %v575, %v577
        %v580 = vmul.f32 %v425, %v395
        %v581 = vmul.f32 %v428, %v395
        %v582 = vadd.f32 %v578, %v580
        %v583 = vadd.f32 %v579, %v581
        %v584 = vmul.f32 %v514, %v276
        %v585 = vmul.f32 %v511, %v276
        %v586 = vadd.f32 %v582, %v584
        %v587 = vadd.f32 %v583, %v585
        %v588 = vmul.f32 %v505, %v284
        %v589 = vmul.f32 %v506, %v284
        %v590 = vadd.f32 %v586, %v588
        %v591 = vadd.f32 %v587, %v589
        %v592 = vmul.f32 %v517, %v292
        %v593 = vmul.f32 %v520, %v292
        %v594 = vadd.f32 %v590, %v592
        %v595 = vadd.f32 %v591, %v593
        %s596 = scalar_lea.vmem %s202, 64 [#allocation2]
        %v597 = vld [vmem:[%s596] sm:$0xff]
        %v598 = vld [vmem:[%s596 + $0x8] sm:$0xff]
        %v601 = vrot.slane %v597, 7
        %v602 = vrot.slane %v598, 7
        %v603 = vsel %vm259, %v601, %v602
        %v606 = vsel %vm259, 0.0, %v601
        %v607 = vrot.slane %v597, 1
        %v608 = vrot.slane %v598, 1
        %v609 = vsel %vm266, %v607, %v608
        %v612 = vsel %vm266, %v608, 0.0
        %v613 = vmul.f32 %v606, %v317
        %v614 = vmul.f32 %v603, %v317
        %v615 = vadd.f32 %v594, %v613
        %v616 = vadd.f32 %v595, %v614
        %v617 = vmul.f32 %v597, %v325
        %v618 = vmul.f32 %v598, %v325
        %v619 = vadd.f32 %v615, %v617
        %v620 = vadd.f32 %v616, %v618
        %v621 = vmul.f32 %v609, %v333
        %v622 = vmul.f32 %v612, %v333
        %v623 = vadd.f32 %v619, %v621
        %v624 = vadd.f32 %v620, %v622
        %v625 = vmul.f32 %v623, 0.5
        %v626 = vmul.f32 %v624, 0.5
        %v627 = vmul.f32 %v623, 0.70710677
        %v628 = vmul.f32 %v624, 0.70710677
        %v629 = verf.f32.pop %v627
        %v630 = verf.f32.pop %v628
        %v631 = vadd.f32 %v629, 1.0
        %v632 = vadd.f32 %v630, 1.0
        %v633 = vmul.f32 %v625, %v631
        %v634 = vmul.f32 %v626, %v632
        %v635 = vpack.c.bf16 %v634, %v633
        %v637 = vunpack.c.l.b16 %v635
        %v638 = vunpack.c.h.b16 %v635
        %v639 = vpack.c.b16 %v637, %v637
        %v640 = vpack.c.b16 %v638, %v638
        %s643 = scalar_lea.vmem %s239, 24
        %644 = vst [vmem:[%s643] sm:$0xf] %v639
        %645 = vst [vmem:[%s643 + $0x4] sm:$0xf] %v640
        %v646 = vadd.f32 %v633, %v634
        %v647 = vrot.slane %v646, 4
        %v648 = vadd.f32 %v646, %v647
        %v649 = vrot.slane %v648, 2
        %v650 = vadd.f32 %v648, %v649
        %v651 = vrot.slane %v650, 1
        %v652 = vadd.f32 %v650, %v651
        %v653 = vadd.f32 %v561, %v652
        %v654 = vmul.f32 %v633, %v633
        %v655 = vmul.f32 %v634, %v634
        %v656 = vadd.f32 %v654, %v655
        %v657 = vrot.slane %v656, 4
        %v658 = vadd.f32 %v656, %v657
        %v659 = vrot.slane %v658, 2
        %v660 = vadd.f32 %v658, %v659
        %v661 = vrot.slane %v660, 1
        %v662 = vadd.f32 %v660, %v661
        %v663 = vadd.f32 %v571, %v662
        %v664 = vmul.f32 %v514, %v379
        %v665 = vmul.f32 %v511, %v379
        %v666 = vadd.f32 %v254, %v664
        %v667 = vadd.f32 %v254, %v665
        %v668 = vmul.f32 %v505, %v387
        %v669 = vmul.f32 %v506, %v387
        %v670 = vadd.f32 %v666, %v668
        %v671 = vadd.f32 %v667, %v669
        %v672 = vmul.f32 %v517, %v395
        %v673 = vmul.f32 %v520, %v395
        %v674 = vadd.f32 %v670, %v672
        %v675 = vadd.f32 %v671, %v673
        %v676 = vmul.f32 %v606, %v276
        %v677 = vmul.f32 %v603, %v276
        %v678 = vadd.f32 %v674, %v676
        %v679 = vadd.f32 %v675, %v677
        %v680 = vmul.f32 %v597, %v284
        %v681 = vmul.f32 %v598, %v284
        %v682 = vadd.f32 %v678, %v680
        %v683 = vadd.f32 %v679, %v681
        %v684 = vmul.f32 %v609, %v292
        %v685 = vmul.f32 %v612, %v292
        %v686 = vadd.f32 %v682, %v684
        %v687 = vadd.f32 %v683, %v685
        %s688 = scalar_lea.vmem %s202, 80 [#allocation2]
        %v689 = vld [vmem:[%s688] sm:$0xff]
        %v690 = vld [vmem:[%s688 + $0x8] sm:$0xff]
        %v693 = vrot.slane %v689, 7
        %v694 = vrot.slane %v690, 7
        %v695 = vsel %vm259, %v693, %v694
        %v698 = vsel %vm259, 0.0, %v693
        %v699 = vrot.slane %v689, 1
        %v700 = vrot.slane %v690, 1
        %v701 = vsel %vm266, %v699, %v700
        %v704 = vsel %vm266, %v700, 0.0
        %v705 = vmul.f32 %v698, %v317
        %v706 = vmul.f32 %v695, %v317
        %v707 = vadd.f32 %v686, %v705
        %v708 = vadd.f32 %v687, %v706
        %v709 = vmul.f32 %v689, %v325
        %v710 = vmul.f32 %v690, %v325
        %v711 = vadd.f32 %v707, %v709
        %v712 = vadd.f32 %v708, %v710
        %v713 = vmul.f32 %v701, %v333
        %v714 = vmul.f32 %v704, %v333
        %v715 = vadd.f32 %v711, %v713
        %v716 = vadd.f32 %v712, %v714
        %v717 = vmul.f32 %v715, 0.5
        %v718 = vmul.f32 %v716, 0.5
        %v719 = vmul.f32 %v715, 0.70710677
        %v720 = vmul.f32 %v716, 0.70710677
        %v721 = verf.f32.pop %v719
        %v722 = verf.f32.pop %v720
        %v723 = vadd.f32 %v721, 1.0
        %v724 = vadd.f32 %v722, 1.0
        %v725 = vmul.f32 %v717, %v723
        %v726 = vmul.f32 %v718, %v724
        %v727 = vpack.c.bf16 %v726, %v725
        %v729 = vunpack.c.l.b16 %v727
        %v730 = vunpack.c.h.b16 %v727
        %v731 = vpack.c.b16 %v729, %v729
        %v732 = vpack.c.b16 %v730, %v730
        %s735 = scalar_lea.vmem %s239, 32
        %736 = vst [vmem:[%s735] sm:$0xf] %v731
        %737 = vst [vmem:[%s735 + $0x4] sm:$0xf] %v732
        %v738 = vadd.f32 %v725, %v726
        %v739 = vrot.slane %v738, 4
        %v740 = vadd.f32 %v738, %v739
        %v741 = vrot.slane %v740, 2
        %v742 = vadd.f32 %v740, %v741
        %v743 = vrot.slane %v742, 1
        %v744 = vadd.f32 %v742, %v743
        %v745 = vadd.f32 %v653, %v744
        %v746 = vmul.f32 %v725, %v725
        %v747 = vmul.f32 %v726, %v726
        %v748 = vadd.f32 %v746, %v747
        %v749 = vrot.slane %v748, 4
        %v750 = vadd.f32 %v748, %v749
        %v751 = vrot.slane %v750, 2
        %v752 = vadd.f32 %v750, %v751
        %v753 = vrot.slane %v752, 1
        %v754 = vadd.f32 %v752, %v753
        %v755 = vadd.f32 %v663, %v754
        %v756 = vmul.f32 %v606, %v379
        %v757 = vmul.f32 %v603, %v379
        %v758 = vadd.f32 %v254, %v756
        %v759 = vadd.f32 %v254, %v757
        %v760 = vmul.f32 %v597, %v387
        %v761 = vmul.f32 %v598, %v387
        %v762 = vadd.f32 %v758, %v760
        %v763 = vadd.f32 %v759, %v761
        %v764 = vmul.f32 %v609, %v395
        %v765 = vmul.f32 %v612, %v395
        %v766 = vadd.f32 %v762, %v764
        %v767 = vadd.f32 %v763, %v765
        %v768 = vmul.f32 %v698, %v276
        %v769 = vmul.f32 %v695, %v276
        %v770 = vadd.f32 %v766, %v768
        %v771 = vadd.f32 %v767, %v769
        %v772 = vmul.f32 %v689, %v284
        %v773 = vmul.f32 %v690, %v284
        %v774 = vadd.f32 %v770, %v772
        %v775 = vadd.f32 %v771, %v773
        %v776 = vmul.f32 %v701, %v292
        %v777 = vmul.f32 %v704, %v292
        %v778 = vadd.f32 %v774, %v776
        %v779 = vadd.f32 %v775, %v777
        %s780 = scalar_lea.vmem %s202, 96 [#allocation2]
        %v781 = vld [vmem:[%s780] sm:$0xff]
        %v782 = vld [vmem:[%s780 + $0x8] sm:$0xff]
        %v785 = vrot.slane %v781, 7
        %v786 = vrot.slane %v782, 7
        %v787 = vsel %vm259, %v785, %v786
        %v790 = vsel %vm259, 0.0, %v785
        %v791 = vrot.slane %v781, 1
        %v792 = vrot.slane %v782, 1
        %v793 = vsel %vm266, %v791, %v792
        %v796 = vsel %vm266, %v792, 0.0
        %v797 = vmul.f32 %v790, %v317
        %v798 = vmul.f32 %v787, %v317
        %v799 = vadd.f32 %v778, %v797
        %v800 = vadd.f32 %v779, %v798
        %v801 = vmul.f32 %v781, %v325
        %v802 = vmul.f32 %v782, %v325
        %v803 = vadd.f32 %v799, %v801
        %v804 = vadd.f32 %v800, %v802
        %v805 = vmul.f32 %v793, %v333
        %v806 = vmul.f32 %v796, %v333
        %v807 = vadd.f32 %v803, %v805
        %v808 = vadd.f32 %v804, %v806
        %v809 = vmul.f32 %v807, 0.5
        %v810 = vmul.f32 %v808, 0.5
        %v811 = vmul.f32 %v807, 0.70710677
        %v812 = vmul.f32 %v808, 0.70710677
        %v813 = verf.f32.pop %v811
        %v814 = verf.f32.pop %v812
        %v815 = vadd.f32 %v813, 1.0
        %v816 = vadd.f32 %v814, 1.0
        %v817 = vmul.f32 %v809, %v815
        %v818 = vmul.f32 %v810, %v816
        %v819 = vpack.c.bf16 %v818, %v817
        %v821 = vunpack.c.l.b16 %v819
        %v822 = vunpack.c.h.b16 %v819
        %v823 = vpack.c.b16 %v821, %v821
        %v824 = vpack.c.b16 %v822, %v822
        %s827 = scalar_lea.vmem %s239, 40
        %828 = vst [vmem:[%s827] sm:$0xf] %v823
        %829 = vst [vmem:[%s827 + $0x4] sm:$0xf] %v824
        %v830 = vadd.f32 %v817, %v818
        %v831 = vrot.slane %v830, 4
        %v832 = vadd.f32 %v830, %v831
        %v833 = vrot.slane %v832, 2
        %v834 = vadd.f32 %v832, %v833
        %v835 = vrot.slane %v834, 1
        %v836 = vadd.f32 %v834, %v835
        %v837 = vadd.f32 %v745, %v836
        %v838 = vmul.f32 %v817, %v817
        %v839 = vmul.f32 %v818, %v818
        %v840 = vadd.f32 %v838, %v839
        %v841 = vrot.slane %v840, 4
        %v842 = vadd.f32 %v840, %v841
        %v843 = vrot.slane %v842, 2
        %v844 = vadd.f32 %v842, %v843
        %v845 = vrot.slane %v844, 1
        %v846 = vadd.f32 %v844, %v845
        %v847 = vadd.f32 %v755, %v846
        %v848 = vmul.f32 %v698, %v379
        %v849 = vmul.f32 %v695, %v379
        %v850 = vadd.f32 %v254, %v848
        %v851 = vadd.f32 %v254, %v849
        %v852 = vmul.f32 %v689, %v387
        %v853 = vmul.f32 %v690, %v387
        %v854 = vadd.f32 %v850, %v852
        %v855 = vadd.f32 %v851, %v853
        %v856 = vmul.f32 %v701, %v395
        %v857 = vmul.f32 %v704, %v395
        %v858 = vadd.f32 %v854, %v856
        %v859 = vadd.f32 %v855, %v857
        %v860 = vmul.f32 %v790, %v276
        %v861 = vmul.f32 %v787, %v276
        %v862 = vadd.f32 %v858, %v860
        %v863 = vadd.f32 %v859, %v861
        %v864 = vmul.f32 %v781, %v284
        %v865 = vmul.f32 %v782, %v284
        %v866 = vadd.f32 %v862, %v864
        %v867 = vadd.f32 %v863, %v865
        %v868 = vmul.f32 %v793, %v292
        %v869 = vmul.f32 %v796, %v292
        %v870 = vadd.f32 %v866, %v868
        %v871 = vadd.f32 %v867, %v869
        %s872 = scalar_lea.vmem %s202, 112 [#allocation2]
        %v873 = vld [vmem:[%s872] sm:$0xff]
        %v874 = vld [vmem:[%s872 + $0x8] sm:$0xff]
        %v877 = vrot.slane %v873, 7
        %v878 = vrot.slane %v874, 7
        %v879 = vsel %vm259, %v877, %v878
        %v882 = vsel %vm259, 0.0, %v877
        %v883 = vrot.slane %v873, 1
        %v884 = vrot.slane %v874, 1
        %v885 = vsel %vm266, %v883, %v884
        %v888 = vsel %vm266, %v884, 0.0
        %v889 = vmul.f32 %v882, %v317
        %v890 = vmul.f32 %v879, %v317
        %v891 = vadd.f32 %v870, %v889
        %v892 = vadd.f32 %v871, %v890
        %v893 = vmul.f32 %v873, %v325
        %v894 = vmul.f32 %v874, %v325
        %v895 = vadd.f32 %v891, %v893
        %v896 = vadd.f32 %v892, %v894
        %v897 = vmul.f32 %v885, %v333
        %v898 = vmul.f32 %v888, %v333
        %v899 = vadd.f32 %v895, %v897
        %v900 = vadd.f32 %v896, %v898
        %v901 = vmul.f32 %v899, 0.5
        %v902 = vmul.f32 %v900, 0.5
        %v903 = vmul.f32 %v899, 0.70710677
        %v904 = vmul.f32 %v900, 0.70710677
        %v905 = verf.f32.pop %v903
        %v906 = verf.f32.pop %v904
        %v907 = vadd.f32 %v905, 1.0
        %v908 = vadd.f32 %v906, 1.0
        %v909 = vmul.f32 %v901, %v907
        %v910 = vmul.f32 %v902, %v908
        %v911 = vpack.c.bf16 %v910, %v909
        %v913 = vunpack.c.l.b16 %v911
        %v914 = vunpack.c.h.b16 %v911
        %v915 = vpack.c.b16 %v913, %v913
        %v916 = vpack.c.b16 %v914, %v914
        %s919 = scalar_lea.vmem %s239, 48
        %920 = vst [vmem:[%s919] sm:$0xf] %v915
        %921 = vst [vmem:[%s919 + $0x4] sm:$0xf] %v916
        %v922 = vadd.f32 %v909, %v910
        %v923 = vrot.slane %v922, 4
        %v924 = vadd.f32 %v922, %v923
        %v925 = vrot.slane %v924, 2
        %v926 = vadd.f32 %v924, %v925
        %v927 = vrot.slane %v926, 1
        %v928 = vadd.f32 %v926, %v927
        %v929 = vadd.f32 %v837, %v928
        %v930 = vmul.f32 %v909, %v909
        %v931 = vmul.f32 %v910, %v910
        %v932 = vadd.f32 %v930, %v931
        %v933 = vrot.slane %v932, 4
        %v934 = vadd.f32 %v932, %v933
        %v935 = vrot.slane %v934, 2
        %v936 = vadd.f32 %v934, %v935
        %v937 = vrot.slane %v936, 1
        %v938 = vadd.f32 %v936, %v937
        %v939 = vadd.f32 %v847, %v938
        %v940 = vmul.f32 %v790, %v379
        %v941 = vmul.f32 %v787, %v379
        %v942 = vadd.f32 %v254, %v940
        %v943 = vadd.f32 %v254, %v941
        %v944 = vmul.f32 %v781, %v387
        %v945 = vmul.f32 %v782, %v387
        %v946 = vadd.f32 %v942, %v944
        %v947 = vadd.f32 %v943, %v945
        %v948 = vmul.f32 %v793, %v395
        %v949 = vmul.f32 %v796, %v395
        %v950 = vadd.f32 %v946, %v948
        %v951 = vadd.f32 %v947, %v949
        %v952 = vmul.f32 %v882, %v276
        %v953 = vmul.f32 %v879, %v276
        %v954 = vadd.f32 %v950, %v952
        %v955 = vadd.f32 %v951, %v953
        %v956 = vmul.f32 %v873, %v284
        %v957 = vmul.f32 %v874, %v284
        %v958 = vadd.f32 %v954, %v956
        %v959 = vadd.f32 %v955, %v957
        %v960 = vmul.f32 %v885, %v292
        %v961 = vmul.f32 %v888, %v292
        %v962 = vadd.f32 %v958, %v960
        %v963 = vadd.f32 %v959, %v961
        %s964 = scalar_lea.vmem %s202, 128 [#allocation2]
        %v965 = vld [vmem:[%s964] sm:$0xff]
        %v966 = vld [vmem:[%s964 + $0x8] sm:$0xff]
        %v969 = vrot.slane %v965, 7
        %v970 = vrot.slane %v966, 7
        %v971 = vsel %vm259, %v969, %v970
        %v974 = vsel %vm259, 0.0, %v969
        %v975 = vrot.slane %v965, 1
        %v976 = vrot.slane %v966, 1
        %v977 = vsel %vm266, %v975, %v976
        %v980 = vsel %vm266, %v976, 0.0
        %v981 = vmul.f32 %v974, %v317
        %v982 = vmul.f32 %v971, %v317
        %v983 = vadd.f32 %v962, %v981
        %v984 = vadd.f32 %v963, %v982
        %v985 = vmul.f32 %v965, %v325
        %v986 = vmul.f32 %v966, %v325
        %v987 = vadd.f32 %v983, %v985
        %v988 = vadd.f32 %v984, %v986
        %v989 = vmul.f32 %v977, %v333
        %v990 = vmul.f32 %v980, %v333
        %v991 = vadd.f32 %v987, %v989
        %v992 = vadd.f32 %v988, %v990
        %v993 = vmul.f32 %v991, 0.5
        %v994 = vmul.f32 %v992, 0.5
        %v995 = vmul.f32 %v991, 0.70710677
        %v996 = vmul.f32 %v992, 0.70710677
        %v997 = verf.f32.pop %v995
        %v998 = verf.f32.pop %v996
        %v999 = vadd.f32 %v997, 1.0
        %v1000 = vadd.f32 %v998, 1.0
        %v1001 = vmul.f32 %v993, %v999
        %v1002 = vmul.f32 %v994, %v1000
        %v1003 = vpack.c.bf16 %v1002, %v1001
        %v1005 = vunpack.c.l.b16 %v1003
        %v1006 = vunpack.c.h.b16 %v1003
        %v1007 = vpack.c.b16 %v1005, %v1005
        %v1008 = vpack.c.b16 %v1006, %v1006
        %s1011 = scalar_lea.vmem %s239, 56
        %1012 = vst [vmem:[%s1011] sm:$0xf] %v1007
        %1013 = vst [vmem:[%s1011 + $0x4] sm:$0xf] %v1008
        %v1014 = vadd.f32 %v1001, %v1002
        %v1015 = vrot.slane %v1014, 4
        %v1016 = vadd.f32 %v1014, %v1015
        %v1017 = vrot.slane %v1016, 2
        %v1018 = vadd.f32 %v1016, %v1017
        %v1019 = vrot.slane %v1018, 1
        %v1020 = vadd.f32 %v1018, %v1019
        %v1021 = vadd.f32 %v929, %v1020
        %v1022 = vmul.f32 %v1001, %v1001
        %v1023 = vmul.f32 %v1002, %v1002
        %v1024 = vadd.f32 %v1022, %v1023
        %v1025 = vrot.slane %v1024, 4
        %v1026 = vadd.f32 %v1024, %v1025
        %v1027 = vrot.slane %v1026, 2
        %v1028 = vadd.f32 %v1026, %v1027
        %v1029 = vrot.slane %v1028, 1
        %v1030 = vadd.f32 %v1028, %v1029
        %v1031 = vadd.f32 %v939, %v1030
        %v1032 = vmul.f32 %v882, %v379
        %v1033 = vmul.f32 %v879, %v379
        %v1034 = vadd.f32 %v254, %v1032
        %v1035 = vadd.f32 %v254, %v1033
        %v1036 = vmul.f32 %v873, %v387
        %v1037 = vmul.f32 %v874, %v387
        %v1038 = vadd.f32 %v1034, %v1036
        %v1039 = vadd.f32 %v1035, %v1037
        %v1040 = vmul.f32 %v885, %v395
        %v1041 = vmul.f32 %v888, %v395
        %v1042 = vadd.f32 %v1038, %v1040
        %v1043 = vadd.f32 %v1039, %v1041
        %v1044 = vmul.f32 %v974, %v276
        %v1045 = vmul.f32 %v971, %v276
        %v1046 = vadd.f32 %v1042, %v1044
        %v1047 = vadd.f32 %v1043, %v1045
        %v1048 = vmul.f32 %v965, %v284
        %v1049 = vmul.f32 %v966, %v284
        %v1050 = vadd.f32 %v1046, %v1048
        %v1051 = vadd.f32 %v1047, %v1049
        %v1052 = vmul.f32 %v977, %v292
        %v1053 = vmul.f32 %v980, %v292
        %v1054 = vadd.f32 %v1050, %v1052
        %v1055 = vadd.f32 %v1051, %v1053
        %s1056 = scalar_lea.vmem %s202, 144 [#allocation2]
        %v1057 = vld [vmem:[%s1056] sm:$0xff]
        %v1058 = vld [vmem:[%s1056 + $0x8] sm:$0xff]
        %v1061 = vrot.slane %v1057, 7
        %v1062 = vrot.slane %v1058, 7
        %v1063 = vsel %vm259, %v1061, %v1062
        %v1066 = vsel %vm259, 0.0, %v1061
        %v1067 = vrot.slane %v1057, 1
        %v1068 = vrot.slane %v1058, 1
        %v1069 = vsel %vm266, %v1067, %v1068
        %v1072 = vsel %vm266, %v1068, 0.0
        %v1073 = vmul.f32 %v1066, %v317
        %v1074 = vmul.f32 %v1063, %v317
        %v1075 = vadd.f32 %v1054, %v1073
        %v1076 = vadd.f32 %v1055, %v1074
        %v1077 = vmul.f32 %v1057, %v325
        %v1078 = vmul.f32 %v1058, %v325
        %v1079 = vadd.f32 %v1075, %v1077
        %v1080 = vadd.f32 %v1076, %v1078
        %v1081 = vmul.f32 %v1069, %v333
        %v1082 = vmul.f32 %v1072, %v333
        %v1083 = vadd.f32 %v1079, %v1081
        %v1084 = vadd.f32 %v1080, %v1082
        %v1085 = vmul.f32 %v1083, 0.5
        %v1086 = vmul.f32 %v1084, 0.5
        %v1087 = vmul.f32 %v1083, 0.70710677
        %v1088 = vmul.f32 %v1084, 0.70710677
        %v1089 = verf.f32.pop %v1087
        %v1090 = verf.f32.pop %v1088
        %v1091 = vadd.f32 %v1089, 1.0
        %v1092 = vadd.f32 %v1090, 1.0
        %v1093 = vmul.f32 %v1085, %v1091
        %v1094 = vmul.f32 %v1086, %v1092
        %v1095 = vpack.c.bf16 %v1094, %v1093
        %v1097 = vunpack.c.l.b16 %v1095
        %v1098 = vunpack.c.h.b16 %v1095
        %v1099 = vpack.c.b16 %v1097, %v1097
        %v1100 = vpack.c.b16 %v1098, %v1098
        %s1103 = scalar_lea.vmem %s239, 64
        %1104 = vst [vmem:[%s1103] sm:$0xf] %v1099
        %1105 = vst [vmem:[%s1103 + $0x4] sm:$0xf] %v1100
        %v1106 = vadd.f32 %v1093, %v1094
        %v1107 = vrot.slane %v1106, 4
        %v1108 = vadd.f32 %v1106, %v1107
        %v1109 = vrot.slane %v1108, 2
        %v1110 = vadd.f32 %v1108, %v1109
        %v1111 = vrot.slane %v1110, 1
        %v1112 = vadd.f32 %v1110, %v1111
        %v1113 = vadd.f32 %v1021, %v1112
        %v1114 = vmul.f32 %v1093, %v1093
        %v1115 = vmul.f32 %v1094, %v1094
        %v1116 = vadd.f32 %v1114, %v1115
        %v1117 = vrot.slane %v1116, 4
        %v1118 = vadd.f32 %v1116, %v1117
        %v1119 = vrot.slane %v1118, 2
        %v1120 = vadd.f32 %v1118, %v1119
        %v1121 = vrot.slane %v1120, 1
        %v1122 = vadd.f32 %v1120, %v1121
        %v1123 = vadd.f32 %v1031, %v1122
        %v1124 = vmul.f32 %v974, %v379
        %v1125 = vmul.f32 %v971, %v379
        %v1126 = vadd.f32 %v254, %v1124
        %v1127 = vadd.f32 %v254, %v1125
        %v1128 = vmul.f32 %v965, %v387
        %v1129 = vmul.f32 %v966, %v387
        %v1130 = vadd.f32 %v1126, %v1128
        %v1131 = vadd.f32 %v1127, %v1129
        %v1132 = vmul.f32 %v977, %v395
        %v1133 = vmul.f32 %v980, %v395
        %v1134 = vadd.f32 %v1130, %v1132
        %v1135 = vadd.f32 %v1131, %v1133
        %v1136 = vmul.f32 %v1066, %v276
        %v1137 = vmul.f32 %v1063, %v276
        %v1138 = vadd.f32 %v1134, %v1136
        %v1139 = vadd.f32 %v1135, %v1137
        %v1140 = vmul.f32 %v1057, %v284
        %v1141 = vmul.f32 %v1058, %v284
        %v1142 = vadd.f32 %v1138, %v1140
        %v1143 = vadd.f32 %v1139, %v1141
        %v1144 = vmul.f32 %v1069, %v292
        %v1145 = vmul.f32 %v1072, %v292
        %v1146 = vadd.f32 %v1142, %v1144
        %v1147 = vadd.f32 %v1143, %v1145
        %s1148 = scalar_lea.vmem %s202, 160 [#allocation2]
        %v1149 = vld [vmem:[%s1148] sm:$0xff]
        %v1150 = vld [vmem:[%s1148 + $0x8] sm:$0xff]
        %v1153 = vrot.slane %v1149, 7
        %v1154 = vrot.slane %v1150, 7
        %v1155 = vsel %vm259, %v1153, %v1154
        %v1158 = vsel %vm259, 0.0, %v1153
        %v1159 = vrot.slane %v1149, 1
        %v1160 = vrot.slane %v1150, 1
        %v1161 = vsel %vm266, %v1159, %v1160
        %v1164 = vsel %vm266, %v1160, 0.0
        %v1165 = vmul.f32 %v1158, %v317
        %v1166 = vmul.f32 %v1155, %v317
        %v1167 = vadd.f32 %v1146, %v1165
        %v1168 = vadd.f32 %v1147, %v1166
        %v1169 = vmul.f32 %v1149, %v325
        %v1170 = vmul.f32 %v1150, %v325
        %v1171 = vadd.f32 %v1167, %v1169
        %v1172 = vadd.f32 %v1168, %v1170
        %v1173 = vmul.f32 %v1161, %v333
        %v1174 = vmul.f32 %v1164, %v333
        %v1175 = vadd.f32 %v1171, %v1173
        %v1176 = vadd.f32 %v1172, %v1174
        %v1177 = vmul.f32 %v1175, 0.5
        %v1178 = vmul.f32 %v1176, 0.5
        %v1179 = vmul.f32 %v1175, 0.70710677
        %v1180 = vmul.f32 %v1176, 0.70710677
        %v1181 = verf.f32.pop %v1179
        %v1182 = verf.f32.pop %v1180
        %v1183 = vadd.f32 %v1181, 1.0
        %v1184 = vadd.f32 %v1182, 1.0
        %v1185 = vmul.f32 %v1177, %v1183
        %v1186 = vmul.f32 %v1178, %v1184
        %v1187 = vpack.c.bf16 %v1186, %v1185
        %v1189 = vunpack.c.l.b16 %v1187
        %v1190 = vunpack.c.h.b16 %v1187
        %v1191 = vpack.c.b16 %v1189, %v1189
        %v1192 = vpack.c.b16 %v1190, %v1190
        %s1195 = scalar_lea.vmem %s239, 72
        %1196 = vst [vmem:[%s1195] sm:$0xf] %v1191
        %1197 = vst [vmem:[%s1195 + $0x4] sm:$0xf] %v1192
        %v1198 = vadd.f32 %v1185, %v1186
        %v1199 = vrot.slane %v1198, 4
        %v1200 = vadd.f32 %v1198, %v1199
        %v1201 = vrot.slane %v1200, 2
        %v1202 = vadd.f32 %v1200, %v1201
        %v1203 = vrot.slane %v1202, 1
        %v1204 = vadd.f32 %v1202, %v1203
        %v1205 = vadd.f32 %v1113, %v1204
        %v1206 = vmul.f32 %v1185, %v1185
        %v1207 = vmul.f32 %v1186, %v1186
        %v1208 = vadd.f32 %v1206, %v1207
        %v1209 = vrot.slane %v1208, 4
        %v1210 = vadd.f32 %v1208, %v1209
        %v1211 = vrot.slane %v1210, 2
        %v1212 = vadd.f32 %v1210, %v1211
        %v1213 = vrot.slane %v1212, 1
        %v1214 = vadd.f32 %v1212, %v1213
        %v1215 = vadd.f32 %v1123, %v1214
        %v1216 = vmul.f32 %v1066, %v379
        %v1217 = vmul.f32 %v1063, %v379
        %v1218 = vadd.f32 %v254, %v1216
        %v1219 = vadd.f32 %v254, %v1217
        %v1220 = vmul.f32 %v1057, %v387
        %v1221 = vmul.f32 %v1058, %v387
        %v1222 = vadd.f32 %v1218, %v1220
        %v1223 = vadd.f32 %v1219, %v1221
        %v1224 = vmul.f32 %v1069, %v395
        %v1225 = vmul.f32 %v1072, %v395
        %v1226 = vadd.f32 %v1222, %v1224
        %v1227 = vadd.f32 %v1223, %v1225
        %v1228 = vmul.f32 %v1158, %v276
        %v1229 = vmul.f32 %v1155, %v276
        %v1230 = vadd.f32 %v1226, %v1228
        %v1231 = vadd.f32 %v1227, %v1229
        %v1232 = vmul.f32 %v1149, %v284
        %v1233 = vmul.f32 %v1150, %v284
        %v1234 = vadd.f32 %v1230, %v1232
        %v1235 = vadd.f32 %v1231, %v1233
        %v1236 = vmul.f32 %v1161, %v292
        %v1237 = vmul.f32 %v1164, %v292
        %v1238 = vadd.f32 %v1234, %v1236
        %v1239 = vadd.f32 %v1235, %v1237
        %s1240 = scalar_lea.vmem %s202, 176 [#allocation2]
        %v1241 = vld [vmem:[%s1240] sm:$0xff]
        %v1242 = vld [vmem:[%s1240 + $0x8] sm:$0xff]
        %v1245 = vrot.slane %v1241, 7
        %v1246 = vrot.slane %v1242, 7
        %v1247 = vsel %vm259, %v1245, %v1246
        %v1250 = vsel %vm259, 0.0, %v1245
        %v1251 = vrot.slane %v1241, 1
        %v1252 = vrot.slane %v1242, 1
        %v1253 = vsel %vm266, %v1251, %v1252
        %v1256 = vsel %vm266, %v1252, 0.0
        %v1257 = vmul.f32 %v1250, %v317
        %v1258 = vmul.f32 %v1247, %v317
        %v1259 = vadd.f32 %v1238, %v1257
        %v1260 = vadd.f32 %v1239, %v1258
        %v1261 = vmul.f32 %v1241, %v325
        %v1262 = vmul.f32 %v1242, %v325
        %v1263 = vadd.f32 %v1259, %v1261
        %v1264 = vadd.f32 %v1260, %v1262
        %v1265 = vmul.f32 %v1253, %v333
        %v1266 = vmul.f32 %v1256, %v333
        %v1267 = vadd.f32 %v1263, %v1265
        %v1268 = vadd.f32 %v1264, %v1266
        %v1269 = vmul.f32 %v1267, 0.5
        %v1270 = vmul.f32 %v1268, 0.5
        %v1271 = vmul.f32 %v1267, 0.70710677
        %v1272 = vmul.f32 %v1268, 0.70710677
        %v1273 = verf.f32.pop %v1271
        %v1274 = verf.f32.pop %v1272
        %v1275 = vadd.f32 %v1273, 1.0
        %v1276 = vadd.f32 %v1274, 1.0
        %v1277 = vmul.f32 %v1269, %v1275
        %v1278 = vmul.f32 %v1270, %v1276
        %v1279 = vpack.c.bf16 %v1278, %v1277
        %v1281 = vunpack.c.l.b16 %v1279
        %v1282 = vunpack.c.h.b16 %v1279
        %v1283 = vpack.c.b16 %v1281, %v1281
        %v1284 = vpack.c.b16 %v1282, %v1282
        %s1287 = scalar_lea.vmem %s239, 80
        %1288 = vst [vmem:[%s1287] sm:$0xf] %v1283
        %1289 = vst [vmem:[%s1287 + $0x4] sm:$0xf] %v1284
        %v1290 = vadd.f32 %v1277, %v1278
        %v1291 = vrot.slane %v1290, 4
        %v1292 = vadd.f32 %v1290, %v1291
        %v1293 = vrot.slane %v1292, 2
        %v1294 = vadd.f32 %v1292, %v1293
        %v1295 = vrot.slane %v1294, 1
        %v1296 = vadd.f32 %v1294, %v1295
        %v1297 = vadd.f32 %v1205, %v1296
        %v1298 = vmul.f32 %v1277, %v1277
        %v1299 = vmul.f32 %v1278, %v1278
        %v1300 = vadd.f32 %v1298, %v1299
        %v1301 = vrot.slane %v1300, 4
        %v1302 = vadd.f32 %v1300, %v1301
        %v1303 = vrot.slane %v1302, 2
        %v1304 = vadd.f32 %v1302, %v1303
        %v1305 = vrot.slane %v1304, 1
        %v1306 = vadd.f32 %v1304, %v1305
        %v1307 = vadd.f32 %v1215, %v1306
        %v1308 = vmul.f32 %v1158, %v379
        %v1309 = vmul.f32 %v1155, %v379
        %v1310 = vadd.f32 %v254, %v1308
        %v1311 = vadd.f32 %v254, %v1309
        %v1312 = vmul.f32 %v1149, %v387
        %v1313 = vmul.f32 %v1150, %v387
        %v1314 = vadd.f32 %v1310, %v1312
        %v1315 = vadd.f32 %v1311, %v1313
        %v1316 = vmul.f32 %v1161, %v395
        %v1317 = vmul.f32 %v1164, %v395
        %v1318 = vadd.f32 %v1314, %v1316
        %v1319 = vadd.f32 %v1315, %v1317
        %v1320 = vmul.f32 %v1250, %v276
        %v1321 = vmul.f32 %v1247, %v276
        %v1322 = vadd.f32 %v1318, %v1320
        %v1323 = vadd.f32 %v1319, %v1321
        %v1324 = vmul.f32 %v1241, %v284
        %v1325 = vmul.f32 %v1242, %v284
        %v1326 = vadd.f32 %v1322, %v1324
        %v1327 = vadd.f32 %v1323, %v1325
        %v1328 = vmul.f32 %v1253, %v292
        %v1329 = vmul.f32 %v1256, %v292
        %v1330 = vadd.f32 %v1326, %v1328
        %v1331 = vadd.f32 %v1327, %v1329
        %s1332 = scalar_lea.vmem %s202, 192 [#allocation2]
        %v1333 = vld [vmem:[%s1332] sm:$0xff]
        %v1334 = vld [vmem:[%s1332 + $0x8] sm:$0xff]
        %v1337 = vrot.slane %v1333, 7
        %v1338 = vrot.slane %v1334, 7
        %v1339 = vsel %vm259, %v1337, %v1338
        %v1342 = vsel %vm259, 0.0, %v1337
        %v1343 = vrot.slane %v1333, 1
        %v1344 = vrot.slane %v1334, 1
        %v1345 = vsel %vm266, %v1343, %v1344
        %v1348 = vsel %vm266, %v1344, 0.0
        %v1349 = vmul.f32 %v1342, %v317
        %v1350 = vmul.f32 %v1339, %v317
        %v1351 = vadd.f32 %v1330, %v1349
        %v1352 = vadd.f32 %v1331, %v1350
        %v1353 = vmul.f32 %v1333, %v325
        %v1354 = vmul.f32 %v1334, %v325
        %v1355 = vadd.f32 %v1351, %v1353
        %v1356 = vadd.f32 %v1352, %v1354
        %v1357 = vmul.f32 %v1345, %v333
        %v1358 = vmul.f32 %v1348, %v333
        %v1359 = vadd.f32 %v1355, %v1357
        %v1360 = vadd.f32 %v1356, %v1358
        %v1361 = vmul.f32 %v1359, 0.5
        %v1362 = vmul.f32 %v1360, 0.5
        %v1363 = vmul.f32 %v1359, 0.70710677
        %v1364 = vmul.f32 %v1360, 0.70710677
        %v1365 = verf.f32.pop %v1363
        %v1366 = verf.f32.pop %v1364
        %v1367 = vadd.f32 %v1365, 1.0
        %v1368 = vadd.f32 %v1366, 1.0
        %v1369 = vmul.f32 %v1361, %v1367
        %v1370 = vmul.f32 %v1362, %v1368
        %v1371 = vpack.c.bf16 %v1370, %v1369
        %v1373 = vunpack.c.l.b16 %v1371
        %v1374 = vunpack.c.h.b16 %v1371
        %v1375 = vpack.c.b16 %v1373, %v1373
        %v1376 = vpack.c.b16 %v1374, %v1374
        %s1379 = scalar_lea.vmem %s239, 88
        %1380 = vst [vmem:[%s1379] sm:$0xf] %v1375
        %1381 = vst [vmem:[%s1379 + $0x4] sm:$0xf] %v1376
        %v1382 = vadd.f32 %v1369, %v1370
        %v1383 = vrot.slane %v1382, 4
        %v1384 = vadd.f32 %v1382, %v1383
        %v1385 = vrot.slane %v1384, 2
        %v1386 = vadd.f32 %v1384, %v1385
        %v1387 = vrot.slane %v1386, 1
        %v1388 = vadd.f32 %v1386, %v1387
        %v1389 = vadd.f32 %v1297, %v1388
        %v1390 = vmul.f32 %v1369, %v1369
        %v1391 = vmul.f32 %v1370, %v1370
        %v1392 = vadd.f32 %v1390, %v1391
        %v1393 = vrot.slane %v1392, 4
        %v1394 = vadd.f32 %v1392, %v1393
        %v1395 = vrot.slane %v1394, 2
        %v1396 = vadd.f32 %v1394, %v1395
        %v1397 = vrot.slane %v1396, 1
        %v1398 = vadd.f32 %v1396, %v1397
        %v1399 = vadd.f32 %v1307, %v1398
        %v1400 = vmul.f32 %v1250, %v379
        %v1401 = vmul.f32 %v1247, %v379
        %v1402 = vadd.f32 %v254, %v1400
        %v1403 = vadd.f32 %v254, %v1401
        %v1404 = vmul.f32 %v1241, %v387
        %v1405 = vmul.f32 %v1242, %v387
        %v1406 = vadd.f32 %v1402, %v1404
        %v1407 = vadd.f32 %v1403, %v1405
        %v1408 = vmul.f32 %v1253, %v395
        %v1409 = vmul.f32 %v1256, %v395
        %v1410 = vadd.f32 %v1406, %v1408
        %v1411 = vadd.f32 %v1407, %v1409
        %v1412 = vmul.f32 %v1342, %v276
        %v1413 = vmul.f32 %v1339, %v276
        %v1414 = vadd.f32 %v1410, %v1412
        %v1415 = vadd.f32 %v1411, %v1413
        %v1416 = vmul.f32 %v1333, %v284
        %v1417 = vmul.f32 %v1334, %v284
        %v1418 = vadd.f32 %v1414, %v1416
        %v1419 = vadd.f32 %v1415, %v1417
        %v1420 = vmul.f32 %v1345, %v292
        %v1421 = vmul.f32 %v1348, %v292
        %v1422 = vadd.f32 %v1418, %v1420
        %v1423 = vadd.f32 %v1419, %v1421
        %s1424 = scalar_lea.vmem %s202, 208 [#allocation2]
        %v1425 = vld [vmem:[%s1424] sm:$0xff]
        %v1426 = vld [vmem:[%s1424 + $0x8] sm:$0xff]
        %v1429 = vrot.slane %v1425, 7
        %v1430 = vrot.slane %v1426, 7
        %v1431 = vsel %vm259, %v1429, %v1430
        %v1434 = vsel %vm259, 0.0, %v1429
        %v1435 = vrot.slane %v1425, 1
        %v1436 = vrot.slane %v1426, 1
        %v1437 = vsel %vm266, %v1435, %v1436
        %v1440 = vsel %vm266, %v1436, 0.0
        %v1441 = vmul.f32 %v1434, %v317
        %v1442 = vmul.f32 %v1431, %v317
        %v1443 = vadd.f32 %v1422, %v1441
        %v1444 = vadd.f32 %v1423, %v1442
        %v1445 = vmul.f32 %v1425, %v325
        %v1446 = vmul.f32 %v1426, %v325
        %v1447 = vadd.f32 %v1443, %v1445
        %v1448 = vadd.f32 %v1444, %v1446
        %v1449 = vmul.f32 %v1437, %v333
        %v1450 = vmul.f32 %v1440, %v333
        %v1451 = vadd.f32 %v1447, %v1449
        %v1452 = vadd.f32 %v1448, %v1450
        %v1453 = vmul.f32 %v1451, 0.5
        %v1454 = vmul.f32 %v1452, 0.5
        %v1455 = vmul.f32 %v1451, 0.70710677
        %v1456 = vmul.f32 %v1452, 0.70710677
        %v1457 = verf.f32.pop %v1455
        %v1458 = verf.f32.pop %v1456
        %v1459 = vadd.f32 %v1457, 1.0
        %v1460 = vadd.f32 %v1458, 1.0
        %v1461 = vmul.f32 %v1453, %v1459
        %v1462 = vmul.f32 %v1454, %v1460
        %v1463 = vpack.c.bf16 %v1462, %v1461
        %v1465 = vunpack.c.l.b16 %v1463
        %v1466 = vunpack.c.h.b16 %v1463
        %v1467 = vpack.c.b16 %v1465, %v1465
        %v1468 = vpack.c.b16 %v1466, %v1466
        %s1471 = scalar_lea.vmem %s239, 96
        %1472 = vst [vmem:[%s1471] sm:$0xf] %v1467
        %1473 = vst [vmem:[%s1471 + $0x4] sm:$0xf] %v1468
        %v1474 = vadd.f32 %v1461, %v1462
        %v1475 = vrot.slane %v1474, 4
        %v1476 = vadd.f32 %v1474, %v1475
        %v1477 = vrot.slane %v1476, 2
        %v1478 = vadd.f32 %v1476, %v1477
        %v1479 = vrot.slane %v1478, 1
        %v1480 = vadd.f32 %v1478, %v1479
        %v1481 = vadd.f32 %v1389, %v1480
        %v1482 = vmul.f32 %v1461, %v1461
        %v1483 = vmul.f32 %v1462, %v1462
        %v1484 = vadd.f32 %v1482, %v1483
        %v1485 = vrot.slane %v1484, 4
        %v1486 = vadd.f32 %v1484, %v1485
        %v1487 = vrot.slane %v1486, 2
        %v1488 = vadd.f32 %v1486, %v1487
        %v1489 = vrot.slane %v1488, 1
        %v1490 = vadd.f32 %v1488, %v1489
        %v1491 = vadd.f32 %v1399, %v1490
        %v1492 = vmul.f32 %v1342, %v379
        %v1493 = vmul.f32 %v1339, %v379
        %v1494 = vadd.f32 %v254, %v1492
        %v1495 = vadd.f32 %v254, %v1493
        %v1496 = vmul.f32 %v1333, %v387
        %v1497 = vmul.f32 %v1334, %v387
        %v1498 = vadd.f32 %v1494, %v1496
        %v1499 = vadd.f32 %v1495, %v1497
        %v1500 = vmul.f32 %v1345, %v395
        %v1501 = vmul.f32 %v1348, %v395
        %v1502 = vadd.f32 %v1498, %v1500
        %v1503 = vadd.f32 %v1499, %v1501
        %v1504 = vmul.f32 %v1434, %v276
        %v1505 = vmul.f32 %v1431, %v276
        %v1506 = vadd.f32 %v1502, %v1504
        %v1507 = vadd.f32 %v1503, %v1505
        %v1508 = vmul.f32 %v1425, %v284
        %v1509 = vmul.f32 %v1426, %v284
        %v1510 = vadd.f32 %v1506, %v1508
        %v1511 = vadd.f32 %v1507, %v1509
        %v1512 = vmul.f32 %v1437, %v292
        %v1513 = vmul.f32 %v1440, %v292
        %v1514 = vadd.f32 %v1510, %v1512
        %v1515 = vadd.f32 %v1511, %v1513
        %s1516 = scalar_lea.vmem %s202, 224 [#allocation2]
        %v1517 = vld [vmem:[%s1516] sm:$0xff]
        %v1518 = vld [vmem:[%s1516 + $0x8] sm:$0xff]
        %v1521 = vrot.slane %v1517, 7
        %v1522 = vrot.slane %v1518, 7
        %v1523 = vsel %vm259, %v1521, %v1522
        %v1526 = vsel %vm259, 0.0, %v1521
        %v1527 = vrot.slane %v1517, 1
        %v1528 = vrot.slane %v1518, 1
        %v1529 = vsel %vm266, %v1527, %v1528
        %v1532 = vsel %vm266, %v1528, 0.0
        %v1533 = vmul.f32 %v1526, %v317
        %v1534 = vmul.f32 %v1523, %v317
        %v1535 = vadd.f32 %v1514, %v1533
        %v1536 = vadd.f32 %v1515, %v1534
        %v1537 = vmul.f32 %v1517, %v325
        %v1538 = vmul.f32 %v1518, %v325
        %v1539 = vadd.f32 %v1535, %v1537
        %v1540 = vadd.f32 %v1536, %v1538
        %v1541 = vmul.f32 %v1529, %v333
        %v1542 = vmul.f32 %v1532, %v333
        %v1543 = vadd.f32 %v1539, %v1541
        %v1544 = vadd.f32 %v1540, %v1542
        %v1545 = vmul.f32 %v1543, 0.5
        %v1546 = vmul.f32 %v1544, 0.5
        %v1547 = vmul.f32 %v1543, 0.70710677
        %v1548 = vmul.f32 %v1544, 0.70710677
        %v1549 = verf.f32.pop %v1547
        %v1550 = verf.f32.pop %v1548
        %v1551 = vadd.f32 %v1549, 1.0
        %v1552 = vadd.f32 %v1550, 1.0
        %v1553 = vmul.f32 %v1545, %v1551
        %v1554 = vmul.f32 %v1546, %v1552
        %v1555 = vpack.c.bf16 %v1554, %v1553
        %v1557 = vunpack.c.l.b16 %v1555
        %v1558 = vunpack.c.h.b16 %v1555
        %v1559 = vpack.c.b16 %v1557, %v1557
        %v1560 = vpack.c.b16 %v1558, %v1558
        %s1563 = scalar_lea.vmem %s239, 104
        %1564 = vst [vmem:[%s1563] sm:$0xf] %v1559
        %1565 = vst [vmem:[%s1563 + $0x4] sm:$0xf] %v1560
        %v1566 = vadd.f32 %v1553, %v1554
        %v1567 = vrot.slane %v1566, 4
        %v1568 = vadd.f32 %v1566, %v1567
        %v1569 = vrot.slane %v1568, 2
        %v1570 = vadd.f32 %v1568, %v1569
        %v1571 = vrot.slane %v1570, 1
        %v1572 = vadd.f32 %v1570, %v1571
        %v1573 = vadd.f32 %v1481, %v1572
        %v1574 = vmul.f32 %v1553, %v1553
        %v1575 = vmul.f32 %v1554, %v1554
        %v1576 = vadd.f32 %v1574, %v1575
        %v1577 = vrot.slane %v1576, 4
        %v1578 = vadd.f32 %v1576, %v1577
        %v1579 = vrot.slane %v1578, 2
        %v1580 = vadd.f32 %v1578, %v1579
        %v1581 = vrot.slane %v1580, 1
        %v1582 = vadd.f32 %v1580, %v1581
        %v1583 = vadd.f32 %v1491, %v1582
        %v1584 = vmul.f32 %v1434, %v379
        %v1585 = vmul.f32 %v1431, %v379
        %v1586 = vadd.f32 %v254, %v1584
        %v1587 = vadd.f32 %v254, %v1585
        %v1588 = vmul.f32 %v1425, %v387
        %v1589 = vmul.f32 %v1426, %v387
        %v1590 = vadd.f32 %v1586, %v1588
        %v1591 = vadd.f32 %v1587, %v1589
        %v1592 = vmul.f32 %v1437, %v395
        %v1593 = vmul.f32 %v1440, %v395
        %v1594 = vadd.f32 %v1590, %v1592
        %v1595 = vadd.f32 %v1591, %v1593
        %v1596 = vmul.f32 %v1526, %v276
        %v1597 = vmul.f32 %v1523, %v276
        %v1598 = vadd.f32 %v1594, %v1596
        %v1599 = vadd.f32 %v1595, %v1597
        %v1600 = vmul.f32 %v1517, %v284
        %v1601 = vmul.f32 %v1518, %v284
        %v1602 = vadd.f32 %v1598, %v1600
        %v1603 = vadd.f32 %v1599, %v1601
        %v1604 = vmul.f32 %v1529, %v292
        %v1605 = vmul.f32 %v1532, %v292
        %v1606 = vadd.f32 %v1602, %v1604
        %v1607 = vadd.f32 %v1603, %v1605
        %s1608 = scalar_lea.vmem %s202, 240 [#allocation2]
        %v1609 = vld [vmem:[%s1608] sm:$0xff]
        %v1610 = vld [vmem:[%s1608 + $0x8] sm:$0xff]
        %v1613 = vrot.slane %v1609, 7
        %v1614 = vrot.slane %v1610, 7
        %v1615 = vsel %vm259, %v1613, %v1614
        %v1618 = vsel %vm259, 0.0, %v1613
        %v1619 = vrot.slane %v1609, 1
        %v1620 = vrot.slane %v1610, 1
        %v1621 = vsel %vm266, %v1619, %v1620
        %v1624 = vsel %vm266, %v1620, 0.0
        %v1625 = vmul.f32 %v1618, %v317
        %v1626 = vmul.f32 %v1615, %v317
        %v1627 = vadd.f32 %v1606, %v1625
        %v1628 = vadd.f32 %v1607, %v1626
        %v1629 = vmul.f32 %v1609, %v325
        %v1630 = vmul.f32 %v1610, %v325
        %v1631 = vadd.f32 %v1627, %v1629
        %v1632 = vadd.f32 %v1628, %v1630
        %v1633 = vmul.f32 %v1621, %v333
        %v1634 = vmul.f32 %v1624, %v333
        %v1635 = vadd.f32 %v1631, %v1633
        %v1636 = vadd.f32 %v1632, %v1634
        %v1637 = vmul.f32 %v1635, 0.5
        %v1638 = vmul.f32 %v1636, 0.5
        %v1639 = vmul.f32 %v1635, 0.70710677
        %v1640 = vmul.f32 %v1636, 0.70710677
        %v1641 = verf.f32.pop %v1639
        %v1642 = verf.f32.pop %v1640
        %v1643 = vadd.f32 %v1641, 1.0
        %v1644 = vadd.f32 %v1642, 1.0
        %v1645 = vmul.f32 %v1637, %v1643
        %v1646 = vmul.f32 %v1638, %v1644
        %v1647 = vpack.c.bf16 %v1646, %v1645
        %v1649 = vunpack.c.l.b16 %v1647
        %v1650 = vunpack.c.h.b16 %v1647
        %v1651 = vpack.c.b16 %v1649, %v1649
        %v1652 = vpack.c.b16 %v1650, %v1650
        %s1655 = scalar_lea.vmem %s239, 112
        %1656 = vst [vmem:[%s1655] sm:$0xf] %v1651
        %1657 = vst [vmem:[%s1655 + $0x4] sm:$0xf] %v1652
        %v1658 = vadd.f32 %v1645, %v1646
        %v1659 = vrot.slane %v1658, 4
        %v1660 = vadd.f32 %v1658, %v1659
        %v1661 = vrot.slane %v1660, 2
        %v1662 = vadd.f32 %v1660, %v1661
        %v1663 = vrot.slane %v1662, 1
        %v1664 = vadd.f32 %v1662, %v1663
        %v1665 = vadd.f32 %v1573, %v1664
        %v1666 = vmul.f32 %v1645, %v1645
        %v1667 = vmul.f32 %v1646, %v1646
        %v1668 = vadd.f32 %v1666, %v1667
        %v1669 = vrot.slane %v1668, 4
        %v1670 = vadd.f32 %v1668, %v1669
        %v1671 = vrot.slane %v1670, 2
        %v1672 = vadd.f32 %v1670, %v1671
        %v1673 = vrot.slane %v1672, 1
        %v1674 = vadd.f32 %v1672, %v1673
        %v1675 = vadd.f32 %v1583, %v1674
        %v1676 = vmul.f32 %v1526, %v379
        %v1677 = vmul.f32 %v1523, %v379
        %v1678 = vadd.f32 %v254, %v1676
        %v1679 = vadd.f32 %v254, %v1677
        %v1680 = vmul.f32 %v1517, %v387
        %v1681 = vmul.f32 %v1518, %v387
        %v1682 = vadd.f32 %v1678, %v1680
        %v1683 = vadd.f32 %v1679, %v1681
        %v1684 = vmul.f32 %v1529, %v395
        %v1685 = vmul.f32 %v1532, %v395
        %v1686 = vadd.f32 %v1682, %v1684
        %v1687 = vadd.f32 %v1683, %v1685
        %v1688 = vmul.f32 %v1618, %v276
        %v1689 = vmul.f32 %v1615, %v276
        %v1690 = vadd.f32 %v1686, %v1688
        %v1691 = vadd.f32 %v1687, %v1689
        %v1692 = vmul.f32 %v1609, %v284
        %v1693 = vmul.f32 %v1610, %v284
        %v1694 = vadd.f32 %v1690, %v1692
        %v1695 = vadd.f32 %v1691, %v1693
        %v1696 = vmul.f32 %v1621, %v292
        %v1697 = vmul.f32 %v1624, %v292
        %v1698 = vadd.f32 %v1694, %v1696
        %v1699 = vadd.f32 %v1695, %v1697
        %v1700 = vmul.f32 %v1698, 0.5
        %v1701 = vmul.f32 %v1699, 0.5
        %v1702 = vmul.f32 %v1698, 0.70710677
        %v1703 = vmul.f32 %v1699, 0.70710677
        %v1704 = verf.f32.pop %v1702
        %v1705 = verf.f32.pop %v1703
        %v1706 = vadd.f32 %v1704, 1.0
        %v1707 = vadd.f32 %v1705, 1.0
        %v1708 = vmul.f32 %v1700, %v1706
        %v1709 = vmul.f32 %v1701, %v1707
        %v1710 = vpack.c.bf16 %v1709, %v1708
        %v1712 = vunpack.c.l.b16 %v1710
        %v1713 = vunpack.c.h.b16 %v1710
        %v1714 = vpack.c.b16 %v1712, %v1712
        %v1715 = vpack.c.b16 %v1713, %v1713
        %s1718 = scalar_lea.vmem %s239, 120
        %1719 = vst [vmem:[%s1718] sm:$0xf] %v1714
        %1720 = vst [vmem:[%s1718 + $0x4] sm:$0xf] %v1715
        %v1721 = vadd.f32 %v1708, %v1709
        %v1722 = vrot.slane %v1721, 4
        %v1723 = vadd.f32 %v1721, %v1722
        %v1724 = vrot.slane %v1723, 2
        %v1725 = vadd.f32 %v1723, %v1724
        %v1726 = vrot.slane %v1725, 1
        %v1727 = vadd.f32 %v1725, %v1726
        %v1728 = vadd.f32 %v1665, %v1727
        %v1729 = vmul.f32 %v1708, %v1708
        %v1730 = vmul.f32 %v1709, %v1709
        %v1731 = vadd.f32 %v1729, %v1730
        %v1732 = vrot.slane %v1731, 4
        %v1733 = vadd.f32 %v1731, %v1732
        %v1734 = vrot.slane %v1733, 2
        %v1735 = vadd.f32 %v1733, %v1734
        %v1736 = vrot.slane %v1735, 1
        %v1737 = vadd.f32 %v1735, %v1736
        %v1738 = vadd.f32 %v1675, %v1737
        %1739 = vst [vmem:[%s243] sm:$0x1] %v1728
        %1740 = vst [vmem:[%s243 + $0x1] sm:$0x1] %v1738
        %p1741 = scmp.lt.s32.totalorder %s20, 1
        %s1742 = scalar_select %p1741, %s20, 1
        %s1743 = smul.addr %s1742, 32
        %s1744 = smul.addr %s1743, 4
        %s1745 = scalar_lea.vmem %s3, %s1744
        %p1746 = scmp.lt.s32.totalorder %s20, 1
        %s1747 = scalar_select %p1746, %s20, 1
        %s1748 = smul.addr %s1747, 2
        %s1749 = scalar_lea.vmem %s4, %s1748
        // Predicated region
        $region41: #{lpi_forward.2} parent=31 // pred_check
          %p1750 = pneg %p106
        $region42: #{lpi_forward.2} parent=31 // pred_check_branch
          %1752 = sbr.rel (%p1750) target = $region44
        $region43: #{lpi_forward.2} parent=31 // pred_region
          _
        $region44: #{lpi_forward.2} parent=31 // pred_fallthru
          _
        // Predicated region
        $region45: #{lpi_forward.2} parent=31 // pred_check
          %p1753 = pneg %p132
        $region46: #{lpi_forward.2} parent=31 // pred_check_branch
          %1755 = sbr.rel (%p1753) target = $region48
        $region47: #{lpi_forward.2} parent=31 // pred_region
          _
        $region48: #{lpi_forward.2} parent=31 // pred_fallthru
          _
      $region32: #{lpi_forward.2} parent=5 // pred_fallthru
        _
      %p1756 = scmp.le.s32.totalorder 2, %s15
      // Predicated region
      $region49: #{lpi_forward.2} parent=5 // pred_check
        %p1757 = pneg %p1756
      $region50: #{lpi_forward.2} parent=5 // pred_check_branch
        %1759 = sbr.rel (%p1757) target = $region52
      $region51: #{lpi_forward.2} parent=5 // pred_region
        %s1760 = ssub.s32 %s15, 2
        // Predicated region
        $region53: #{lpi_forward.2} parent=51 // pred_check
          %p1761 = pneg %p112
        $region54: #{lpi_forward.2} parent=51 // pred_check_branch
          %1763 = sbr.rel (%p1761) target = $region56
        $region55: #{lpi_forward.2} parent=51 // pred_region
          %p1764 = scmp.lt.s32.totalorder %s21, 1
          %s1765 = scalar_select %p1764, %s21, 1
          %s1766 = smul.addr %s1765, 32
          %s1767 = smul.addr %s1766, 4
          %s1768 = scalar_lea.vmem %s3, %s1767
        $region56: #{lpi_forward.2} parent=51 // pred_fallthru
          _
        // Predicated region
        $region57: #{lpi_forward.2} parent=51 // pred_check
          %p1769 = pneg %p138
        $region58: #{lpi_forward.2} parent=51 // pred_check_branch
          %1771 = sbr.rel (%p1769) target = $region60
        $region59: #{lpi_forward.2} parent=51 // pred_region
          %p1772 = scmp.lt.s32.totalorder %s21, 1
          %s1773 = scalar_select %p1772, %s21, 1
          %s1774 = smul.addr %s1773, 2
          %s1775 = scalar_lea.vmem %s4, %s1774
        $region60: #{lpi_forward.2} parent=51 // pred_fallthru
          _
      $region52: #{lpi_forward.2} parent=5 // pred_fallthru
        _
    $region6: #{lpi_forward.2} parent=1 // loop_footer
      %s19 = sadd.s32 1, %s15
    $region7: #{lpi_forward.2} parent=1 // loop_footer_branch
      %14 = sbr.rel target = $region3
    $region8: #{lpi_forward.2} parent=1 // loop_exit
      _
    %1776 = vsyncpa [#allocation3], 1
    %s1777 = scalar_lea.sflag [#allocation3], 1
    %1778 = vsyncpa %s1777, 1
    %1779 = vsyncpa [#allocation5], 1

</llo_original>
